<compile_context>
chip_gen: v6e
topology: v6e:2x2x1
jax: 0.10.0
libtpu: 0.0.40
codegen_flags: <defaults>
</compile_context>

<pallas_src>
import functools

import jax
import jax.numpy as jnp
from jax.experimental import pallas as pl
from jax.experimental.pallas import tpu as pltpu

EPS = 1e-5  # PyTorch BatchNorm1d default eps

_LANE = 128
_SUBLANE = 8


def _round_up(a, m):
    return (a + m - 1) // m * m


# ----------------------------------------------------------------------------
# Pass 1: dilated conv (3 accumulating matmuls on a halo'd tile), write the
#         conv tile, accumulate per-(batch, channel) sum / sum-of-squares.
# ----------------------------------------------------------------------------
def _conv_stats_kernel(x_ref, halo_ref, w_ref, conv_ref, stats_ref, *,
                       dilation, t_tile, t_valid, mask_tail):
    # x_ref    : (1, Cip, tT)       input tile (global left-pad already applied)
    # halo_ref : (1, 1, Cip, 2*d)   right-halo columns for this tile
    # w_ref    : (3, Cp, Cip)       tap-major conv weight (bias dropped: BN cancels)
    # conv_ref : (1, Cp, tT)        conv tile, written to HBM for pass 2
    # stats_ref: (1, Cp, 2)         per-batch accumulator: [:,0]=sum, [:,1]=sumsq
    @pl.when(pl.program_id(1) == 0)
    def _():
        stats_ref[...] = jnp.zeros_like(stats_ref)

    d = dilation
    x = x_ref[0]                                              # (Cip, tT)
    xt = jnp.concatenate([x, halo_ref[0, 0]], axis=-1)        # (Cip, tT + 2d)

    conv = jnp.dot(w_ref[0], x, preferred_element_type=jnp.float32)
    conv = conv + jnp.dot(w_ref[1], xt[:, d:d + t_tile],
                          preferred_element_type=jnp.float32)
    conv = conv + jnp.dot(w_ref[2], xt[:, 2 * d:2 * d + t_tile],
                          preferred_element_type=jnp.float32)

    if mask_tail:
        # Padded time columns see real trailing samples through the halo, so
        # they must be zeroed before they reach the statistics.
        col = (jax.lax.broadcasted_iota(jnp.int32, conv.shape, 1)
               + pl.program_id(1) * t_tile)
        conv = jnp.where(col < t_valid, conv, 0.0)

    conv_ref[0] = conv.astype(conv_ref.dtype)
    # Two independent lane-slice updates (no lane-axis concatenate).
    stats_ref[0, :, 0:1] += jnp.sum(conv, axis=1, keepdims=True)
    stats_ref[0, :, 1:2] += jnp.sum(conv * conv, axis=1, keepdims=True)


# ----------------------------------------------------------------------------
# Pass 2: pure elementwise fused BN+modulation affine + ReLU, in place over the
#         conv buffer (no matmul, no slab read).
# ----------------------------------------------------------------------------
def _affine_relu_kernel(conv_ref, ss_ref, out_ref):
    scale = ss_ref[0, :, 0:1]                                 # (Cp, 1)
    shift = ss_ref[0, :, 1:2]
    out_ref[0] = jnp.maximum(scale * conv_ref[0] + shift, 0.0).astype(out_ref.dtype)


# ----------------------------------------------------------------------------
# Wrapper
# ----------------------------------------------------------------------------
def dilated_conv_block(x, z, s, params, dilation, *, time_tile=512,
                       compute_dtype=jnp.float32):
    """x: (B, C_in, T), z: (B, Zc), s: (B, Sc) -> (B, C_out, T) float32."""
    B, C_in, T = x.shape
    C_out = params["conv_w"].shape[0]
    d = int(dilation)
    pad = d                                   # (k-1)//2 * d for k=3 "same"

    tT = min(_round_up(T, _LANE), _round_up(time_tile, _LANE))
    Tp = _round_up(T, tT)
    n_t = Tp // tT

    Cip = _round_up(C_in, _SUBLANE)
    Cp = _round_up(C_out, _SUBLANE)

    # ---- layout plumbing (one cheap pad; no 3x tap slab) ---------------------
    xp = jnp.pad(x, ((0, 0), (0, Cip - C_in), (pad, (Tp - T) + pad)))
    xp = xp.astype(compute_dtype)                       # (B, Cip, Tp + 2*pad)

    # Per-tile right-halo columns: halo[b, j] = xp[b, :, (j+1)*tT : (j+1)*tT + 2*pad]
    cols = (jnp.arange(n_t) * tT + tT)[:, None] + jnp.arange(2 * pad)[None, :]
    halo = jnp.transpose(xp[:, :, cols], (0, 2, 1, 3))  # (B, n_t, Cip, 2*pad)

    # Conv weight (C_out, C_in, 3) -> tap-major (3, Cp, Cip).  Conv bias is
    # intentionally unused: affine=False BatchNorm subtracts the per-channel
    # mean over (B, T), cancelling it exactly.
    w = jnp.transpose(params["conv_w"], (2, 0, 1))
    w = jnp.pad(w, ((0, 0), (0, Cp - C_out), (0, Cip - C_in))).astype(compute_dtype)

    kern1 = functools.partial(_conv_stats_kernel, dilation=d, t_tile=tT,
                              t_valid=T, mask_tail=(Tp != T))

    conv_buf, stats = pl.pallas_call(
        kern1,
        out_shape=(jax.ShapeDtypeStruct((B, Cp, Tp), jnp.float32),
                   jax.ShapeDtypeStruct((B, Cp, 2), jnp.float32)),
        grid=(B, n_t),
        in_specs=[
            pl.BlockSpec((1, Cip, tT), lambda b, j: (b, 0, j)),
            pl.BlockSpec((1, 1, Cip, 2 * pad), lambda b, j: (b, j, 0, 0)),
            pl.BlockSpec((3, Cp, Cip), lambda b, j: (0, 0, 0)),
        ],
        out_specs=(
            pl.BlockSpec((1, Cp, tT), lambda b, j: (b, 0, j)),
            pl.BlockSpec((1, Cp, 2), lambda b, j: (b, 0, 0)),
        ),
        compiler_params=pltpu.CompilerParams(
            # Batch axis parallel (per-batch stats blocks -> v7x megacore can
            # shard it); time axis is the resident-accumulator axis.
            dimension_semantics=("parallel", "arbitrary")),
    )(xp, halo, w)

    # ---- tiny plain-JAX glue: BN stats + z/s modulation -> fused affine ------
    n = B * T
    mean = jnp.sum(stats[:, :, 0], axis=0) / n                         # (Cp,)
    var = jnp.maximum(jnp.sum(stats[:, :, 1], axis=0) / n - mean * mean, 0.0)
    inv_std = jax.lax.rsqrt(var + EPS)

    def sn(wm):  # exact largest singular value (PyTorch uses power iteration)
        return wm / jnp.linalg.norm(wm, ord=2)

    scale = z @ sn(params["scale_w"]).T + params["scale_b"]            # (B, C_out)
    shift = s @ sn(params["shift_w"]).T + params["shift_b"]            # (B, C_out)
    scale = jnp.pad(scale, ((0, 0), (0, Cp - C_out)))
    shift = jnp.pad(shift, ((0, 0), (0, Cp - C_out)))

    scale_eff = scale * inv_std[None, :]                               # (B, Cp)
    shift_eff = shift - scale_eff * mean[None, :]
    ss = jnp.stack([scale_eff, shift_eff], axis=-1).astype(jnp.float32)  # (B, Cp, 2)

    # ---- pass 2: elementwise affine + ReLU, in place over the conv buffer ----
    out = pl.pallas_call(
        _affine_relu_kernel,
        out_shape=jax.ShapeDtypeStruct((B, Cp, Tp), jnp.float32),
        grid=(B, n_t),
        in_specs=[
            pl.BlockSpec((1, Cp, tT), lambda b, j: (b, 0, j)),
            pl.BlockSpec((1, Cp, 2), lambda b, j: (b, 0, 0)),
        ],
        out_specs=pl.BlockSpec((1, Cp, tT), lambda b, j: (b, 0, j)),
        input_output_aliases={0: 0},            # reuse conv_buf's HBM in place
        compiler_params=pltpu.CompilerParams(
            dimension_semantics=("parallel", "parallel")),
    )(conv_buf, ss)

    return out[:, :C_out, :T]


# ----------------------------------------------------------------------------
# Pure-JAX reference (keeps the conv bias to verify its exact cancellation by
# affine=False BatchNorm).
# ----------------------------------------------------------------------------
def reference(x, z, s, params, dilation):
    pad = dilation
    conv = jax.lax.conv_general_dilated(
        x, params["conv_w"],
        window_strides=(1,), padding=[(pad, pad)],
        rhs_dilation=(dilation,),
        dimension_numbers=("NCH", "OIH", "NCH"),
    ) + params["conv_b"][None, :, None]

    mean = jnp.mean(conv, axis=(0, 2), keepdims=True)
    var = jnp.mean(jnp.square(conv - mean), axis=(0, 2), keepdims=True)
    normed = (conv - mean) / jnp.sqrt(var + EPS)

    def sn(w):
        return w / jnp.linalg.norm(w, ord=2)

    scale = z @ sn(params["scale_w"]).T + params["scale_b"]
    shift = s @ sn(params["shift_w"]).T + params["shift_b"]
    out = scale[:, :, None] * normed + shift[:, :, None]
    return jnp.maximum(out, 0.0)


# ----------------------------------------------------------------------------
# Main
# ----------------------------------------------------------------------------
if __name__ == "__main__":
    B, C_in, C_out, T = 2, 4, 8, 16
    Zc, Sc = 32, 32
    dilation = 2

    key = jax.random.PRNGKey(0)
    kx, kz, ks, kw, kb, ksw, kshw = jax.random.split(key, 7)

    x = jax.random.normal(kx, (B, C_in, T), jnp.float32)
    z = jax.random.normal(kz, (B, Zc), jnp.float32)
    s = jax.random.normal(ks, (B, Sc), jnp.float32)

    fan_in = C_in * 3
    params = {
        # Conv1d default init: U(-1/sqrt(fan_in), 1/sqrt(fan_in))
        "conv_w": jax.random.uniform(kw, (C_out, C_in, 3), jnp.float32,
                                     -1.0 / jnp.sqrt(fan_in), 1.0 / jnp.sqrt(fan_in)),
        "conv_b": jax.random.uniform(kb, (C_out,), jnp.float32,
                                     -1.0 / jnp.sqrt(fan_in), 1.0 / jnp.sqrt(fan_in)),
        # scale/shift layers: weight ~ N(1, 0.02), bias = 0 (per module __init__)
        "scale_w": 1.0 + 0.02 * jax.random.normal(ksw, (C_out, Zc), jnp.float32),
        "scale_b": jnp.zeros((C_out,), jnp.float32),
        "shift_w": 1.0 + 0.02 * jax.random.normal(kshw, (C_out, Sc), jnp.float32),
        "shift_b": jnp.zeros((C_out,), jnp.float32),
    }

    fwd = jax.jit(dilated_conv_block,
                  static_argnames=("dilation", "time_tile", "compute_dtype"))

    # f32 path: strict check against the pure-JAX reference.
    out = jax.block_until_ready(fwd(x, z, s, params, dilation=dilation))
    ref = reference(x, z, s, params, dilation)
    if not jnp.allclose(out, ref, rtol=1e-4, atol=1e-4):
        raise AssertionError("Pallas kernel (f32) output does not match reference")

    # bf16 compute path (halves dominant HBM read traffic; f32 accumulation):
    # looser tolerance reflecting bf16 input quantisation only.
    out_bf16 = jax.block_until_ready(
        fwd(x, z, s, params, dilation=dilation, compute_dtype=jnp.bfloat16))
    if not jnp.allclose(out_bf16, ref, rtol=5e-2, atol=5e-2):
        raise AssertionError("Pallas kernel (bf16 compute) deviates too far from reference")

    print("KERNEL_OK")
</pallas_src>

<mosaic_0001>
module attributes {stable_mosaic.version = 11 : i64} {
  func.func @_conv_stats_kernel(%arg0: i32, %arg1: i32, %arg2: memref<1x8x128xf32, #tpu.memory_space<vmem>>, %arg3: memref<1x1x8x4xf32, #tpu.memory_space<vmem>>, %arg4: memref<3x8x8xf32, #tpu.memory_space<vmem>>, %arg5: memref<1x8x128xf32, #tpu.memory_space<vmem>>, %arg6: memref<1x8x2xf32, #tpu.memory_space<vmem>>) attributes {dimension_semantics = [#tpu.dimension_semantics<parallel>, #tpu.dimension_semantics<arbitrary>], iteration_bounds = array<i64: 2, 1>, scalar_prefetch = 0 : i64, scratch_operands = 0 : i64, tpu.core_type = #tpu.core_type<tc>, window_params = [{transform_indices = @transform_0, window_bounds = array<i64: 1, 8, 128>}, {transform_indices = @transform_1, window_bounds = array<i64: 1, 1, 8, 4>}, {pipeline_mode = #tpu.pipeline_mode<synchronous>, transform_indices = @transform_2, window_bounds = array<i64: 3, 8, 8>}, {transform_indices = @transform_3, window_bounds = array<i64: 1, 8, 128>}, {transform_indices = @transform_4, window_bounds = array<i64: 1, 8, 2>}]} {
    %c0_i32 = arith.constant 0 : i32
    %0 = arith.cmpi eq, %arg1, %c0_i32 : i32
    %1 = arith.extui %0 : i1 to i32
    %c0_i32_0 = arith.constant 0 : i32
    %2 = arith.cmpi ne, %1, %c0_i32_0 : i32
    scf.if %2 {
      %cst_34 = arith.constant 0.000000e+00 : f32
      %49 = vector.broadcast %cst_34 : f32 to vector<1x8x2xf32>
      %c0_35 = arith.constant 0 : index
      %c0_36 = arith.constant 0 : index
      %c0_37 = arith.constant 0 : index
      %50 = vector.load %arg6[%c0_35, %c0_36, %c0_37] : memref<1x8x2xf32, #tpu.memory_space<vmem>>, vector<1x8x2xf32>
      tpu.vector_store %arg6[%c0_35, %c0_36, %c0_37], %49 {strides = array<i32>} : memref<1x8x2xf32, #tpu.memory_space<vmem>>, vector<1x8x2xf32>,
    } else {
    }
    %c0 = arith.constant 0 : index
    %c0_1 = arith.constant 0 : index
    %c0_2 = arith.constant 0 : index
    %3 = vector.load %arg2[%c0, %c0_1, %c0_2] : memref<1x8x128xf32, #tpu.memory_space<vmem>>, vector<1x8x128xf32>
    %4 = vector.shape_cast %3 : vector<1x8x128xf32> to vector<8x128xf32>
    %c0_3 = arith.constant 0 : index
    %c0_4 = arith.constant 0 : index
    %c0_5 = arith.constant 0 : index
    %c0_6 = arith.constant 0 : index
    %5 = vector.load %arg3[%c0_3, %c0_4, %c0_5, %c0_6] : memref<1x1x8x4xf32, #tpu.memory_space<vmem>>, vector<1x1x8x4xf32>
    %6 = vector.shape_cast %5 : vector<1x1x8x4xf32> to vector<8x4xf32>
    %7 = tpu.concatenate %4, %6 in 1 : vector<8x128xf32>, vector<8x4xf32> -> vector<8x132xf32>
    %c0_7 = arith.constant 0 : index
    %c0_8 = arith.constant 0 : index
    %c0_9 = arith.constant 0 : index
    %8 = vector.load %arg4[%c0_7, %c0_8, %c0_9] : memref<3x8x8xf32, #tpu.memory_space<vmem>>, vector<1x8x8xf32>
    %9 = vector.shape_cast %8 : vector<1x8x8xf32> to vector<8x8xf32>
    %cst = arith.constant dense<0.000000e+00> : vector<8x128xf32>
    %10 = tpu.matmul %9, %4, %cst {dimension_numbers = #tpu.dot_dimension_numbers<[1], [0], [0], [1], [0, 0, 1, 1], [], []>} : vector<8x8xf32>, vector<8x128xf32>, vector<8x128xf32> -> vector<8x128xf32>
    %c1 = arith.constant 1 : index
    %c0_10 = arith.constant 0 : index
    %c0_11 = arith.constant 0 : index
    %11 = vector.load %arg4[%c1, %c0_10, %c0_11] : memref<3x8x8xf32, #tpu.memory_space<vmem>>, vector<1x8x8xf32>
    %12 = vector.shape_cast %11 : vector<1x8x8xf32> to vector<8x8xf32>
    %13 = vector.extract_strided_slice %7 {offsets = [0, 2], sizes = [8, 128], strides = [1, 1]} : vector<8x132xf32> to vector<8x128xf32>
    %cst_12 = arith.constant dense<0.000000e+00> : vector<8x128xf32>
    %14 = tpu.matmul %12, %13, %cst_12 {dimension_numbers = #tpu.dot_dimension_numbers<[1], [0], [0], [1], [0, 0, 1, 1], [], []>} : vector<8x8xf32>, vector<8x128xf32>, vector<8x128xf32> -> vector<8x128xf32>
    %15 = arith.addf %10, %14 : vector<8x128xf32>
    %c2 = arith.constant 2 : index
    %c0_13 = arith.constant 0 : index
    %c0_14 = arith.constant 0 : index
    %16 = vector.load %arg4[%c2, %c0_13, %c0_14] : memref<3x8x8xf32, #tpu.memory_space<vmem>>, vector<1x8x8xf32>
    %17 = vector.shape_cast %16 : vector<1x8x8xf32> to vector<8x8xf32>
    %18 = vector.extract_strided_slice %7 {offsets = [0, 4], sizes = [8, 128], strides = [1, 1]} : vector<8x132xf32> to vector<8x128xf32>
    %cst_15 = arith.constant dense<0.000000e+00> : vector<8x128xf32>
    %19 = tpu.matmul %17, %18, %cst_15 {dimension_numbers = #tpu.dot_dimension_numbers<[1], [0], [0], [1], [0, 0, 1, 1], [], []>} : vector<8x8xf32>, vector<8x128xf32>, vector<8x128xf32> -> vector<8x128xf32>
    %20 = arith.addf %15, %19 : vector<8x128xf32>
    %21 = tpu.iota {dimensions = array<i32: 1>} : vector<8x128xi32>
    %c128_i32 = arith.constant 128 : i32
    %22 = arith.muli %arg1, %c128_i32 : i32
    %23 = vector.broadcast %22 : i32 to vector<8x128xi32>
    %24 = arith.addi %21, %23 : vector<8x128xi32>
    %c16_i32 = arith.constant 16 : i32
    %25 = vector.broadcast %c16_i32 : i32 to vector<8x128xi32>
    %26 = arith.cmpi slt, %24, %25 : vector<8x128xi32>
    %cst_16 = arith.constant 0.000000e+00 : f32
    %27 = vector.broadcast %cst_16 : f32 to vector<8x128xf32>
    %28 = arith.select %26, %20, %27 : vector<8x128xi1>, vector<8x128xf32>
    %c0_17 = arith.constant 0 : index
    %c0_18 = arith.constant 0 : index
    %c0_19 = arith.constant 0 : index
    %29 = vector.load %arg5[%c0_17, %c0_18, %c0_19] : memref<1x8x128xf32, #tpu.memory_space<vmem>>, vector<1x8x128xf32>
    %30 = vector.shape_cast %29 : vector<1x8x128xf32> to vector<8x128xf32>
    %31 = vector.shape_cast %28 : vector<8x128xf32> to vector<1x8x128xf32>
    tpu.vector_store %arg5[%c0_17, %c0_18, %c0_19], %31 {strides = array<i32>} : memref<1x8x128xf32, #tpu.memory_space<vmem>>, vector<1x8x128xf32>,
    %c0_20 = arith.constant 0 : index
    %c0_21 = arith.constant 0 : index
    %c0_22 = arith.constant 0 : index
    %32 = vector.load %arg6[%c0_20, %c0_21, %c0_22] : memref<1x8x2xf32, #tpu.memory_space<vmem>>, vector<1x8x1xf32>
    %33 = vector.shape_cast %32 : vector<1x8x1xf32> to vector<8x1xf32>
    %cst_23 = arith.constant dense<0.000000e+00> : vector<8xf32>
    %34 = vector.multi_reduction <add>, %28, %cst_23 [1] : vector<8x128xf32> to vector<8xf32>
    %35 = vector.shape_cast %34 : vector<8xf32> to vector<8x1xf32>
    %36 = arith.addf %33, %35 : vector<8x1xf32>
    %c0_24 = arith.constant 0 : index
    %c0_25 = arith.constant 0 : index
    %c0_26 = arith.constant 0 : index
    %37 = vector.load %arg6[%c0_24, %c0_25, %c0_26] : memref<1x8x2xf32, #tpu.memory_space<vmem>>, vector<1x8x1xf32>
    %38 = vector.shape_cast %37 : vector<1x8x1xf32> to vector<8x1xf32>
    %39 = vector.shape_cast %36 : vector<8x1xf32> to vector<1x8x1xf32>
    tpu.vector_store %arg6[%c0_24, %c0_25, %c0_26], %39 {strides = array<i32>} : memref<1x8x2xf32, #tpu.memory_space<vmem>>, vector<1x8x1xf32>,
    %c0_27 = arith.constant 0 : index
    %c0_28 = arith.constant 0 : index
    %c1_29 = arith.constant 1 : index
    %40 = vector.load %arg6[%c0_27, %c0_28, %c1_29] : memref<1x8x2xf32, #tpu.memory_space<vmem>>, vector<1x8x1xf32>
    %41 = vector.shape_cast %40 : vector<1x8x1xf32> to vector<8x1xf32>
    %42 = arith.mulf %28, %28 : vector<8x128xf32>
    %cst_30 = arith.constant dense<0.000000e+00> : vector<8xf32>
    %43 = vector.multi_reduction <add>, %42, %cst_30 [1] : vector<8x128xf32> to vector<8xf32>
    %44 = vector.shape_cast %43 : vector<8xf32> to vector<8x1xf32>
    %45 = arith.addf %41, %44 : vector<8x1xf32>
    %c0_31 = arith.constant 0 : index
    %c0_32 = arith.constant 0 : index
    %c1_33 = arith.constant 1 : index
    %46 = vector.load %arg6[%c0_31, %c0_32, %c1_33] : memref<1x8x2xf32, #tpu.memory_space<vmem>>, vector<1x8x1xf32>
    %47 = vector.shape_cast %46 : vector<1x8x1xf32> to vector<8x1xf32>
    %48 = vector.shape_cast %45 : vector<8x1xf32> to vector<1x8x1xf32>
    tpu.vector_store %arg6[%c0_31, %c0_32, %c1_33], %48 {strides = array<i32>} : memref<1x8x2xf32, #tpu.memory_space<vmem>>, vector<1x8x1xf32>,
    return
  }
  func.func @transform_0(%arg0: i32, %arg1: i32) -> (i32, i32, i32) {
    %c0_i32 = arith.constant 0 : i32
    %c0_i32_0 = arith.constant 0 : i32
    return %arg0, %c0_i32, %arg1 : i32, i32, i32
  }
  func.func @transform_1(%arg0: i32, %arg1: i32) -> (i32, i32, i32, i32) {
    %c0_i32 = arith.constant 0 : i32
    %c0_i32_0 = arith.constant 0 : i32
    %c0_i32_1 = arith.constant 0 : i32
    return %arg0, %arg1, %c0_i32, %c0_i32_0 : i32, i32, i32, i32
  }
  func.func @transform_2(%arg0: i32, %arg1: i32) -> (i32, i32, i32) {
    %c0_i32 = arith.constant 0 : i32
    %c0_i32_0 = arith.constant 0 : i32
    %c0_i32_1 = arith.constant 0 : i32
    %c0_i32_2 = arith.constant 0 : i32
    return %c0_i32, %c0_i32_0, %c0_i32_1 : i32, i32, i32
  }
  func.func @transform_3(%arg0: i32, %arg1: i32) -> (i32, i32, i32) {
    %c0_i32 = arith.constant 0 : i32
    %c0_i32_0 = arith.constant 0 : i32
    return %arg0, %c0_i32, %arg1 : i32, i32, i32
  }
  func.func @transform_4(%arg0: i32, %arg1: i32) -> (i32, i32, i32) {
    %c0_i32 = arith.constant 0 : i32
    %c0_i32_0 = arith.constant 0 : i32
    %c0_i32_1 = arith.constant 0 : i32
    return %arg0, %c0_i32, %c0_i32_0 : i32, i32, i32
  }
}

module attributes {stable_mosaic.version = 11 : i64} {
  func.func @_affine_relu_kernel(%arg0: i32, %arg1: i32, %arg2: memref<1x8x128xf32, #tpu.memory_space<vmem>>, %arg3: memref<1x8x2xf32, #tpu.memory_space<vmem>>, %arg4: memref<1x8x128xf32, #tpu.memory_space<vmem>>) attributes {dimension_semantics = [#tpu.dimension_semantics<parallel>, #tpu.dimension_semantics<parallel>], iteration_bounds = array<i64: 2, 1>, scalar_prefetch = 0 : i64, scratch_operands = 0 : i64, tpu.core_type = #tpu.core_type<tc>, window_params = [{transform_indices = @transform_0, window_bounds = array<i64: 1, 8, 128>}, {transform_indices = @transform_1, window_bounds = array<i64: 1, 8, 2>}, {transform_indices = @transform_2, window_bounds = array<i64: 1, 8, 128>}]} {
    %c0 = arith.constant 0 : index
    %c0_0 = arith.constant 0 : index
    %c0_1 = arith.constant 0 : index
    %0 = vector.load %arg3[%c0, %c0_0, %c0_1] : memref<1x8x2xf32, #tpu.memory_space<vmem>>, vector<1x8x1xf32>
    %1 = vector.shape_cast %0 : vector<1x8x1xf32> to vector<8x1xf32>
    %c0_2 = arith.constant 0 : index
    %c0_3 = arith.constant 0 : index
    %c1 = arith.constant 1 : index
    %2 = vector.load %arg3[%c0_2, %c0_3, %c1] : memref<1x8x2xf32, #tpu.memory_space<vmem>>, vector<1x8x1xf32>
    %3 = vector.shape_cast %2 : vector<1x8x1xf32> to vector<8x1xf32>
    %c0_4 = arith.constant 0 : index
    %c0_5 = arith.constant 0 : index
    %c0_6 = arith.constant 0 : index
    %4 = vector.load %arg2[%c0_4, %c0_5, %c0_6] : memref<1x8x128xf32, #tpu.memory_space<vmem>>, vector<1x8x128xf32>
    %5 = vector.shape_cast %4 : vector<1x8x128xf32> to vector<8x128xf32>
    %6 = vector.broadcast %1 : vector<8x1xf32> to vector<8x128xf32>
    %7 = arith.mulf %6, %5 : vector<8x128xf32>
    %8 = vector.broadcast %3 : vector<8x1xf32> to vector<8x128xf32>
    %9 = arith.addf %7, %8 : vector<8x128xf32>
    %cst = arith.constant 0.000000e+00 : f32
    %10 = vector.broadcast %cst : f32 to vector<8x128xf32>
    %11 = arith.maximumf %9, %10 : vector<8x128xf32>
    %c0_7 = arith.constant 0 : index
    %c0_8 = arith.constant 0 : index
    %c0_9 = arith.constant 0 : index
    %12 = vector.load %arg4[%c0_7, %c0_8, %c0_9] : memref<1x8x128xf32, #tpu.memory_space<vmem>>, vector<1x8x128xf32>
    %13 = vector.shape_cast %12 : vector<1x8x128xf32> to vector<8x128xf32>
    %14 = vector.shape_cast %11 : vector<8x128xf32> to vector<1x8x128xf32>
    tpu.vector_store %arg4[%c0_7, %c0_8, %c0_9], %14 {strides = array<i32>} : memref<1x8x128xf32, #tpu.memory_space<vmem>>, vector<1x8x128xf32>,
    return
  }
  func.func @transform_0(%arg0: i32, %arg1: i32) -> (i32, i32, i32) {
    %c0_i32 = arith.constant 0 : i32
    %c0_i32_0 = arith.constant 0 : i32
    return %arg0, %c0_i32, %arg1 : i32, i32, i32
  }
  func.func @transform_1(%arg0: i32, %arg1: i32) -> (i32, i32, i32) {
    %c0_i32 = arith.constant 0 : i32
    %c0_i32_0 = arith.constant 0 : i32
    %c0_i32_1 = arith.constant 0 : i32
    return %arg0, %c0_i32, %c0_i32_0 : i32, i32, i32
  }
  func.func @transform_2(%arg0: i32, %arg1: i32) -> (i32, i32, i32) {
    %c0_i32 = arith.constant 0 : i32
    %c0_i32_0 = arith.constant 0 : i32
    return %arg0, %c0_i32, %arg1 : i32, i32, i32
  }
}

</mosaic_0001>

<llo_original>
// kernel: custom-call.62
$region0: #{custom-call.62}
  %s0 = inlined_call_operand.vmem [shape: f32[32,8], index: 0, kind: input, shape index: {}]
  %s1 = inlined_call_operand.vmem [shape: f32[32,8], index: 1, kind: output, shape index: {0}]
  %s2 = inlined_call_operand.hbm [shape: f32[8], index: 2, kind: output, shape index: {1}]
  %3 = xla_tuple %s1, %s2
  $region1: #{custom-call.62} parent=0
    #allocation0 [shape = 'u8[16384]{0}', space=vmem, size = 0x4000, scoped, tag = 'operand span for operand 0']
    #allocation1 [shape = 'u8[16384]{0}', space=vmem, size = 0x4000, scoped, tag = 'operand span for operand 1']
    #allocation2 [shape = 'u8[4096]{0}', space=vmem, size = 0x1000, scoped, tag = 'operand span for operand 2']
    #allocation3 [shape = 'u8[512]{0}', space=vmem, size = 0x400, scoped, tag = 'packed  for operand 2']
    #allocation4 [shape = 's32[1]{0}', space=sflag, size = 0x4, scoped, tag = 'scoped memory for custom-call.62']
    #allocation5 [shape = 'f32[32,128]{1,0}', space=vmem, size = 0x4000, scoped, tag = 'scratch for Householder reflectors']
    %4 = vsyncpa [#allocation4], 0
    // Predicated region
    $region2: #{custom-call.62} parent=1 // pred_check
      _
    $region3: #{custom-call.62} parent=1 // pred_check_branch
      %6 = sbr.rel (0) target = $region5
    $region4: #{custom-call.62} parent=1 // pred_region
      // Predicated region
      $region6: #{custom-call.62} parent=4 // pred_check
        _
      $region7: #{custom-call.62} parent=4 // pred_check_branch
        %8 = sbr.rel (0) target = $region9
      $region8: #{custom-call.62} parent=4 // pred_region
        // Predicated region
        $region21: #{custom-call.62} parent=8 // pred_check
          _
        $region22: #{custom-call.62} parent=8 // pred_check_branch
          %30 = sbr.rel (0) target = $region24
        $region23: #{custom-call.62} parent=8 // pred_region
          loop: start=0, step=1, limit=1
          $region25: #{custom-call.62} parent=23 // loop_pre_header
            _
          $region26: #{custom-call.62} parent=23 // loop_header
            %s32 = sphi 0, %s36
            %p33 = scmp.ge.s32.totalorder %s32, 1
            %s37 = sphi %s0, %s0
            %s38 = sphi [#allocation0], [#allocation0]
          $region27: #{custom-call.62} parent=23 // loop_header_branch
            %35 = sbr.rel (%p33) target = $region31
          $region28: #{custom-call.62} parent=23 // loop_body
            %v39 = vld [vmem:[%s37] sm:$0xff]
            %40 = vst [vmem:[%s38] sm:$0xff] %v39
            %v41 = vld [vmem:[%s37 + $0x8] sm:$0xff]
            %42 = vst [vmem:[%s38 + $0x8] sm:$0xff] %v41
            %v43 = vld [vmem:[%s37 + $0x10] sm:$0xff]
            %44 = vst [vmem:[%s38 + $0x10] sm:$0xff] %v43
            %v45 = vld [vmem:[%s37 + $0x18] sm:$0xff]
            %46 = vst [vmem:[%s38 + $0x18] sm:$0xff] %v45
          $region29: #{custom-call.62} parent=23 // loop_footer
            %s36 = sadd.s32 1, %s32
          $region30: #{custom-call.62} parent=23 // loop_footer_branch
            %31 = sbr.rel target = $region26
          $region31: #{custom-call.62} parent=23 // loop_exit
            _
        $region24: #{custom-call.62} parent=8 // pred_fallthru
          _
        // Predicated region
        $region32: #{custom-call.62} parent=8 // pred_check
          _
        $region33: #{custom-call.62} parent=8 // pred_check_branch
          %48 = sbr.rel target = $region35
        $region34: #{custom-call.62} parent=8 // pred_region
          _
        $region35: #{custom-call.62} parent=8 // pred_fallthru
          _
      $region9: #{custom-call.62} parent=4 // pred_fallthru
        _
      // Predicated region
      $region10: #{custom-call.62} parent=4 // pred_check
        _
      $region11: #{custom-call.62} parent=4 // pred_check_branch
        %10 = sbr.rel target = $region13
      $region12: #{custom-call.62} parent=4 // pred_region
        %s12 = ssub.s32 256, 1
        loop: start=0, step=1, limit=1
        $region14: #{custom-call.62} parent=12 // loop_pre_header
          _
        $region15: #{custom-call.62} parent=12 // loop_header
          %s14 = sphi 0, %s18
          %p15 = scmp.ge.s32.totalorder %s14, 1
          %s19 = sphi %s0, %s0
          %s20 = sphi [#allocation0], [#allocation0]
        $region16: #{custom-call.62} parent=12 // loop_header_branch
          %17 = sbr.rel (%p15) target = $region20
        $region17: #{custom-call.62} parent=12 // loop_body
          %v21 = vld [vmem:[%s19] sm:%s12]
          %22 = vst [vmem:[%s20] sm:%s12] %v21
          %v23 = vld [vmem:[%s19 + $0x8] sm:%s12]
          %24 = vst [vmem:[%s20 + $0x8] sm:%s12] %v23
          %v25 = vld [vmem:[%s19 + $0x10] sm:%s12]
          %26 = vst [vmem:[%s20 + $0x10] sm:%s12] %v25
          %v27 = vld [vmem:[%s19 + $0x18] sm:%s12]
          %28 = vst [vmem:[%s20 + $0x18] sm:%s12] %v27
        $region18: #{custom-call.62} parent=12 // loop_footer
          %s18 = sadd.s32 1, %s14
        $region19: #{custom-call.62} parent=12 // loop_footer_branch
          %13 = sbr.rel target = $region15
        $region20: #{custom-call.62} parent=12 // loop_exit
          _
      $region13: #{custom-call.62} parent=4 // pred_fallthru
        _
    $region5: #{custom-call.62} parent=1 // pred_fallthru
      _
    %49 = vnop
    %v50 = vld [vmem:[#allocation0] sm:$0xff]
    %51 = vst [vmem:[#allocation1] sm:$0xff] %v50
    %s52 = scalar_lea.vmem [#allocation1], 8
    %s53 = scalar_lea.vmem [#allocation0], 8
    %v54 = vld [vmem:[%s53] sm:$0xff]
    %55 = vst [vmem:[%s52] sm:$0xff] %v54
    %s56 = scalar_lea.vmem [#allocation1], 16
    %s57 = scalar_lea.vmem [#allocation0], 16
    %v58 = vld [vmem:[%s57] sm:$0xff]
    %59 = vst [vmem:[%s56] sm:$0xff] %v58
    %s60 = scalar_lea.vmem [#allocation1], 24
    %s61 = scalar_lea.vmem [#allocation0], 24
    %v62 = vld [vmem:[%s61] sm:$0xff]
    %63 = vst [vmem:[%s60] sm:$0xff] %v62
    %64 = vst [vmem:[#allocation2] sm:$0x1] 0.0
    loop: start=0, step=1, limit=8
    $region36: #{custom-call.62} parent=1 // loop_pre_header
      _
    $region37: #{custom-call.62} parent=1 // loop_header
      %s66 = sphi 0, %s70
      %p67 = scmp.ge.s32.totalorder %s66, 8
    $region38: #{custom-call.62} parent=1 // loop_header_branch
      %69 = sbr.rel (%p67) target = $region42
    $region39: #{custom-call.62} parent=1 // loop_body
      %v71 = vld [vmem:[#allocation1] sm:$0xff]
      %v72 = vlaneseq
      %v73 = vshrl.u32 %v72, 7
      %v75 = vstv %s66
      %vm76 = vcmp.gt.s32.totalorder %v73, %v75
      %v77 = vsel %vm76, %v71, 0.0
      %v78 = vmul.f32 %v77, %v77
      %s79 = scalar_lea.vmem [#allocation1], 8
      %v80 = vld [vmem:[%s79] sm:$0xff]
      %v81 = vlaneseq
      %v82 = vshrl.u32 %v81, 7
      %v83 = vadd.s32 %v82, 8
      %v84 = vstv %s66
      %vm85 = vcmp.gt.s32.totalorder %v83, %v84
      %v86 = vsel %vm85, %v80, 0.0
      %v87 = vmul.f32 %v86, %v86
      %v88 = vadd.f32 %v78, %v87
      %s89 = scalar_lea.vmem [#allocation1], 16
      %v90 = vld [vmem:[%s89] sm:$0xff]
      %v91 = vlaneseq
      %v92 = vshrl.u32 %v91, 7
      %v93 = vadd.s32 %v92, 16
      %v94 = vstv %s66
      %vm95 = vcmp.gt.s32.totalorder %v93, %v94
      %v96 = vsel %vm95, %v90, 0.0
      %v97 = vmul.f32 %v96, %v96
      %v98 = vadd.f32 %v88, %v97
      %s99 = scalar_lea.vmem [#allocation1], 24
      %v100 = vld [vmem:[%s99] sm:$0xff]
      %v101 = vlaneseq
      %v102 = vshrl.u32 %v101, 7
      %v103 = vadd.s32 %v102, 24
      %v104 = vstv %s66
      %vm105 = vcmp.gt.s32.totalorder %v103, %v104
      %vm106 = vcmp.lt.s32.totalorder %v103, 32
      %vm107 = vmand %vm105, %vm106
      %v108 = vsel %vm107, %v100, 0.0
      %v109 = vmul.f32 %v108, %v108
      %v110 = vadd.f32 %v98, %v109
      %v111 = vrot.slane %v110, 4
      %v112 = vadd.f32 %v110, %v111
      %v113 = vrot.slane %v112, 2
      %v114 = vadd.f32 %v112, %v113
      %v115 = vrot.slane %v114, 1
      %v116 = vadd.f32 %v114, %v115
      %v117 = vrsqrt.pop %v116
      %v118 = vmul.f32 %v116, %v117
      %vm119 = vcmp.eq.f32.partialorder %v116, inf
      %v120 = vsel %vm119, %v116, %v118
      %vm121 = vcmp.eq.f32.partialorder %v116, 0.0
      %v122 = vand.u32 %v116, 2147483648
      %v123 = vsel %vm121, %v122, %v120
      %vm124 = vcmp.eq.f32.partialorder %v116, 0.0
      %s125 = sshrl.u32 %s66, 3
      %s126 = sand.u32 %s66, 7
      %s127 = smul.addr %s125, 8
      %s128 = sadd.s32 %s126, %s127
      %s129 = scalar_lea.vmem [#allocation1], %s128
      %v130 = vld [vmem:[%s129] ss:$0 sm:$0xff]
      %v131 = vand.u32 2147483647, %v130
      %v132 = vmax.f32 %v131, 0.0
      %v133 = vand.u32 2147483647, %v123
      %v134 = vmax.f32 %v132, %v133
      %v135 = vrcp.pop %v134
      %v136 = vmul.f32 %v131, %v135
      %v137 = vmul.f32 %v136, %v136
      %v138 = vrcp.pop %v134
      %v139 = vmul.f32 0.0, %v138
      %v140 = vmul.f32 %v139, %v139
      %v141 = vadd.f32 %v137, %v140
      %v142 = vrcp.pop %v134
      %v143 = vmul.f32 %v133, %v142
      %v144 = vmul.f32 %v143, %v143
      %v145 = vadd.f32 %v141, %v144
      %vm146 = vcmp.eq.f32.partialorder %v134, 0.0
      %v147 = vrsqrt.pop %v145
      %v148 = vmul.f32 %v145, %v147
      %vm149 = vcmp.eq.f32.partialorder %v145, inf
      %v150 = vsel %vm149, %v145, %v148
      %vm151 = vcmp.eq.f32.partialorder %v145, 0.0
      %v152 = vand.u32 %v145, 2147483648
      %v153 = vsel %vm151, %v152, %v150
      %v154 = vmul.f32 %v134, %v153
      %v155 = vsel %vm146, 0.0, %v154
      %vm156 = vcmp.lt.f32.partialorder %v130, 0.0
      %v157 = vxor.u32 %v155, 2147483648
      %v158 = vsel %vm156, %v155, %v157
      %v159 = vsub.f32 %v158, %v130
      %v160 = vrcp.pop %v158
      %v161 = vmul.f32 %v159, %v160
      %v162 = vsel %vm124, %v130, %v158
      %v163 = vsel %vm124, 0.0, %v161
      %v164 = vsub.f32 %v130, %v162
      %s165 = smov [#allocation1]
      %v166 = vlaneseq
      %v167 = vshrl.u32 %v166, 7
      %v168 = vmov %v167
      %v169 = vld [vmem:[%s165] sm:$0xff]
      %v171 = vstv %s66
      %vm172 = vcmp.gt.s32.totalorder %v168, %v171
      %v173 = vsel %vm172, %v169, 0.0
      %v174 = vrcp.pop %v164
      %v175 = vmul.f32 %v173, %v174
      %v176 = vsel %vm124, 0.0, %v175
      %v177 = vstv %s66
      %v178 = vlaneseq
      %v179 = vand.u32 %v178, 127
      %vm180 = vcmp.eq.s32.totalorder %v179, %v177
      %v181 = vsel %vm180, %v176, 0.0
      %182 = vadd.xlane.f32.xlu0 %v181
      %v183 = vpop.xlane.xlu0 %182
      %184 = vst [vmem:[#allocation5] sm:$0xff] %v183
      %s185 = scalar_lea.vmem %s165, 8
      %v186 = vld [vmem:[%s185] sm:$0xff]
      %v187 = vadd.s32 %v168, 8
      %v188 = vstv %s66
      %vm189 = vcmp.gt.s32.totalorder %v187, %v188
      %v190 = vsel %vm189, %v186, 0.0
      %v191 = vrcp.pop %v164
      %v192 = vmul.f32 %v190, %v191
      %v193 = vsel %vm124, 0.0, %v192
      %v194 = vstv %s66
      %v195 = vlaneseq
      %v196 = vand.u32 %v195, 127
      %vm197 = vcmp.eq.s32.totalorder %v196, %v194
      %v198 = vsel %vm197, %v193, 0.0
      %199 = vadd.xlane.f32.xlu0 %v198
      %v200 = vpop.xlane.xlu0 %199
      %s201 = scalar_lea.vmem [#allocation5], 8
      %202 = vst [vmem:[%s201] sm:$0xff] %v200
      %s203 = scalar_lea.vmem %s165, 16
      %v204 = vld [vmem:[%s203] sm:$0xff]
      %v205 = vadd.s32 %v168, 16
      %v206 = vstv %s66
      %vm207 = vcmp.gt.s32.totalorder %v205, %v206
      %v208 = vsel %vm207, %v204, 0.0
      %v209 = vrcp.pop %v164
      %v210 = vmul.f32 %v208, %v209
      %v211 = vsel %vm124, 0.0, %v210
      %v212 = vstv %s66
      %v213 = vlaneseq
      %v214 = vand.u32 %v213, 127
      %vm215 = vcmp.eq.s32.totalorder %v214, %v212
      %v216 = vsel %vm215, %v211, 0.0
      %217 = vadd.xlane.f32.xlu0 %v216
      %v218 = vpop.xlane.xlu0 %217
      %s219 = scalar_lea.vmem [#allocation5], 16
      %220 = vst [vmem:[%s219] sm:$0xff] %v218
      %s221 = scalar_lea.vmem %s165, 24
      %v222 = vld [vmem:[%s221] sm:$0xff]
      %v223 = vadd.s32 %v168, 24
      %v224 = vstv %s66
      %vm225 = vcmp.gt.s32.totalorder %v223, %v224
      %vm226 = vcmp.lt.s32.totalorder %v223, 32
      %vm227 = vmand %vm225, %vm226
      %v228 = vsel %vm227, %v222, 0.0
      %v229 = vrcp.pop %v164
      %v230 = vmul.f32 %v228, %v229
      %v231 = vsel %vm124, 0.0, %v230
      %v232 = vstv %s66
      %v233 = vlaneseq
      %v234 = vand.u32 %v233, 127
      %vm235 = vcmp.eq.s32.totalorder %v234, %v232
      %v236 = vsel %vm235, %v231, 0.0
      %237 = vadd.xlane.f32.xlu0 %v236
      %v238 = vpop.xlane.xlu0 %237
      %s239 = scalar_lea.vmem [#allocation5], 24
      %240 = vst [vmem:[%s239] sm:$0xff] %v238
      %s241 = scalar_lea.vmem [#allocation5], %s66
      %242 = vst [vmem:[%s241] sm:$0x1] 1.0
      %v243 = vstv %s66
      %v244 = vlaneseq
      %v245 = vand.u32 %v244, 127
      %vm246 = vcmp.eq.s32.totalorder %v245, %v243
      %v247 = vsel %vm246, %v163, 0.0
      %248 = vadd.xlane.f32.xlu0 %v247
      %v249 = vpop.xlane.xlu0 %248
      %v250 = vstv %s66
      %v251 = vlaneseq
      %v252 = vand.u32 %v251, 127
      %vm253 = vcmp.eq.s32.totalorder %v252, %v250
      %v254 = vld [vmem:[#allocation2] ss:$0 sm:$0xff]
      %v255 = vsel %vm253, %v249, %v254
      %256 = vst [vmem:[#allocation2] sm:$0x1] %v255
      %s257 = smov [#allocation1]
      %s258 = smov [#allocation5]
      %v259 = vlaneseq
      %v260 = vshrl.u32 %v259, 7
      %v261 = vmov %v260
      %v263 = vld [vmem:[%s258] sm:$0xff]
      %v264 = vld [vmem:[%s257] sm:$0xff]
      %v265 = vmul.f32 %v263, %v264
      %v266 = vadd.s32 %v261, 8
      %s267 = scalar_lea.vmem %s258, 8
      %v268 = vld [vmem:[%s267] sm:$0xff]
      %s269 = scalar_lea.vmem %s257, 8
      %v270 = vld [vmem:[%s269] sm:$0xff]
      %v271 = vmul.f32 %v268, %v270
      %v272 = vadd.f32 %v265, %v271
      %v273 = vadd.s32 %v261, 16
      %s274 = scalar_lea.vmem %s258, 16
      %v275 = vld [vmem:[%s274] sm:$0xff]
      %s276 = scalar_lea.vmem %s257, 16
      %v277 = vld [vmem:[%s276] sm:$0xff]
      %v278 = vmul.f32 %v275, %v277
      %v279 = vadd.f32 %v272, %v278
      %v280 = vadd.s32 %v261, 24
      %s281 = scalar_lea.vmem %s258, 24
      %v282 = vld [vmem:[%s281] sm:$0xff]
      %s283 = scalar_lea.vmem %s257, 24
      %v284 = vld [vmem:[%s283] sm:$0xff]
      %v285 = vmul.f32 %v282, %v284
      %vm286 = vcmp.lt.s32.totalorder %v280, 32
      %v287 = vsel %vm286, %v285, 0.0
      %v288 = vadd.f32 %v279, %v287
      %v289 = vrot.slane %v288, 4
      %v290 = vadd.f32 %v288, %v289
      %v291 = vrot.slane %v290, 2
      %v292 = vadd.f32 %v290, %v291
      %v293 = vrot.slane %v292, 1
      %v294 = vadd.f32 %v292, %v293
      %s295 = smov %s257
      %s296 = smov %s258
      %v297 = vlaneseq
      %v298 = vshrl.u32 %v297, 7
      %v299 = vmov %v298
      %v300 = vmul.f32 %v294, %v249
      %v302 = vlaneseq
      %v303 = vand.u32 %v302, 127
      %v304 = vld [vmem:[%s296] sm:$0xff]
      %v305 = vmul.f32 %v304, %v300
      %v306 = vld [vmem:[%s295] sm:$0xff]
      %v307 = vstv %s66
      %vm308 = vcmp.gt.s32.totalorder %v303, %v307
      %v309 = vsub.f32 %v306, %v305
      %v310 = vsel %vm308, %v309, %v306
      %v311 = vstv %s66
      %v312 = vlaneseq
      %v313 = vand.u32 %v312, 127
      %vm314 = vcmp.eq.s32.totalorder %v313, %v311
      %v315 = vstv %s66
      %vm316 = vcmp.ge.s32.totalorder %v299, %v315
      %vm317 = vmand %vm314, %vm316
      %v318 = vsel %vm317, %v304, %v310
      %319 = vst [vmem:[%s295] sm:$0xff] %v318
      %v320 = vadd.s32 %v299, 8
      %v321 = vlaneseq
      %v322 = vand.u32 %v321, 127
      %s323 = scalar_lea.vmem %s296, 8
      %v324 = vld [vmem:[%s323] sm:$0xff]
      %v325 = vmul.f32 %v324, %v300
      %s326 = scalar_lea.vmem %s295, 8
      %v327 = vld [vmem:[%s326] sm:$0xff]
      %v328 = vstv %s66
      %vm329 = vcmp.gt.s32.totalorder %v322, %v328
      %v330 = vsub.f32 %v327, %v325
      %v331 = vsel %vm329, %v330, %v327
      %v332 = vstv %s66
      %v333 = vlaneseq
      %v334 = vand.u32 %v333, 127
      %vm335 = vcmp.eq.s32.totalorder %v334, %v332
      %v336 = vstv %s66
      %vm337 = vcmp.ge.s32.totalorder %v320, %v336
      %vm338 = vmand %vm335, %vm337
      %v339 = vsel %vm338, %v324, %v331
      %340 = vst [vmem:[%s326] sm:$0xff] %v339
      %v341 = vadd.s32 %v299, 16
      %v342 = vlaneseq
      %v343 = vand.u32 %v342, 127
      %s344 = scalar_lea.vmem %s296, 16
      %v345 = vld [vmem:[%s344] sm:$0xff]
      %v346 = vmul.f32 %v345, %v300
      %s347 = scalar_lea.vmem %s295, 16
      %v348 = vld [vmem:[%s347] sm:$0xff]
      %v349 = vstv %s66
      %vm350 = vcmp.gt.s32.totalorder %v343, %v349
      %v351 = vsub.f32 %v348, %v346
      %v352 = vsel %vm350, %v351, %v348
      %v353 = vstv %s66
      %v354 = vlaneseq
      %v355 = vand.u32 %v354, 127
      %vm356 = vcmp.eq.s32.totalorder %v355, %v353
      %v357 = vstv %s66
      %vm358 = vcmp.ge.s32.totalorder %v341, %v357
      %vm359 = vmand %vm356, %vm358
      %v360 = vsel %vm359, %v345, %v352
      %361 = vst [vmem:[%s347] sm:$0xff] %v360
      %v362 = vadd.s32 %v299, 24
      %v363 = vlaneseq
      %v364 = vand.u32 %v363, 127
      %s365 = scalar_lea.vmem %s296, 24
      %v366 = vld [vmem:[%s365] sm:$0xff]
      %v367 = vmul.f32 %v366, %v300
      %s368 = scalar_lea.vmem %s295, 24
      %v369 = vld [vmem:[%s368] sm:$0xff]
      %v370 = vstv %s66
      %vm371 = vcmp.gt.s32.totalorder %v364, %v370
      %v372 = vsub.f32 %v369, %v367
      %v373 = vsel %vm371, %v372, %v369
      %v374 = vstv %s66
      %v375 = vlaneseq
      %v376 = vand.u32 %v375, 127
      %vm377 = vcmp.eq.s32.totalorder %v376, %v374
      %v378 = vstv %s66
      %vm379 = vcmp.ge.s32.totalorder %v362, %v378
      %vm380 = vmand %vm377, %vm379
      %v381 = vsel %vm380, %v366, %v373
      %382 = vst [vmem:[%s368] sm:$0xff] %v381
      %s383 = scalar_lea.vmem %s295, %s66
      %v384 = vld [vmem:[%s383] ss:$0 sm:$0xff]
      %v385 = vstv %s66
      %v386 = vlaneseq
      %v387 = vand.u32 %v386, 127
      %vm388 = vcmp.eq.s32.totalorder %v387, %v385
      %v389 = vsel %vm388, %v162, %v384
      %390 = vst [vmem:[%s383] sm:$0x1] %v389
    $region40: #{custom-call.62} parent=1 // loop_footer
      %s70 = sadd.s32 1, %s66
    $region41: #{custom-call.62} parent=1 // loop_footer_branch
      %65 = sbr.rel target = $region37
    $region42: #{custom-call.62} parent=1 // loop_exit
      _
    %s392 = sshll.u32 1, 1
    %s393 = ssub.s32 %s392, 1
    %v395 = vld [vmem:[#allocation2] sm:%s393]
    %s396 = sshll.u32 1, 1
    %s397 = ssub.s32 %s396, 1
    %398 = vst [vmem:[#allocation3] sm:%s397] %v395
    // Predicated region
    $region43: #{custom-call.62} parent=1 // pred_check
      _
    $region44: #{custom-call.62} parent=1 // pred_check_branch
      %400 = sbr.rel (0) target = $region46
    $region45: #{custom-call.62} parent=1 // pred_region
      // Predicated region
      $region47: #{custom-call.62} parent=45 // pred_check
        _
      $region48: #{custom-call.62} parent=45 // pred_check_branch
        %402 = sbr.rel (0) target = $region50
      $region49: #{custom-call.62} parent=45 // pred_region
        // Predicated region
        $region62: #{custom-call.62} parent=49 // pred_check
          _
        $region63: #{custom-call.62} parent=49 // pred_check_branch
          %424 = sbr.rel (0) target = $region65
        $region64: #{custom-call.62} parent=49 // pred_region
          loop: start=0, step=1, limit=1
          $region66: #{custom-call.62} parent=64 // loop_pre_header
            _
          $region67: #{custom-call.62} parent=64 // loop_header
            %s426 = sphi 0, %s430
            %p427 = scmp.ge.s32.totalorder %s426, 1
            %s431 = sphi [#allocation1], [#allocation1]
            %s432 = sphi %s1, %s1
          $region68: #{custom-call.62} parent=64 // loop_header_branch
            %429 = sbr.rel (%p427) target = $region72
          $region69: #{custom-call.62} parent=64 // loop_body
            %v433 = vld [vmem:[%s431] sm:$0xff]
            %434 = vst [vmem:[%s432] sm:$0xff] %v433
            %v435 = vld [vmem:[%s431 + $0x8] sm:$0xff]
            %436 = vst [vmem:[%s432 + $0x8] sm:$0xff] %v435
            %v437 = vld [vmem:[%s431 + $0x10] sm:$0xff]
            %438 = vst [vmem:[%s432 + $0x10] sm:$0xff] %v437
            %v439 = vld [vmem:[%s431 + $0x18] sm:$0xff]
            %440 = vst [vmem:[%s432 + $0x18] sm:$0xff] %v439
          $region70: #{custom-call.62} parent=64 // loop_footer
            %s430 = sadd.s32 1, %s426
          $region71: #{custom-call.62} parent=64 // loop_footer_branch
            %425 = sbr.rel target = $region67
          $region72: #{custom-call.62} parent=64 // loop_exit
            _
        $region65: #{custom-call.62} parent=49 // pred_fallthru
          _
        // Predicated region
        $region73: #{custom-call.62} parent=49 // pred_check
          _
        $region74: #{custom-call.62} parent=49 // pred_check_branch
          %442 = sbr.rel target = $region76
        $region75: #{custom-call.62} parent=49 // pred_region
          _
        $region76: #{custom-call.62} parent=49 // pred_fallthru
          _
      $region50: #{custom-call.62} parent=45 // pred_fallthru
        _
      // Predicated region
      $region51: #{custom-call.62} parent=45 // pred_check
        _
      $region52: #{custom-call.62} parent=45 // pred_check_branch
        %404 = sbr.rel target = $region54
      $region53: #{custom-call.62} parent=45 // pred_region
        %s406 = ssub.s32 256, 1
        loop: start=0, step=1, limit=1
        $region55: #{custom-call.62} parent=53 // loop_pre_header
          _
        $region56: #{custom-call.62} parent=53 // loop_header
          %s408 = sphi 0, %s412
          %p409 = scmp.ge.s32.totalorder %s408, 1
          %s413 = sphi [#allocation1], [#allocation1]
          %s414 = sphi %s1, %s1
        $region57: #{custom-call.62} parent=53 // loop_header_branch
          %411 = sbr.rel (%p409) target = $region61
        $region58: #{custom-call.62} parent=53 // loop_body
          %v415 = vld [vmem:[%s413] sm:%s406]
          %416 = vst [vmem:[%s414] sm:%s406] %v415
          %v417 = vld [vmem:[%s413 + $0x8] sm:%s406]
          %418 = vst [vmem:[%s414 + $0x8] sm:%s406] %v417
          %v419 = vld [vmem:[%s413 + $0x10] sm:%s406]
          %420 = vst [vmem:[%s414 + $0x10] sm:%s406] %v419
          %v421 = vld [vmem:[%s413 + $0x18] sm:%s406]
          %422 = vst [vmem:[%s414 + $0x18] sm:%s406] %v421
        $region59: #{custom-call.62} parent=53 // loop_footer
          %s412 = sadd.s32 1, %s408
        $region60: #{custom-call.62} parent=53 // loop_footer_branch
          %407 = sbr.rel target = $region56
        $region61: #{custom-call.62} parent=53 // loop_exit
          _
      $region54: #{custom-call.62} parent=45 // pred_fallthru
        _
    $region46: #{custom-call.62} parent=1 // pred_fallthru
      _
    %443 = vnop
    // Predicated region
    $region77: #{custom-call.62} parent=1 // pred_check
      _
    $region78: #{custom-call.62} parent=1 // pred_check_branch
      %445 = sbr.rel (0) target = $region80
    $region79: #{custom-call.62} parent=1 // pred_region
      %s447 = ssub.s32 16, 16
      %448 = vsyncadd [#allocation4], %s447
      %s450 = sshll.u32 [#allocation3], 4
      %s451 = int_to_ptr.vmem [resolvable:$true] %s450
      %453 = dma.vmem_to_hbm [thread:$0]  %s451, 16, %s2, [#allocation4]
    $region80: #{custom-call.62} parent=1 // pred_fallthru
      _
    // Predicated region
    $region81: #{custom-call.62} parent=1 // pred_check
      _
    $region82: #{custom-call.62} parent=1 // pred_check_branch
      %455 = sbr.rel (0) target = $region84
    $region83: #{custom-call.62} parent=1 // pred_region
      %456 = dma.done [#allocation4], 16
    $region84: #{custom-call.62} parent=1 // pred_fallthru
      _
    %457 = vsyncpa [#allocation4], 1

// kernel: custom-call.90
$region0: #{custom-call.90}
  %s0 = inlined_call_operand.vmem [shape: f32[16,8], index: 0, kind: input, shape index: {}]
  %s1 = inlined_call_operand.vmem [shape: f32[16,8], index: 1, kind: output, shape index: {0}]
  %s2 = inlined_call_operand.vmem [shape: f32[8], index: 2, kind: output, shape index: {1}]
  %3 = xla_tuple %s1, %s2
  $region1: #{custom-call.90} parent=0
    #allocation0 [shape = 'u8[8192]{0}', space=vmem, size = 0x2000, scoped, tag = 'operand span for operand 0']
    #allocation1 [shape = 'u8[8192]{0}', space=vmem, size = 0x2000, scoped, tag = 'operand span for operand 1']
    #allocation2 [shape = 'u8[4096]{0}', space=vmem, size = 0x1000, scoped, tag = 'operand span for operand 2']
    #allocation3 [shape = 'u8[512]{0}', space=vmem, size = 0x400, scoped, tag = 'packed  for operand 2']
    #allocation4 [shape = 'f32[16,128]{1,0}', space=vmem, size = 0x2000, scoped, tag = 'scratch for Householder reflectors']
    // Predicated region
    $region2: #{custom-call.90} parent=1 // pred_check
      _
    $region3: #{custom-call.90} parent=1 // pred_check_branch
      %5 = sbr.rel (0) target = $region5
    $region4: #{custom-call.90} parent=1 // pred_region
      // Predicated region
      $region6: #{custom-call.90} parent=4 // pred_check
        _
      $region7: #{custom-call.90} parent=4 // pred_check_branch
        %7 = sbr.rel (0) target = $region9
      $region8: #{custom-call.90} parent=4 // pred_region
        // Predicated region
        $region21: #{custom-call.90} parent=8 // pred_check
          _
        $region22: #{custom-call.90} parent=8 // pred_check_branch
          %25 = sbr.rel (0) target = $region24
        $region23: #{custom-call.90} parent=8 // pred_region
          loop: start=0, step=1, limit=1
          $region25: #{custom-call.90} parent=23 // loop_pre_header
            _
          $region26: #{custom-call.90} parent=23 // loop_header
            %s27 = sphi 0, %s31
            %p28 = scmp.ge.s32.totalorder %s27, 1
            %s32 = sphi %s0, %s0
            %s33 = sphi [#allocation0], [#allocation0]
          $region27: #{custom-call.90} parent=23 // loop_header_branch
            %30 = sbr.rel (%p28) target = $region31
          $region28: #{custom-call.90} parent=23 // loop_body
            %v34 = vld [vmem:[%s32] sm:$0xff]
            %35 = vst [vmem:[%s33] sm:$0xff] %v34
            %v36 = vld [vmem:[%s32 + $0x8] sm:$0xff]
            %37 = vst [vmem:[%s33 + $0x8] sm:$0xff] %v36
          $region29: #{custom-call.90} parent=23 // loop_footer
            %s31 = sadd.s32 1, %s27
          $region30: #{custom-call.90} parent=23 // loop_footer_branch
            %26 = sbr.rel target = $region26
          $region31: #{custom-call.90} parent=23 // loop_exit
            _
        $region24: #{custom-call.90} parent=8 // pred_fallthru
          _
        // Predicated region
        $region32: #{custom-call.90} parent=8 // pred_check
          _
        $region33: #{custom-call.90} parent=8 // pred_check_branch
          %39 = sbr.rel target = $region35
        $region34: #{custom-call.90} parent=8 // pred_region
          _
        $region35: #{custom-call.90} parent=8 // pred_fallthru
          _
      $region9: #{custom-call.90} parent=4 // pred_fallthru
        _
      // Predicated region
      $region10: #{custom-call.90} parent=4 // pred_check
        _
      $region11: #{custom-call.90} parent=4 // pred_check_branch
        %9 = sbr.rel target = $region13
      $region12: #{custom-call.90} parent=4 // pred_region
        %s11 = ssub.s32 256, 1
        loop: start=0, step=1, limit=1
        $region14: #{custom-call.90} parent=12 // loop_pre_header
          _
        $region15: #{custom-call.90} parent=12 // loop_header
          %s13 = sphi 0, %s17
          %p14 = scmp.ge.s32.totalorder %s13, 1
          %s18 = sphi %s0, %s0
          %s19 = sphi [#allocation0], [#allocation0]
        $region16: #{custom-call.90} parent=12 // loop_header_branch
          %16 = sbr.rel (%p14) target = $region20
        $region17: #{custom-call.90} parent=12 // loop_body
          %v20 = vld [vmem:[%s18] sm:%s11]
          %21 = vst [vmem:[%s19] sm:%s11] %v20
          %v22 = vld [vmem:[%s18 + $0x8] sm:%s11]
          %23 = vst [vmem:[%s19 + $0x8] sm:%s11] %v22
        $region18: #{custom-call.90} parent=12 // loop_footer
          %s17 = sadd.s32 1, %s13
        $region19: #{custom-call.90} parent=12 // loop_footer_branch
          %12 = sbr.rel target = $region15
        $region20: #{custom-call.90} parent=12 // loop_exit
          _
      $region13: #{custom-call.90} parent=4 // pred_fallthru
        _
    $region5: #{custom-call.90} parent=1 // pred_fallthru
      _
    %40 = vnop
    %v41 = vld [vmem:[#allocation0] sm:$0xff]
    %42 = vst [vmem:[#allocation1] sm:$0xff] %v41
    %s43 = scalar_lea.vmem [#allocation1], 8
    %s44 = scalar_lea.vmem [#allocation0], 8
    %v45 = vld [vmem:[%s44] sm:$0xff]
    %46 = vst [vmem:[%s43] sm:$0xff] %v45
    %47 = vst [vmem:[#allocation2] sm:$0x1] 0.0
    loop: start=0, step=1, limit=8
    $region36: #{custom-call.90} parent=1 // loop_pre_header
      _
    $region37: #{custom-call.90} parent=1 // loop_header
      %s49 = sphi 0, %s53
      %p50 = scmp.ge.s32.totalorder %s49, 8
    $region38: #{custom-call.90} parent=1 // loop_header_branch
      %52 = sbr.rel (%p50) target = $region42
    $region39: #{custom-call.90} parent=1 // loop_body
      %v54 = vld [vmem:[#allocation1] sm:$0xff]
      %v55 = vlaneseq
      %v56 = vshrl.u32 %v55, 7
      %v58 = vstv %s49
      %vm59 = vcmp.gt.s32.totalorder %v56, %v58
      %v60 = vsel %vm59, %v54, 0.0
      %v61 = vmul.f32 %v60, %v60
      %s62 = scalar_lea.vmem [#allocation1], 8
      %v63 = vld [vmem:[%s62] sm:$0xff]
      %v64 = vlaneseq
      %v65 = vshrl.u32 %v64, 7
      %v66 = vadd.s32 %v65, 8
      %v67 = vstv %s49
      %vm68 = vcmp.gt.s32.totalorder %v66, %v67
      %vm69 = vcmp.lt.s32.totalorder %v66, 16
      %vm70 = vmand %vm68, %vm69
      %v71 = vsel %vm70, %v63, 0.0
      %v72 = vmul.f32 %v71, %v71
      %v73 = vadd.f32 %v61, %v72
      %v74 = vrot.slane %v73, 4
      %v75 = vadd.f32 %v73, %v74
      %v76 = vrot.slane %v75, 2
      %v77 = vadd.f32 %v75, %v76
      %v78 = vrot.slane %v77, 1
      %v79 = vadd.f32 %v77, %v78
      %v80 = vrsqrt.pop %v79
      %v81 = vmul.f32 %v79, %v80
      %vm82 = vcmp.eq.f32.partialorder %v79, inf
      %v83 = vsel %vm82, %v79, %v81
      %vm84 = vcmp.eq.f32.partialorder %v79, 0.0
      %v85 = vand.u32 %v79, 2147483648
      %v86 = vsel %vm84, %v85, %v83
      %vm87 = vcmp.eq.f32.partialorder %v79, 0.0
      %s88 = sshrl.u32 %s49, 3
      %s89 = sand.u32 %s49, 7
      %s90 = smul.addr %s88, 8
      %s91 = sadd.s32 %s89, %s90
      %s92 = scalar_lea.vmem [#allocation1], %s91
      %v93 = vld [vmem:[%s92] ss:$0 sm:$0xff]
      %v94 = vand.u32 2147483647, %v93
      %v95 = vmax.f32 %v94, 0.0
      %v96 = vand.u32 2147483647, %v86
      %v97 = vmax.f32 %v95, %v96
      %v98 = vrcp.pop %v97
      %v99 = vmul.f32 %v94, %v98
      %v100 = vmul.f32 %v99, %v99
      %v101 = vrcp.pop %v97
      %v102 = vmul.f32 0.0, %v101
      %v103 = vmul.f32 %v102, %v102
      %v104 = vadd.f32 %v100, %v103
      %v105 = vrcp.pop %v97
      %v106 = vmul.f32 %v96, %v105
      %v107 = vmul.f32 %v106, %v106
      %v108 = vadd.f32 %v104, %v107
      %vm109 = vcmp.eq.f32.partialorder %v97, 0.0
      %v110 = vrsqrt.pop %v108
      %v111 = vmul.f32 %v108, %v110
      %vm112 = vcmp.eq.f32.partialorder %v108, inf
      %v113 = vsel %vm112, %v108, %v111
      %vm114 = vcmp.eq.f32.partialorder %v108, 0.0
      %v115 = vand.u32 %v108, 2147483648
      %v116 = vsel %vm114, %v115, %v113
      %v117 = vmul.f32 %v97, %v116
      %v118 = vsel %vm109, 0.0, %v117
      %vm119 = vcmp.lt.f32.partialorder %v93, 0.0
      %v120 = vxor.u32 %v118, 2147483648
      %v121 = vsel %vm119, %v118, %v120
      %v122 = vsub.f32 %v121, %v93
      %v123 = vrcp.pop %v121
      %v124 = vmul.f32 %v122, %v123
      %v125 = vsel %vm87, %v93, %v121
      %v126 = vsel %vm87, 0.0, %v124
      %v127 = vsub.f32 %v93, %v125
      %s128 = smov [#allocation1]
      %v129 = vlaneseq
      %v130 = vshrl.u32 %v129, 7
      %v131 = vmov %v130
      %v132 = vld [vmem:[%s128] sm:$0xff]
      %v134 = vstv %s49
      %vm135 = vcmp.gt.s32.totalorder %v131, %v134
      %v136 = vsel %vm135, %v132, 0.0
      %v137 = vrcp.pop %v127
      %v138 = vmul.f32 %v136, %v137
      %v139 = vsel %vm87, 0.0, %v138
      %v140 = vstv %s49
      %v141 = vlaneseq
      %v142 = vand.u32 %v141, 127
      %vm143 = vcmp.eq.s32.totalorder %v142, %v140
      %v144 = vsel %vm143, %v139, 0.0
      %145 = vadd.xlane.f32.xlu0 %v144
      %v146 = vpop.xlane.xlu0 %145
      %147 = vst [vmem:[#allocation4] sm:$0xff] %v146
      %s148 = scalar_lea.vmem %s128, 8
      %v149 = vld [vmem:[%s148] sm:$0xff]
      %v150 = vadd.s32 %v131, 8
      %v151 = vstv %s49
      %vm152 = vcmp.gt.s32.totalorder %v150, %v151
      %vm153 = vcmp.lt.s32.totalorder %v150, 16
      %vm154 = vmand %vm152, %vm153
      %v155 = vsel %vm154, %v149, 0.0
      %v156 = vrcp.pop %v127
      %v157 = vmul.f32 %v155, %v156
      %v158 = vsel %vm87, 0.0, %v157
      %v159 = vstv %s49
      %v160 = vlaneseq
      %v161 = vand.u32 %v160, 127
      %vm162 = vcmp.eq.s32.totalorder %v161, %v159
      %v163 = vsel %vm162, %v158, 0.0
      %164 = vadd.xlane.f32.xlu0 %v163
      %v165 = vpop.xlane.xlu0 %164
      %s166 = scalar_lea.vmem [#allocation4], 8
      %167 = vst [vmem:[%s166] sm:$0xff] %v165
      %s168 = scalar_lea.vmem [#allocation4], %s49
      %169 = vst [vmem:[%s168] sm:$0x1] 1.0
      %v170 = vstv %s49
      %v171 = vlaneseq
      %v172 = vand.u32 %v171, 127
      %vm173 = vcmp.eq.s32.totalorder %v172, %v170
      %v174 = vsel %vm173, %v126, 0.0
      %175 = vadd.xlane.f32.xlu0 %v174
      %v176 = vpop.xlane.xlu0 %175
      %v177 = vstv %s49
      %v178 = vlaneseq
      %v179 = vand.u32 %v178, 127
      %vm180 = vcmp.eq.s32.totalorder %v179, %v177
      %v181 = vld [vmem:[#allocation2] ss:$0 sm:$0xff]
      %v182 = vsel %vm180, %v176, %v181
      %183 = vst [vmem:[#allocation2] sm:$0x1] %v182
      %s184 = smov [#allocation1]
      %s185 = smov [#allocation4]
      %v186 = vlaneseq
      %v187 = vshrl.u32 %v186, 7
      %v188 = vmov %v187
      %v190 = vld [vmem:[%s185] sm:$0xff]
      %v191 = vld [vmem:[%s184] sm:$0xff]
      %v192 = vmul.f32 %v190, %v191
      %v193 = vadd.s32 %v188, 8
      %s194 = scalar_lea.vmem %s185, 8
      %v195 = vld [vmem:[%s194] sm:$0xff]
      %s196 = scalar_lea.vmem %s184, 8
      %v197 = vld [vmem:[%s196] sm:$0xff]
      %v198 = vmul.f32 %v195, %v197
      %vm199 = vcmp.lt.s32.totalorder %v193, 16
      %v200 = vsel %vm199, %v198, 0.0
      %v201 = vadd.f32 %v192, %v200
      %v202 = vrot.slane %v201, 4
      %v203 = vadd.f32 %v201, %v202
      %v204 = vrot.slane %v203, 2
      %v205 = vadd.f32 %v203, %v204
      %v206 = vrot.slane %v205, 1
      %v207 = vadd.f32 %v205, %v206
      %s208 = smov %s184
      %s209 = smov %s185
      %v210 = vlaneseq
      %v211 = vshrl.u32 %v210, 7
      %v212 = vmov %v211
      %v213 = vmul.f32 %v207, %v176
      %v215 = vlaneseq
      %v216 = vand.u32 %v215, 127
      %v217 = vld [vmem:[%s209] sm:$0xff]
      %v218 = vmul.f32 %v217, %v213
      %v219 = vld [vmem:[%s208] sm:$0xff]
      %v220 = vstv %s49
      %vm221 = vcmp.gt.s32.totalorder %v216, %v220
      %v222 = vsub.f32 %v219, %v218
      %v223 = vsel %vm221, %v222, %v219
      %v224 = vstv %s49
      %v225 = vlaneseq
      %v226 = vand.u32 %v225, 127
      %vm227 = vcmp.eq.s32.totalorder %v226, %v224
      %v228 = vstv %s49
      %vm229 = vcmp.ge.s32.totalorder %v212, %v228
      %vm230 = vmand %vm227, %vm229
      %v231 = vsel %vm230, %v217, %v223
      %232 = vst [vmem:[%s208] sm:$0xff] %v231
      %v233 = vadd.s32 %v212, 8
      %v234 = vlaneseq
      %v235 = vand.u32 %v234, 127
      %s236 = scalar_lea.vmem %s209, 8
      %v237 = vld [vmem:[%s236] sm:$0xff]
      %v238 = vmul.f32 %v237, %v213
      %s239 = scalar_lea.vmem %s208, 8
      %v240 = vld [vmem:[%s239] sm:$0xff]
      %v241 = vstv %s49
      %vm242 = vcmp.gt.s32.totalorder %v235, %v241
      %v243 = vsub.f32 %v240, %v238
      %v244 = vsel %vm242, %v243, %v240
      %v245 = vstv %s49
      %v246 = vlaneseq
      %v247 = vand.u32 %v246, 127
      %vm248 = vcmp.eq.s32.totalorder %v247, %v245
      %v249 = vstv %s49
      %vm250 = vcmp.ge.s32.totalorder %v233, %v249
      %vm251 = vmand %vm248, %vm250
      %v252 = vsel %vm251, %v237, %v244
      %253 = vst [vmem:[%s239] sm:$0xff] %v252
      %s254 = scalar_lea.vmem %s208, %s49
      %v255 = vld [vmem:[%s254] ss:$0 sm:$0xff]
      %v256 = vstv %s49
      %v257 = vlaneseq
      %v258 = vand.u32 %v257, 127
      %vm259 = vcmp.eq.s32.totalorder %v258, %v256
      %v260 = vsel %vm259, %v125, %v255
      %261 = vst [vmem:[%s254] sm:$0x1] %v260
    $region40: #{custom-call.90} parent=1 // loop_footer
      %s53 = sadd.s32 1, %s49
    $region41: #{custom-call.90} parent=1 // loop_footer_branch
      %48 = sbr.rel target = $region37
    $region42: #{custom-call.90} parent=1 // loop_exit
      _
    %s263 = sshll.u32 1, 1
    %s264 = ssub.s32 %s263, 1
    %v266 = vld [vmem:[#allocation2] sm:%s264]
    %s267 = sshll.u32 1, 1
    %s268 = ssub.s32 %s267, 1
    %269 = vst [vmem:[#allocation3] sm:%s268] %v266
    // Predicated region
    $region43: #{custom-call.90} parent=1 // pred_check
      _
    $region44: #{custom-call.90} parent=1 // pred_check_branch
      %271 = sbr.rel (0) target = $region46
    $region45: #{custom-call.90} parent=1 // pred_region
      // Predicated region
      $region47: #{custom-call.90} parent=45 // pred_check
        _
      $region48: #{custom-call.90} parent=45 // pred_check_branch
        %273 = sbr.rel (0) target = $region50
      $region49: #{custom-call.90} parent=45 // pred_region
        // Predicated region
        $region62: #{custom-call.90} parent=49 // pred_check
          _
        $region63: #{custom-call.90} parent=49 // pred_check_branch
          %291 = sbr.rel (0) target = $region65
        $region64: #{custom-call.90} parent=49 // pred_region
          loop: start=0, step=1, limit=1
          $region66: #{custom-call.90} parent=64 // loop_pre_header
            _
          $region67: #{custom-call.90} parent=64 // loop_header
            %s293 = sphi 0, %s297
            %p294 = scmp.ge.s32.totalorder %s293, 1
            %s298 = sphi [#allocation1], [#allocation1]
            %s299 = sphi %s1, %s1
          $region68: #{custom-call.90} parent=64 // loop_header_branch
            %296 = sbr.rel (%p294) target = $region72
          $region69: #{custom-call.90} parent=64 // loop_body
            %v300 = vld [vmem:[%s298] sm:$0xff]
            %301 = vst [vmem:[%s299] sm:$0xff] %v300
            %v302 = vld [vmem:[%s298 + $0x8] sm:$0xff]
            %303 = vst [vmem:[%s299 + $0x8] sm:$0xff] %v302
          $region70: #{custom-call.90} parent=64 // loop_footer
            %s297 = sadd.s32 1, %s293
          $region71: #{custom-call.90} parent=64 // loop_footer_branch
            %292 = sbr.rel target = $region67
          $region72: #{custom-call.90} parent=64 // loop_exit
            _
        $region65: #{custom-call.90} parent=49 // pred_fallthru
          _
        // Predicated region
        $region73: #{custom-call.90} parent=49 // pred_check
          _
        $region74: #{custom-call.90} parent=49 // pred_check_branch
          %305 = sbr.rel target = $region76
        $region75: #{custom-call.90} parent=49 // pred_region
          _
        $region76: #{custom-call.90} parent=49 // pred_fallthru
          _
      $region50: #{custom-call.90} parent=45 // pred_fallthru
        _
      // Predicated region
      $region51: #{custom-call.90} parent=45 // pred_check
        _
      $region52: #{custom-call.90} parent=45 // pred_check_branch
        %275 = sbr.rel target = $region54
      $region53: #{custom-call.90} parent=45 // pred_region
        %s277 = ssub.s32 256, 1
        loop: start=0, step=1, limit=1
        $region55: #{custom-call.90} parent=53 // loop_pre_header
          _
        $region56: #{custom-call.90} parent=53 // loop_header
          %s279 = sphi 0, %s283
          %p280 = scmp.ge.s32.totalorder %s279, 1
          %s284 = sphi [#allocation1], [#allocation1]
          %s285 = sphi %s1, %s1
        $region57: #{custom-call.90} parent=53 // loop_header_branch
          %282 = sbr.rel (%p280) target = $region61
        $region58: #{custom-call.90} parent=53 // loop_body
          %v286 = vld [vmem:[%s284] sm:%s277]
          %287 = vst [vmem:[%s285] sm:%s277] %v286
          %v288 = vld [vmem:[%s284 + $0x8] sm:%s277]
          %289 = vst [vmem:[%s285 + $0x8] sm:%s277] %v288
        $region59: #{custom-call.90} parent=53 // loop_footer
          %s283 = sadd.s32 1, %s279
        $region60: #{custom-call.90} parent=53 // loop_footer_branch
          %278 = sbr.rel target = $region56
        $region61: #{custom-call.90} parent=53 // loop_exit
          _
      $region54: #{custom-call.90} parent=45 // pred_fallthru
        _
    $region46: #{custom-call.90} parent=1 // pred_fallthru
      _
    %306 = vnop
    // Predicated region
    $region77: #{custom-call.90} parent=1 // pred_check
      _
    $region78: #{custom-call.90} parent=1 // pred_check_branch
      %308 = sbr.rel (0) target = $region80
    $region79: #{custom-call.90} parent=1 // pred_region
      // Predicated region
      $region81: #{custom-call.90} parent=79 // pred_check
        _
      $region82: #{custom-call.90} parent=79 // pred_check_branch
        %310 = sbr.rel (0) target = $region84
      $region83: #{custom-call.90} parent=79 // pred_region
        // Predicated region
        $region85: #{custom-call.90} parent=83 // pred_check
          _
        $region86: #{custom-call.90} parent=83 // pred_check_branch
          %312 = sbr.rel target = $region88
        $region87: #{custom-call.90} parent=83 // pred_region
          // Predicated region
          $region100: #{custom-call.90} parent=87 // pred_check
            _
          $region101: #{custom-call.90} parent=87 // pred_check_branch
            %328 = sbr.rel (0) target = $region103
          $region102: #{custom-call.90} parent=87 // pred_region
            %s330 = ssub.s32 2, 1
            loop: start=0, step=1, limit=1
            $region104: #{custom-call.90} parent=102 // loop_pre_header
              _
            $region105: #{custom-call.90} parent=102 // loop_header
              %s332 = sphi 0, %s336
              %p333 = scmp.ge.s32.totalorder %s332, 1
              %s337 = sphi [#allocation3], [#allocation3]
              %s338 = sphi %s2, %s2
            $region106: #{custom-call.90} parent=102 // loop_header_branch
              %335 = sbr.rel (%p333) target = $region110
            $region107: #{custom-call.90} parent=102 // loop_body
              %v339 = vld [vmem:[%s337] sm:%s330]
              %340 = vst [vmem:[%s338] sm:%s330] %v339
            $region108: #{custom-call.90} parent=102 // loop_footer
              %s336 = sadd.s32 1, %s332
            $region109: #{custom-call.90} parent=102 // loop_footer_branch
              %331 = sbr.rel target = $region105
            $region110: #{custom-call.90} parent=102 // loop_exit
              _
          $region103: #{custom-call.90} parent=87 // pred_fallthru
            _
        $region88: #{custom-call.90} parent=83 // pred_fallthru
          _
        // Predicated region
        $region89: #{custom-call.90} parent=83 // pred_check
          _
        $region90: #{custom-call.90} parent=83 // pred_check_branch
          %314 = sbr.rel (0) target = $region92
        $region91: #{custom-call.90} parent=83 // pred_region
          %s316 = ssub.s32 2, 1
          loop: start=0, step=1, limit=1
          $region93: #{custom-call.90} parent=91 // loop_pre_header
            _
          $region94: #{custom-call.90} parent=91 // loop_header
            %s318 = sphi 0, %s322
            %p319 = scmp.ge.s32.totalorder %s318, 1
            %s323 = sphi [#allocation3], [#allocation3]
            %s324 = sphi %s2, %s2
          $region95: #{custom-call.90} parent=91 // loop_header_branch
            %321 = sbr.rel (%p319) target = $region99
          $region96: #{custom-call.90} parent=91 // loop_body
            %v325 = vld [vmem:[%s323] sm:%s316]
            %326 = vst [vmem:[%s324] sm:%s316] %v325
          $region97: #{custom-call.90} parent=91 // loop_footer
            %s322 = sadd.s32 1, %s318
          $region98: #{custom-call.90} parent=91 // loop_footer_branch
            %317 = sbr.rel target = $region94
          $region99: #{custom-call.90} parent=91 // loop_exit
            _
        $region92: #{custom-call.90} parent=83 // pred_fallthru
          _
      $region84: #{custom-call.90} parent=79 // pred_fallthru
        _
      %341 = vnop
    $region80: #{custom-call.90} parent=1 // pred_fallthru
      _
    // Predicated region
    $region111: #{custom-call.90} parent=1 // pred_check
      _
    $region112: #{custom-call.90} parent=1 // pred_check_branch
      %343 = sbr.rel (0) target = $region114
    $region113: #{custom-call.90} parent=1 // pred_region
      _
    $region114: #{custom-call.90} parent=1 // pred_fallthru
      _

// kernel: custom-call.91
$region0: #{custom-call.91}
  %s0 = inlined_call_operand.vmem [shape: f32[8,8], index: 0, kind: input, shape index: {}]
  %s1 = inlined_call_operand.vmem [shape: f32[8,8], index: 1, kind: output, shape index: {}]
  $region1: #{custom-call.91} parent=0
    #allocation0 [shape = 'u8[4096]{0}', space=vmem, size = 0x1000, scoped, tag = 'operand span for operand 0']
    #allocation1 [shape = 'u8[4096]{0}', space=vmem, size = 0x1000, scoped, tag = 'operand span for operand 1']
    %p3 = scmp.gt.s32.totalorder 8, 0
    // Predicated region
    $region2: #{custom-call.91} parent=1 // pred_check
      %p4 = pneg %p3
    $region3: #{custom-call.91} parent=1 // pred_check_branch
      %6 = sbr.rel (%p4) target = $region5
    $region4: #{custom-call.91} parent=1 // pred_region
      %s7 = sshra.s32 8, 3
      %p8 = scmp.gt.s32.totalorder %s7, 0
      // Predicated region
      $region6: #{custom-call.91} parent=4 // pred_check
        %p9 = pneg %p8
      $region7: #{custom-call.91} parent=4 // pred_check_branch
        %11 = sbr.rel (%p9) target = $region9
      $region8: #{custom-call.91} parent=4 // pred_region
        %s12 = ssub.s32 %s7, 1
        %s13 = smul.u32 %s12, 128
        %s14 = sshra.s32 %s13, 4
        %s15 = scalar_lea.vmem %s0, %s14
        %v16 = vld [vmem:[%s0] sm:$0xff]
        // While loop
        $region10: #{custom-call.91} parent=8 // loop_pre_header
          _
        $region11: #{custom-call.91} parent=8 // loop_header
          %s17 = sphi %s0, %s39
          %s18 = sphi [#allocation0], %s40
          %v19 = vphi %v16, %v41
          %s20 = ssub.s32 %s15, 64
          %p21 = scmp.gt.s32.totalorder %s17, %s20
        $region12: #{custom-call.91} parent=8 // loop_header_branch
          %23 = sbr.rel (%p21) target = $region16
        $region13: #{custom-call.91} parent=8 // loop_body
          %24 = vst [vmem:[%s18] sm:$0xff] %v19
          %v25 = vld [vmem:[%s17 + $0x8] sm:$0xff]
          %26 = vst [vmem:[%s18 + $0x8] sm:$0xff] %v25
          %v27 = vld [vmem:[%s17 + $0x10] sm:$0xff]
          %28 = vst [vmem:[%s18 + $0x10] sm:$0xff] %v27
          %v29 = vld [vmem:[%s17 + $0x18] sm:$0xff]
          %30 = vst [vmem:[%s18 + $0x18] sm:$0xff] %v29
          %v31 = vld [vmem:[%s17 + $0x20] sm:$0xff]
          %32 = vst [vmem:[%s18 + $0x20] sm:$0xff] %v31
          %v33 = vld [vmem:[%s17 + $0x28] sm:$0xff]
          %34 = vst [vmem:[%s18 + $0x28] sm:$0xff] %v33
          %v35 = vld [vmem:[%s17 + $0x30] sm:$0xff]
          %36 = vst [vmem:[%s18 + $0x30] sm:$0xff] %v35
          %v37 = vld [vmem:[%s17 + $0x38] sm:$0xff]
          %38 = vst [vmem:[%s18 + $0x38] sm:$0xff] %v37
        $region14: #{custom-call.91} parent=8 // loop_footer
          %s39 = scalar_lea.vmem %s17, 64
          %s40 = scalar_lea.vmem %s18, 64
          %v41 = vld [vmem:[%s17 + $0x40] sm:$0xff]
        $region15: #{custom-call.91} parent=8 // loop_footer_branch
          %42 = sbr.rel target = $region11
        $region16: #{custom-call.91} parent=8 // loop_exit
          _
        // While loop
        $region17: #{custom-call.91} parent=8 // loop_pre_header
          _
        $region18: #{custom-call.91} parent=8 // loop_header
          %s43 = sphi %s17, %s51
          %s44 = sphi %s18, %s52
          %v45 = vphi %v19, %v45
          %p46 = scmp.gt.s32.totalorder %s43, %s15
        $region19: #{custom-call.91} parent=8 // loop_header_branch
          %48 = sbr.rel (%p46) target = $region23
        $region20: #{custom-call.91} parent=8 // loop_body
          %v49 = vld [vmem:[%s43] sm:$0xff]
          %50 = vst [vmem:[%s44] sm:$0xff] %v49
        $region21: #{custom-call.91} parent=8 // loop_footer
          %s51 = scalar_lea.vmem %s43, 8
          %s52 = scalar_lea.vmem %s44, 8
        $region22: #{custom-call.91} parent=8 // loop_footer_branch
          %53 = sbr.rel target = $region18
        $region23: #{custom-call.91} parent=8 // loop_exit
          _
      $region9: #{custom-call.91} parent=4 // pred_fallthru
        _
      %s54 = sand.u32 8, 7
      %s55 = sshll.u32 1, %s54
      %s56 = ssub.s32 %s55, 1
      %s57 = smul.u32 %s7, 128
      %s58 = sshra.s32 %s57, 4
      %s59 = scalar_lea.vmem [#allocation0], %s58
      %s60 = smul.u32 %s7, 128
      %s61 = sshra.s32 %s60, 4
      %s62 = scalar_lea.vmem %s0, %s61
      %v63 = vld [vmem:[%s62] sm:%s56]
      %64 = vst [vmem:[%s59] sm:%s56] %v63
    $region5: #{custom-call.91} parent=1 // pred_fallthru
      _
    %v65 = vlaneseq
    %v66 = vand.u32 %v65, 127
    %v67 = vlaneseq
    %v68 = vshrl.u32 %v67, 7
    %vm70 = vcmp.eq.s32.totalorder %v66, %v68
    %v71 = vld [vmem:[#allocation0] sm:$0xff]
    %v72 = vlaneseq
    %v73 = vand.u32 %v72, 127
    %vm74 = vcmp.eq.s32.totalorder %v73, 0
    %v75 = vsel %vm74, %v71, 1.0
    %v76 = vsel %vm70, %v75, 0.0
    %s77 = scalar_lea.vmem [#allocation0], 1
    %v78 = vld [vmem:[%s77] ss:$0 sm:$0xff]
    %vm79 = vcmask 64512
    %v80 = vsel %vm79, %v78, 0.0
    %v81 = vlaneseq
    %v82 = vand.u32 %v81, 127
    %vm83 = vcmp.eq.s32.totalorder %v82, 1
    %v84 = vmul.f32 %v80, %v76
    %85 = vadd.xlane.f32.xlu0 %v84
    %v86 = vpop.xlane.xlu0 %85
    %v87 = vsel %vm83, %v86, %v76
    %s88 = scalar_lea.vmem [#allocation0], 2
    %v89 = vld [vmem:[%s88] ss:$0 sm:$0xff]
    %vm90 = vcmask 64512
    %v91 = vsel %vm90, %v89, 0.0
    %v92 = vlaneseq
    %v93 = vand.u32 %v92, 127
    %vm94 = vcmp.eq.s32.totalorder %v93, 2
    %v95 = vmul.f32 %v91, %v87
    %96 = vadd.xlane.f32.xlu0 %v95
    %v97 = vpop.xlane.xlu0 %96
    %v98 = vsel %vm94, %v97, %v87
    %s99 = scalar_lea.vmem [#allocation0], 3
    %v100 = vld [vmem:[%s99] ss:$0 sm:$0xff]
    %vm101 = vcmask 64512
    %v102 = vsel %vm101, %v100, 0.0
    %v103 = vlaneseq
    %v104 = vand.u32 %v103, 127
    %vm105 = vcmp.eq.s32.totalorder %v104, 3
    %v106 = vmul.f32 %v102, %v98
    %107 = vadd.xlane.f32.xlu0 %v106
    %v108 = vpop.xlane.xlu0 %107
    %v109 = vsel %vm105, %v108, %v98
    %s110 = scalar_lea.vmem [#allocation0], 4
    %v111 = vld [vmem:[%s110] ss:$0 sm:$0xff]
    %vm112 = vcmask 64512
    %v113 = vsel %vm112, %v111, 0.0
    %v114 = vlaneseq
    %v115 = vand.u32 %v114, 127
    %vm116 = vcmp.eq.s32.totalorder %v115, 4
    %v117 = vmul.f32 %v113, %v109
    %118 = vadd.xlane.f32.xlu0 %v117
    %v119 = vpop.xlane.xlu0 %118
    %v120 = vsel %vm116, %v119, %v109
    %s121 = scalar_lea.vmem [#allocation0], 5
    %v122 = vld [vmem:[%s121] ss:$0 sm:$0xff]
    %vm123 = vcmask 64512
    %v124 = vsel %vm123, %v122, 0.0
    %v125 = vlaneseq
    %v126 = vand.u32 %v125, 127
    %vm127 = vcmp.eq.s32.totalorder %v126, 5
    %v128 = vmul.f32 %v124, %v120
    %129 = vadd.xlane.f32.xlu0 %v128
    %v130 = vpop.xlane.xlu0 %129
    %v131 = vsel %vm127, %v130, %v120
    %s132 = scalar_lea.vmem [#allocation0], 6
    %v133 = vld [vmem:[%s132] ss:$0 sm:$0xff]
    %vm134 = vcmask 64512
    %v135 = vsel %vm134, %v133, 0.0
    %v136 = vlaneseq
    %v137 = vand.u32 %v136, 127
    %vm138 = vcmp.eq.s32.totalorder %v137, 6
    %v139 = vmul.f32 %v135, %v131
    %140 = vadd.xlane.f32.xlu0 %v139
    %v141 = vpop.xlane.xlu0 %140
    %v142 = vsel %vm138, %v141, %v131
    %s143 = scalar_lea.vmem [#allocation0], 7
    %v144 = vld [vmem:[%s143] ss:$0 sm:$0xff]
    %vm145 = vcmask 64512
    %v146 = vsel %vm145, %v144, 0.0
    %v147 = vlaneseq
    %v148 = vand.u32 %v147, 127
    %vm149 = vcmp.eq.s32.totalorder %v148, 7
    %v150 = vmul.f32 %v146, %v142
    %151 = vadd.xlane.f32.xlu0 %v150
    %v152 = vpop.xlane.xlu0 %151
    %v153 = vsel %vm149, %v152, %v142
    %154 = vst [vmem:[#allocation1] sm:$0xff] %v153
    %p156 = scmp.gt.s32.totalorder 8, 0
    // Predicated region
    $region24: #{custom-call.91} parent=1 // pred_check
      %p157 = pneg %p156
    $region25: #{custom-call.91} parent=1 // pred_check_branch
      %159 = sbr.rel (%p157) target = $region27
    $region26: #{custom-call.91} parent=1 // pred_region
      %s160 = sshra.s32 8, 3
      %p161 = scmp.gt.s32.totalorder %s160, 0
      // Predicated region
      $region28: #{custom-call.91} parent=26 // pred_check
        %p162 = pneg %p161
      $region29: #{custom-call.91} parent=26 // pred_check_branch
        %164 = sbr.rel (%p162) target = $region31
      $region30: #{custom-call.91} parent=26 // pred_region
        %s165 = ssub.s32 %s160, 1
        %s166 = smul.u32 %s165, 128
        %s167 = sshra.s32 %s166, 4
        %s168 = scalar_lea.vmem [#allocation1], %s167
        %v169 = vld [vmem:[#allocation1] sm:$0xff]
        // While loop
        $region32: #{custom-call.91} parent=30 // loop_pre_header
          _
        $region33: #{custom-call.91} parent=30 // loop_header
          %s170 = sphi [#allocation1], %s192
          %s171 = sphi %s1, %s193
          %v172 = vphi %v169, %v194
          %s173 = ssub.s32 %s168, 64
          %p174 = scmp.gt.s32.totalorder %s170, %s173
        $region34: #{custom-call.91} parent=30 // loop_header_branch
          %176 = sbr.rel (%p174) target = $region38
        $region35: #{custom-call.91} parent=30 // loop_body
          %177 = vst [vmem:[%s171] sm:$0xff] %v172
          %v178 = vld [vmem:[%s170 + $0x8] sm:$0xff]
          %179 = vst [vmem:[%s171 + $0x8] sm:$0xff] %v178
          %v180 = vld [vmem:[%s170 + $0x10] sm:$0xff]
          %181 = vst [vmem:[%s171 + $0x10] sm:$0xff] %v180
          %v182 = vld [vmem:[%s170 + $0x18] sm:$0xff]
          %183 = vst [vmem:[%s171 + $0x18] sm:$0xff] %v182
          %v184 = vld [vmem:[%s170 + $0x20] sm:$0xff]
          %185 = vst [vmem:[%s171 + $0x20] sm:$0xff] %v184
          %v186 = vld [vmem:[%s170 + $0x28] sm:$0xff]
          %187 = vst [vmem:[%s171 + $0x28] sm:$0xff] %v186
          %v188 = vld [vmem:[%s170 + $0x30] sm:$0xff]
          %189 = vst [vmem:[%s171 + $0x30] sm:$0xff] %v188
          %v190 = vld [vmem:[%s170 + $0x38] sm:$0xff]
          %191 = vst [vmem:[%s171 + $0x38] sm:$0xff] %v190
        $region36: #{custom-call.91} parent=30 // loop_footer
          %s192 = scalar_lea.vmem %s170, 64
          %s193 = scalar_lea.vmem %s171, 64
          %v194 = vld [vmem:[%s170 + $0x40] sm:$0xff]
        $region37: #{custom-call.91} parent=30 // loop_footer_branch
          %195 = sbr.rel target = $region33
        $region38: #{custom-call.91} parent=30 // loop_exit
          _
        // While loop
        $region39: #{custom-call.91} parent=30 // loop_pre_header
          _
        $region40: #{custom-call.91} parent=30 // loop_header
          %s196 = sphi %s170, %s204
          %s197 = sphi %s171, %s205
          %v198 = vphi %v172, %v198
          %p199 = scmp.gt.s32.totalorder %s196, %s168
        $region41: #{custom-call.91} parent=30 // loop_header_branch
          %201 = sbr.rel (%p199) target = $region45
        $region42: #{custom-call.91} parent=30 // loop_body
          %v202 = vld [vmem:[%s196] sm:$0xff]
          %203 = vst [vmem:[%s197] sm:$0xff] %v202
        $region43: #{custom-call.91} parent=30 // loop_footer
          %s204 = scalar_lea.vmem %s196, 8
          %s205 = scalar_lea.vmem %s197, 8
        $region44: #{custom-call.91} parent=30 // loop_footer_branch
          %206 = sbr.rel target = $region40
        $region45: #{custom-call.91} parent=30 // loop_exit
          _
      $region31: #{custom-call.91} parent=26 // pred_fallthru
        _
      %s207 = sand.u32 8, 7
      %s208 = sshll.u32 1, %s207
      %s209 = ssub.s32 %s208, 1
      %s210 = smul.u32 %s160, 128
      %s211 = sshra.s32 %s210, 4
      %s212 = scalar_lea.vmem %s1, %s211
      %s213 = smul.u32 %s160, 128
      %s214 = sshra.s32 %s213, 4
      %s215 = scalar_lea.vmem [#allocation1], %s214
      %v216 = vld [vmem:[%s215] sm:%s209]
      %217 = vst [vmem:[%s212] sm:%s209] %v216
    $region27: #{custom-call.91} parent=1 // pred_fallthru
      _

// kernel: custom-call.92
$region0: #{custom-call.92}
  %s0 = inlined_call_operand.vmem [shape: f32[8,8], index: 0, kind: input, shape index: {}]
  %s1 = inlined_call_operand.vmem [shape: f32[8,8], index: 1, kind: output, shape index: {}]
  $region1: #{custom-call.92} parent=0
    #allocation0 [shape = 'u8[4096]{0}', space=vmem, size = 0x1000, scoped, tag = 'operand span for operand 0']
    #allocation1 [shape = 'u8[4096]{0}', space=vmem, size = 0x1000, scoped, tag = 'operand span for operand 1']
    // Predicated region
    $region2: #{custom-call.92} parent=1 // pred_check
      _
    $region3: #{custom-call.92} parent=1 // pred_check_branch
      %3 = sbr.rel (0) target = $region5
    $region4: #{custom-call.92} parent=1 // pred_region
      // Predicated region
      $region6: #{custom-call.92} parent=4 // pred_check
        _
      $region7: #{custom-call.92} parent=4 // pred_check_branch
        %5 = sbr.rel (0) target = $region9
      $region8: #{custom-call.92} parent=4 // pred_region
        // Predicated region
        $region21: #{custom-call.92} parent=8 // pred_check
          _
        $region22: #{custom-call.92} parent=8 // pred_check_branch
          %21 = sbr.rel (0) target = $region24
        $region23: #{custom-call.92} parent=8 // pred_region
          loop: start=0, step=1, limit=1
          $region25: #{custom-call.92} parent=23 // loop_pre_header
            _
          $region26: #{custom-call.92} parent=23 // loop_header
            %s23 = sphi 0, %s27
            %p24 = scmp.ge.s32.totalorder %s23, 1
            %s28 = sphi %s0, %s0
            %s29 = sphi [#allocation0], [#allocation0]
          $region27: #{custom-call.92} parent=23 // loop_header_branch
            %26 = sbr.rel (%p24) target = $region31
          $region28: #{custom-call.92} parent=23 // loop_body
            %v30 = vld [vmem:[%s28] sm:$0xff]
            %31 = vst [vmem:[%s29] sm:$0xff] %v30
          $region29: #{custom-call.92} parent=23 // loop_footer
            %s27 = sadd.s32 1, %s23
          $region30: #{custom-call.92} parent=23 // loop_footer_branch
            %22 = sbr.rel target = $region26
          $region31: #{custom-call.92} parent=23 // loop_exit
            _
        $region24: #{custom-call.92} parent=8 // pred_fallthru
          _
        // Predicated region
        $region32: #{custom-call.92} parent=8 // pred_check
          _
        $region33: #{custom-call.92} parent=8 // pred_check_branch
          %33 = sbr.rel target = $region35
        $region34: #{custom-call.92} parent=8 // pred_region
          _
        $region35: #{custom-call.92} parent=8 // pred_fallthru
          _
      $region9: #{custom-call.92} parent=4 // pred_fallthru
        _
      // Predicated region
      $region10: #{custom-call.92} parent=4 // pred_check
        _
      $region11: #{custom-call.92} parent=4 // pred_check_branch
        %7 = sbr.rel target = $region13
      $region12: #{custom-call.92} parent=4 // pred_region
        %s9 = ssub.s32 256, 1
        loop: start=0, step=1, limit=1
        $region14: #{custom-call.92} parent=12 // loop_pre_header
          _
        $region15: #{custom-call.92} parent=12 // loop_header
          %s11 = sphi 0, %s15
          %p12 = scmp.ge.s32.totalorder %s11, 1
          %s16 = sphi %s0, %s0
          %s17 = sphi [#allocation0], [#allocation0]
        $region16: #{custom-call.92} parent=12 // loop_header_branch
          %14 = sbr.rel (%p12) target = $region20
        $region17: #{custom-call.92} parent=12 // loop_body
          %v18 = vld [vmem:[%s16] sm:%s9]
          %19 = vst [vmem:[%s17] sm:%s9] %v18
        $region18: #{custom-call.92} parent=12 // loop_footer
          %s15 = sadd.s32 1, %s11
        $region19: #{custom-call.92} parent=12 // loop_footer_branch
          %10 = sbr.rel target = $region15
        $region20: #{custom-call.92} parent=12 // loop_exit
          _
      $region13: #{custom-call.92} parent=4 // pred_fallthru
        _
    $region5: #{custom-call.92} parent=1 // pred_fallthru
      _
    %34 = vnop
    %35 = vst [vmem:[#allocation1] sm:$0xff] 0.0
    %vm36 = vcmask 7168
    %v37 = vld [vmem:[#allocation1] ss:$0 sm:$0xff]
    %v38 = vld [vmem:[#allocation0] ss:$0 sm:$0xff]
    %v39 = vmul.f32 %v37, %v37
    %40 = vadd.xlane.f32.xlu0 %v39
    %v41 = vpop.xlane.xlu0 %40
    %v42 = vsub.f32 %v38, %v41
    %v43 = vrsqrt.pop %v42
    %v44 = vld [vmem:[#allocation0] sm:$0xff]
    %v45 = vld [vmem:[#allocation1] sm:$0xff]
    %v46 = vmul.f32 %v45, %v37
    %47 = vadd.xlane.f32.xlu0 %v46
    %v48 = vpop.xlane.xlu0 %47
    %v49 = vsub.f32 %v44, %v48
    %v50 = vmul.f32 %v49, %v43
    %v51 = vsel %vm36, %v50, 0.0
    %v52 = vadd.f32 %v45, %v51
    %53 = vst [vmem:[#allocation1] sm:$0xff] %v52
    %vm54 = vcmask 15368
    %s55 = scalar_lea.vmem [#allocation1], 1
    %v56 = vld [vmem:[%s55] ss:$0 sm:$0xff]
    %s57 = scalar_lea.vmem [#allocation0], 1
    %v58 = vld [vmem:[%s57] ss:$0 sm:$0xff]
    %v59 = vmul.f32 %v56, %v56
    %60 = vadd.xlane.f32.xlu0 %v59
    %v61 = vpop.xlane.xlu0 %60
    %v62 = vsub.f32 %v58, %v61
    %v63 = vrsqrt.pop %v62
    %v64 = vld [vmem:[#allocation0] sm:$0xff]
    %v65 = vld [vmem:[#allocation1] sm:$0xff]
    %v66 = vmul.f32 %v65, %v56
    %67 = vadd.xlane.f32.xlu0 %v66
    %v68 = vpop.xlane.xlu0 %67
    %v69 = vsub.f32 %v64, %v68
    %v70 = vmul.f32 %v69, %v63
    %vm71 = vcmask 1047553
    %vm72 = vmand %vm54, %vm71
    %v73 = vsel %vm72, %v70, 0.0
    %v74 = vadd.f32 %v65, %v73
    %75 = vst [vmem:[#allocation1] sm:$0xff] %v74
    %vm76 = vcmask 23568
    %s77 = scalar_lea.vmem [#allocation1], 2
    %v78 = vld [vmem:[%s77] ss:$0 sm:$0xff]
    %s79 = scalar_lea.vmem [#allocation0], 2
    %v80 = vld [vmem:[%s79] ss:$0 sm:$0xff]
    %v81 = vmul.f32 %v78, %v78
    %82 = vadd.xlane.f32.xlu0 %v81
    %v83 = vpop.xlane.xlu0 %82
    %v84 = vsub.f32 %v80, %v83
    %v85 = vrsqrt.pop %v84
    %v86 = vld [vmem:[#allocation0] sm:$0xff]
    %v87 = vld [vmem:[#allocation1] sm:$0xff]
    %v88 = vmul.f32 %v87, %v78
    %89 = vadd.xlane.f32.xlu0 %v88
    %v90 = vpop.xlane.xlu0 %89
    %v91 = vsub.f32 %v86, %v90
    %v92 = vmul.f32 %v91, %v85
    %vm93 = vcmask 1047554
    %vm94 = vmand %vm76, %vm93
    %v95 = vsel %vm94, %v92, 0.0
    %v96 = vadd.f32 %v87, %v95
    %97 = vst [vmem:[#allocation1] sm:$0xff] %v96
    %vm98 = vcmask 31768
    %s99 = scalar_lea.vmem [#allocation1], 3
    %v100 = vld [vmem:[%s99] ss:$0 sm:$0xff]
    %s101 = scalar_lea.vmem [#allocation0], 3
    %v102 = vld [vmem:[%s101] ss:$0 sm:$0xff]
    %v103 = vmul.f32 %v100, %v100
    %104 = vadd.xlane.f32.xlu0 %v103
    %v105 = vpop.xlane.xlu0 %104
    %v106 = vsub.f32 %v102, %v105
    %v107 = vrsqrt.pop %v106
    %v108 = vld [vmem:[#allocation0] sm:$0xff]
    %v109 = vld [vmem:[#allocation1] sm:$0xff]
    %v110 = vmul.f32 %v109, %v100
    %111 = vadd.xlane.f32.xlu0 %v110
    %v112 = vpop.xlane.xlu0 %111
    %v113 = vsub.f32 %v108, %v112
    %v114 = vmul.f32 %v113, %v107
    %vm115 = vcmask 1047555
    %vm116 = vmand %vm98, %vm115
    %v117 = vsel %vm116, %v114, 0.0
    %v118 = vadd.f32 %v109, %v117
    %119 = vst [vmem:[#allocation1] sm:$0xff] %v118
    %vm120 = vcmask 39968
    %s121 = scalar_lea.vmem [#allocation1], 4
    %v122 = vld [vmem:[%s121] ss:$0 sm:$0xff]
    %s123 = scalar_lea.vmem [#allocation0], 4
    %v124 = vld [vmem:[%s123] ss:$0 sm:$0xff]
    %v125 = vmul.f32 %v122, %v122
    %126 = vadd.xlane.f32.xlu0 %v125
    %v127 = vpop.xlane.xlu0 %126
    %v128 = vsub.f32 %v124, %v127
    %v129 = vrsqrt.pop %v128
    %v130 = vld [vmem:[#allocation0] sm:$0xff]
    %v131 = vld [vmem:[#allocation1] sm:$0xff]
    %v132 = vmul.f32 %v131, %v122
    %133 = vadd.xlane.f32.xlu0 %v132
    %v134 = vpop.xlane.xlu0 %133
    %v135 = vsub.f32 %v130, %v134
    %v136 = vmul.f32 %v135, %v129
    %vm137 = vcmask 1047556
    %vm138 = vmand %vm120, %vm137
    %v139 = vsel %vm138, %v136, 0.0
    %v140 = vadd.f32 %v131, %v139
    %141 = vst [vmem:[#allocation1] sm:$0xff] %v140
    %vm142 = vcmask 48168
    %s143 = scalar_lea.vmem [#allocation1], 5
    %v144 = vld [vmem:[%s143] ss:$0 sm:$0xff]
    %s145 = scalar_lea.vmem [#allocation0], 5
    %v146 = vld [vmem:[%s145] ss:$0 sm:$0xff]
    %v147 = vmul.f32 %v144, %v144
    %148 = vadd.xlane.f32.xlu0 %v147
    %v149 = vpop.xlane.xlu0 %148
    %v150 = vsub.f32 %v146, %v149
    %v151 = vrsqrt.pop %v150
    %v152 = vld [vmem:[#allocation0] sm:$0xff]
    %v153 = vld [vmem:[#allocation1] sm:$0xff]
    %v154 = vmul.f32 %v153, %v144
    %155 = vadd.xlane.f32.xlu0 %v154
    %v156 = vpop.xlane.xlu0 %155
    %v157 = vsub.f32 %v152, %v156
    %v158 = vmul.f32 %v157, %v151
    %vm159 = vcmask 1047557
    %vm160 = vmand %vm142, %vm159
    %v161 = vsel %vm160, %v158, 0.0
    %v162 = vadd.f32 %v153, %v161
    %163 = vst [vmem:[#allocation1] sm:$0xff] %v162
    %vm164 = vcmask 56368
    %s165 = scalar_lea.vmem [#allocation1], 6
    %v166 = vld [vmem:[%s165] ss:$0 sm:$0xff]
    %s167 = scalar_lea.vmem [#allocation0], 6
    %v168 = vld [vmem:[%s167] ss:$0 sm:$0xff]
    %v169 = vmul.f32 %v166, %v166
    %170 = vadd.xlane.f32.xlu0 %v169
    %v171 = vpop.xlane.xlu0 %170
    %v172 = vsub.f32 %v168, %v171
    %v173 = vrsqrt.pop %v172
    %v174 = vld [vmem:[#allocation0] sm:$0xff]
    %v175 = vld [vmem:[#allocation1] sm:$0xff]
    %v176 = vmul.f32 %v175, %v166
    %177 = vadd.xlane.f32.xlu0 %v176
    %v178 = vpop.xlane.xlu0 %177
    %v179 = vsub.f32 %v174, %v178
    %v180 = vmul.f32 %v179, %v173
    %vm181 = vcmask 1047558
    %vm182 = vmand %vm164, %vm181
    %v183 = vsel %vm182, %v180, 0.0
    %v184 = vadd.f32 %v175, %v183
    %185 = vst [vmem:[#allocation1] sm:$0xff] %v184
    %vm186 = vcmask 64568
    %s187 = scalar_lea.vmem [#allocation1], 7
    %v188 = vld [vmem:[%s187] ss:$0 sm:$0xff]
    %s189 = scalar_lea.vmem [#allocation0], 7
    %v190 = vld [vmem:[%s189] ss:$0 sm:$0xff]
    %v191 = vmul.f32 %v188, %v188
    %192 = vadd.xlane.f32.xlu0 %v191
    %v193 = vpop.xlane.xlu0 %192
    %v194 = vsub.f32 %v190, %v193
    %v195 = vrsqrt.pop %v194
    %v196 = vld [vmem:[#allocation0] sm:$0xff]
    %v197 = vld [vmem:[#allocation1] sm:$0xff]
    %v198 = vmul.f32 %v197, %v188
    %199 = vadd.xlane.f32.xlu0 %v198
    %v200 = vpop.xlane.xlu0 %199
    %v201 = vsub.f32 %v196, %v200
    %v202 = vmul.f32 %v201, %v195
    %vm203 = vcmask 1047559
    %vm204 = vmand %vm186, %vm203
    %v205 = vsel %vm204, %v202, 0.0
    %v206 = vadd.f32 %v197, %v205
    %207 = vst [vmem:[#allocation1] sm:$0xff] %v206
    // Predicated region
    $region36: #{custom-call.92} parent=1 // pred_check
      _
    $region37: #{custom-call.92} parent=1 // pred_check_branch
      %209 = sbr.rel (0) target = $region39
    $region38: #{custom-call.92} parent=1 // pred_region
      // Predicated region
      $region40: #{custom-call.92} parent=38 // pred_check
        _
      $region41: #{custom-call.92} parent=38 // pred_check_branch
        %211 = sbr.rel (0) target = $region43
      $region42: #{custom-call.92} parent=38 // pred_region
        // Predicated region
        $region55: #{custom-call.92} parent=42 // pred_check
          _
        $region56: #{custom-call.92} parent=42 // pred_check_branch
          %227 = sbr.rel (0) target = $region58
        $region57: #{custom-call.92} parent=42 // pred_region
          loop: start=0, step=1, limit=1
          $region59: #{custom-call.92} parent=57 // loop_pre_header
            _
          $region60: #{custom-call.92} parent=57 // loop_header
            %s229 = sphi 0, %s233
            %p230 = scmp.ge.s32.totalorder %s229, 1
            %s234 = sphi [#allocation1], [#allocation1]
            %s235 = sphi %s1, %s1
          $region61: #{custom-call.92} parent=57 // loop_header_branch
            %232 = sbr.rel (%p230) target = $region65
          $region62: #{custom-call.92} parent=57 // loop_body
            %v236 = vld [vmem:[%s234] sm:$0xff]
            %237 = vst [vmem:[%s235] sm:$0xff] %v236
          $region63: #{custom-call.92} parent=57 // loop_footer
            %s233 = sadd.s32 1, %s229
          $region64: #{custom-call.92} parent=57 // loop_footer_branch
            %228 = sbr.rel target = $region60
          $region65: #{custom-call.92} parent=57 // loop_exit
            _
        $region58: #{custom-call.92} parent=42 // pred_fallthru
          _
        // Predicated region
        $region66: #{custom-call.92} parent=42 // pred_check
          _
        $region67: #{custom-call.92} parent=42 // pred_check_branch
          %239 = sbr.rel target = $region69
        $region68: #{custom-call.92} parent=42 // pred_region
          _
        $region69: #{custom-call.92} parent=42 // pred_fallthru
          _
      $region43: #{custom-call.92} parent=38 // pred_fallthru
        _
      // Predicated region
      $region44: #{custom-call.92} parent=38 // pred_check
        _
      $region45: #{custom-call.92} parent=38 // pred_check_branch
        %213 = sbr.rel target = $region47
      $region46: #{custom-call.92} parent=38 // pred_region
        %s215 = ssub.s32 256, 1
        loop: start=0, step=1, limit=1
        $region48: #{custom-call.92} parent=46 // loop_pre_header
          _
        $region49: #{custom-call.92} parent=46 // loop_header
          %s217 = sphi 0, %s221
          %p218 = scmp.ge.s32.totalorder %s217, 1
          %s222 = sphi [#allocation1], [#allocation1]
          %s223 = sphi %s1, %s1
        $region50: #{custom-call.92} parent=46 // loop_header_branch
          %220 = sbr.rel (%p218) target = $region54
        $region51: #{custom-call.92} parent=46 // loop_body
          %v224 = vld [vmem:[%s222] sm:%s215]
          %225 = vst [vmem:[%s223] sm:%s215] %v224
        $region52: #{custom-call.92} parent=46 // loop_footer
          %s221 = sadd.s32 1, %s217
        $region53: #{custom-call.92} parent=46 // loop_footer_branch
          %216 = sbr.rel target = $region49
        $region54: #{custom-call.92} parent=46 // loop_exit
          _
      $region47: #{custom-call.92} parent=38 // pred_fallthru
        _
    $region39: #{custom-call.92} parent=1 // pred_fallthru
      _
    %240 = vnop

// kernel: custom-call.93
$region0: #{custom-call.93}
  %s0 = inlined_call_operand.vmem [shape: f32[1,8,8], index: 0, kind: input, shape index: {}]
  %s1 = inlined_call_operand.vmem [shape: f32[1,8,8], index: 1, kind: output, shape index: {}]
  $region1: #{custom-call.93} parent=0
    #allocation0 [shape = 'u8[4096]{0}', space=vmem, size = 0x1000, scoped, tag = 'operand span for operand 0']
    #allocation1 [shape = 'u8[4096]{0}', space=vmem, size = 0x1000, scoped, tag = 'operand span for operand 1']
    #allocation2 [shape = 'f32[8,8]{1,0}', space=vmem, size = 0x1000, scoped, tag = 'rescaled input a']
    // Predicated region
    $region2: #{custom-call.93} parent=1 // pred_check
      _
    $region3: #{custom-call.93} parent=1 // pred_check_branch
      %3 = sbr.rel (0) target = $region5
    $region4: #{custom-call.93} parent=1 // pred_region
      // Predicated region
      $region6: #{custom-call.93} parent=4 // pred_check
        _
      $region7: #{custom-call.93} parent=4 // pred_check_branch
        %5 = sbr.rel (0) target = $region9
      $region8: #{custom-call.93} parent=4 // pred_region
        // Predicated region
        $region21: #{custom-call.93} parent=8 // pred_check
          _
        $region22: #{custom-call.93} parent=8 // pred_check_branch
          %21 = sbr.rel (0) target = $region24
        $region23: #{custom-call.93} parent=8 // pred_region
          loop: start=0, step=1, limit=1
          $region25: #{custom-call.93} parent=23 // loop_pre_header
            _
          $region26: #{custom-call.93} parent=23 // loop_header
            %s23 = sphi 0, %s27
            %p24 = scmp.ge.s32.totalorder %s23, 1
            %s28 = sphi %s0, %s0
            %s29 = sphi [#allocation0], [#allocation0]
          $region27: #{custom-call.93} parent=23 // loop_header_branch
            %26 = sbr.rel (%p24) target = $region31
          $region28: #{custom-call.93} parent=23 // loop_body
            %v30 = vld [vmem:[%s28] sm:$0xff]
            %31 = vst [vmem:[%s29] sm:$0xff] %v30
          $region29: #{custom-call.93} parent=23 // loop_footer
            %s27 = sadd.s32 1, %s23
          $region30: #{custom-call.93} parent=23 // loop_footer_branch
            %22 = sbr.rel target = $region26
          $region31: #{custom-call.93} parent=23 // loop_exit
            _
        $region24: #{custom-call.93} parent=8 // pred_fallthru
          _
        // Predicated region
        $region32: #{custom-call.93} parent=8 // pred_check
          _
        $region33: #{custom-call.93} parent=8 // pred_check_branch
          %33 = sbr.rel target = $region35
        $region34: #{custom-call.93} parent=8 // pred_region
          _
        $region35: #{custom-call.93} parent=8 // pred_fallthru
          _
      $region9: #{custom-call.93} parent=4 // pred_fallthru
        _
      // Predicated region
      $region10: #{custom-call.93} parent=4 // pred_check
        _
      $region11: #{custom-call.93} parent=4 // pred_check_branch
        %7 = sbr.rel target = $region13
      $region12: #{custom-call.93} parent=4 // pred_region
        %s9 = ssub.s32 256, 1
        loop: start=0, step=1, limit=1
        $region14: #{custom-call.93} parent=12 // loop_pre_header
          _
        $region15: #{custom-call.93} parent=12 // loop_header
          %s11 = sphi 0, %s15
          %p12 = scmp.ge.s32.totalorder %s11, 1
          %s16 = sphi %s0, %s0
          %s17 = sphi [#allocation0], [#allocation0]
        $region16: #{custom-call.93} parent=12 // loop_header_branch
          %14 = sbr.rel (%p12) target = $region20
        $region17: #{custom-call.93} parent=12 // loop_body
          %v18 = vld [vmem:[%s16] sm:%s9]
          %19 = vst [vmem:[%s17] sm:%s9] %v18
        $region18: #{custom-call.93} parent=12 // loop_footer
          %s15 = sadd.s32 1, %s11
        $region19: #{custom-call.93} parent=12 // loop_footer_branch
          %10 = sbr.rel target = $region15
        $region20: #{custom-call.93} parent=12 // loop_exit
          _
      $region13: #{custom-call.93} parent=4 // pred_fallthru
        _
    $region5: #{custom-call.93} parent=1 // pred_fallthru
      _
    %34 = vnop
    %v35 = vlaneseq
    %v36 = vand.u32 %v35, 127
    %vm37 = vcmp.lt.s32.totalorder %v36, 8
    %v38 = vlaneseq
    %v39 = vshrl.u32 %v38, 7
    %vm41 = vcmp.eq.s32.totalorder %v39, %v36
    %v42 = vld [vmem:[#allocation0] sm:$0xff]
    %v43 = vsel %vm41, %v42, 0.0
    %44 = vadd.xlane.f32.xlu0 %v43
    %v45 = vpop.xlane.xlu0 %44
    %vm46 = vcmp.ge.s32.totalorder %v39, %v36
    %vm47 = vmand %vm46, %vm37
    %v48 = vsel %vm47, %v42, 0.0
    %v49 = vrcp.pop %v45
    %v50 = vmul.f32 %v48, %v49
    %51 = vst [vmem:[#allocation2] sm:$0xff] %v50
    %v52 = vlaneseq
    %v53 = vand.u32 %v52, 127
    %v54 = vlaneseq
    %v55 = vshrl.u32 %v54, 7
    %vm57 = vcmp.eq.s32.totalorder %v53, %v55
    %v58 = vlaneseq
    %v59 = vand.u32 %v58, 127
    %vm60 = vcmp.eq.s32.totalorder %v59, 0
    %v61 = vsel %vm60, 1.0, -1.0
    %v62 = vsel %vm57, %v61, 0.0
    %s63 = scalar_lea.vmem [#allocation2], 1
    %v64 = vld [vmem:[%s63] ss:$0 sm:$0xff]
    %v65 = vxor.u32 %v64, 2147483648
    %v66 = vlaneseq
    %v67 = vand.u32 %v66, 127
    %vm68 = vcmp.eq.s32.totalorder %v67, 1
    %v69 = vmul.f32 %v65, %v62
    %70 = vadd.xlane.f32.xlu0 %v69
    %v71 = vpop.xlane.xlu0 %70
    %v72 = vsel %vm68, %v71, %v62
    %s73 = scalar_lea.vmem [#allocation2], 2
    %v74 = vld [vmem:[%s73] ss:$0 sm:$0xff]
    %v75 = vxor.u32 %v74, 2147483648
    %v76 = vlaneseq
    %v77 = vand.u32 %v76, 127
    %vm78 = vcmp.eq.s32.totalorder %v77, 2
    %v79 = vmul.f32 %v75, %v72
    %80 = vadd.xlane.f32.xlu0 %v79
    %v81 = vpop.xlane.xlu0 %80
    %v82 = vsel %vm78, %v81, %v72
    %s83 = scalar_lea.vmem [#allocation2], 3
    %v84 = vld [vmem:[%s83] ss:$0 sm:$0xff]
    %v85 = vxor.u32 %v84, 2147483648
    %v86 = vlaneseq
    %v87 = vand.u32 %v86, 127
    %vm88 = vcmp.eq.s32.totalorder %v87, 3
    %v89 = vmul.f32 %v85, %v82
    %90 = vadd.xlane.f32.xlu0 %v89
    %v91 = vpop.xlane.xlu0 %90
    %v92 = vsel %vm88, %v91, %v82
    %s93 = scalar_lea.vmem [#allocation2], 4
    %v94 = vld [vmem:[%s93] ss:$0 sm:$0xff]
    %v95 = vxor.u32 %v94, 2147483648
    %v96 = vlaneseq
    %v97 = vand.u32 %v96, 127
    %vm98 = vcmp.eq.s32.totalorder %v97, 4
    %v99 = vmul.f32 %v95, %v92
    %100 = vadd.xlane.f32.xlu0 %v99
    %v101 = vpop.xlane.xlu0 %100
    %v102 = vsel %vm98, %v101, %v92
    %s103 = scalar_lea.vmem [#allocation2], 5
    %v104 = vld [vmem:[%s103] ss:$0 sm:$0xff]
    %v105 = vxor.u32 %v104, 2147483648
    %v106 = vlaneseq
    %v107 = vand.u32 %v106, 127
    %vm108 = vcmp.eq.s32.totalorder %v107, 5
    %v109 = vmul.f32 %v105, %v102
    %110 = vadd.xlane.f32.xlu0 %v109
    %v111 = vpop.xlane.xlu0 %110
    %v112 = vsel %vm108, %v111, %v102
    %s113 = scalar_lea.vmem [#allocation2], 6
    %v114 = vld [vmem:[%s113] ss:$0 sm:$0xff]
    %v115 = vxor.u32 %v114, 2147483648
    %v116 = vlaneseq
    %v117 = vand.u32 %v116, 127
    %vm118 = vcmp.eq.s32.totalorder %v117, 6
    %v119 = vmul.f32 %v115, %v112
    %120 = vadd.xlane.f32.xlu0 %v119
    %v121 = vpop.xlane.xlu0 %120
    %v122 = vsel %vm118, %v121, %v112
    %s123 = scalar_lea.vmem [#allocation2], 7
    %v124 = vld [vmem:[%s123] ss:$0 sm:$0xff]
    %v125 = vxor.u32 %v124, 2147483648
    %v126 = vlaneseq
    %v127 = vand.u32 %v126, 127
    %vm128 = vcmp.eq.s32.totalorder %v127, 7
    %v129 = vmul.f32 %v125, %v122
    %130 = vadd.xlane.f32.xlu0 %v129
    %v131 = vpop.xlane.xlu0 %130
    %v132 = vsel %vm128, %v131, %v122
    %v133 = vrcp.pop %v45
    %v134 = vmul.f32 %v132, %v133
    %vm135 = vweird.f32 %v45
    %v136 = vsel %vm135, %v132, %v134
    %137 = vst [vmem:[#allocation1] sm:$0xff] %v136
    // Predicated region
    $region36: #{custom-call.93} parent=1 // pred_check
      _
    $region37: #{custom-call.93} parent=1 // pred_check_branch
      %139 = sbr.rel (0) target = $region39
    $region38: #{custom-call.93} parent=1 // pred_region
      // Predicated region
      $region40: #{custom-call.93} parent=38 // pred_check
        _
      $region41: #{custom-call.93} parent=38 // pred_check_branch
        %141 = sbr.rel (0) target = $region43
      $region42: #{custom-call.93} parent=38 // pred_region
        // Predicated region
        $region55: #{custom-call.93} parent=42 // pred_check
          _
        $region56: #{custom-call.93} parent=42 // pred_check_branch
          %157 = sbr.rel (0) target = $region58
        $region57: #{custom-call.93} parent=42 // pred_region
          loop: start=0, step=1, limit=1
          $region59: #{custom-call.93} parent=57 // loop_pre_header
            _
          $region60: #{custom-call.93} parent=57 // loop_header
            %s159 = sphi 0, %s163
            %p160 = scmp.ge.s32.totalorder %s159, 1
            %s164 = sphi [#allocation1], [#allocation1]
            %s165 = sphi %s1, %s1
          $region61: #{custom-call.93} parent=57 // loop_header_branch
            %162 = sbr.rel (%p160) target = $region65
          $region62: #{custom-call.93} parent=57 // loop_body
            %v166 = vld [vmem:[%s164] sm:$0xff]
            %167 = vst [vmem:[%s165] sm:$0xff] %v166
          $region63: #{custom-call.93} parent=57 // loop_footer
            %s163 = sadd.s32 1, %s159
          $region64: #{custom-call.93} parent=57 // loop_footer_branch
            %158 = sbr.rel target = $region60
          $region65: #{custom-call.93} parent=57 // loop_exit
            _
        $region58: #{custom-call.93} parent=42 // pred_fallthru
          _
        // Predicated region
        $region66: #{custom-call.93} parent=42 // pred_check
          _
        $region67: #{custom-call.93} parent=42 // pred_check_branch
          %169 = sbr.rel target = $region69
        $region68: #{custom-call.93} parent=42 // pred_region
          _
        $region69: #{custom-call.93} parent=42 // pred_fallthru
          _
      $region43: #{custom-call.93} parent=38 // pred_fallthru
        _
      // Predicated region
      $region44: #{custom-call.93} parent=38 // pred_check
        _
      $region45: #{custom-call.93} parent=38 // pred_check_branch
        %143 = sbr.rel target = $region47
      $region46: #{custom-call.93} parent=38 // pred_region
        %s145 = ssub.s32 256, 1
        loop: start=0, step=1, limit=1
        $region48: #{custom-call.93} parent=46 // loop_pre_header
          _
        $region49: #{custom-call.93} parent=46 // loop_header
          %s147 = sphi 0, %s151
          %p148 = scmp.ge.s32.totalorder %s147, 1
          %s152 = sphi [#allocation1], [#allocation1]
          %s153 = sphi %s1, %s1
        $region50: #{custom-call.93} parent=46 // loop_header_branch
          %150 = sbr.rel (%p148) target = $region54
        $region51: #{custom-call.93} parent=46 // loop_body
          %v154 = vld [vmem:[%s152] sm:%s145]
          %155 = vst [vmem:[%s153] sm:%s145] %v154
        $region52: #{custom-call.93} parent=46 // loop_footer
          %s151 = sadd.s32 1, %s147
        $region53: #{custom-call.93} parent=46 // loop_footer_branch
          %146 = sbr.rel target = $region49
        $region54: #{custom-call.93} parent=46 // loop_exit
          _
      $region47: #{custom-call.93} parent=38 // pred_fallthru
        _
    $region39: #{custom-call.93} parent=1 // pred_fallthru
      _
    %170 = vnop

// kernel: custom-call.65
$region0: #{custom-call.65}
  %s0 = inlined_call_operand.vmem [shape: f32[4,4], index: 0, kind: input, shape index: {}]
  %s1 = inlined_call_operand.vmem [shape: f32[4,4], index: 1, kind: input, shape index: {}]
  %s2 = inlined_call_operand.vmem [shape: f32[4,4], index: 2, kind: input, shape index: {}]
  %s3 = inlined_call_operand.vmem [shape: f32[4,4], index: 3, kind: input, shape index: {}]
  %s4 = inlined_call_operand.vmem [shape: f32[4], index: 4, kind: output, shape index: {0}]
  %s5 = inlined_call_operand.vmem [shape: f32[4], index: 5, kind: output, shape index: {1}]
  %s6 = inlined_call_operand.hbm [shape: f32[4,4], index: 6, kind: output, shape index: {2}]
  %s7 = inlined_call_operand.hbm [shape: f32[4,4], index: 7, kind: output, shape index: {3}]
  %s8 = inlined_call_operand.hbm [shape: f32[4,4], index: 8, kind: output, shape index: {4}]
  %s9 = inlined_call_operand.hbm [shape: f32[4,4], index: 9, kind: output, shape index: {5}]
  %10 = xla_tuple %s4, %s5, %s6, %s7, %s8, %s9
  $region1: #{custom-call.65} parent=0
    #allocation0 [shape = 'u8[4096]{0}', space=vmem, size = 0x1000, scoped, tag = 'operand span for operand 0']
    #allocation1 [shape = 'u8[2048]{0}', space=vmem, size = 0x800, scoped, tag = 'packed  for operand 0']
    #allocation2 [shape = 'u8[4096]{0}', space=vmem, size = 0x1000, scoped, tag = 'operand span for operand 1']
    #allocation3 [shape = 'u8[2048]{0}', space=vmem, size = 0x800, scoped, tag = 'packed  for operand 1']
    #allocation4 [shape = 'u8[4096]{0}', space=vmem, size = 0x1000, scoped, tag = 'operand span for operand 2']
    #allocation5 [shape = 'u8[2048]{0}', space=vmem, size = 0x800, scoped, tag = 'packed  for operand 2']
    #allocation6 [shape = 'u8[4096]{0}', space=vmem, size = 0x1000, scoped, tag = 'operand span for operand 3']
    #allocation7 [shape = 'u8[2048]{0}', space=vmem, size = 0x800, scoped, tag = 'packed  for operand 3']
    #allocation8 [shape = 'u8[4096]{0}', space=vmem, size = 0x1000, scoped, tag = 'operand span for operand 4']
    #allocation9 [shape = 'u8[512]{0}', space=vmem, size = 0x400, scoped, tag = 'packed  for operand 4']
    #allocation10 [shape = 'u8[4096]{0}', space=vmem, size = 0x1000, scoped, tag = 'operand span for operand 5']
    #allocation11 [shape = 'u8[512]{0}', space=vmem, size = 0x400, scoped, tag = 'packed  for operand 5']
    #allocation12 [shape = 'u8[4096]{0}', space=vmem, size = 0x1000, scoped, tag = 'operand span for operand 6']
    #allocation13 [shape = 'u8[2048]{0}', space=vmem, size = 0x800, scoped, tag = 'packed  for operand 6']
    #allocation14 [shape = 's32[1]{0}', space=sflag, size = 0x4, scoped, tag = 'scoped memory for custom-call.65']
    #allocation15 [shape = 'u8[4096]{0}', space=vmem, size = 0x1000, scoped, tag = 'operand span for operand 7']
    #allocation16 [shape = 'u8[2048]{0}', space=vmem, size = 0x800, scoped, tag = 'packed  for operand 7']
    #allocation17 [shape = 's32[1]{0}', space=sflag, size = 0x4, scoped, tag = 'scoped memory for custom-call.65']
    #allocation18 [shape = 'u8[4096]{0}', space=vmem, size = 0x1000, scoped, tag = 'operand span for operand 8']
    #allocation19 [shape = 'u8[2048]{0}', space=vmem, size = 0x800, scoped, tag = 'packed  for operand 8']
    #allocation20 [shape = 'u8[4096]{0}', space=vmem, size = 0x1000, scoped, tag = 'operand span for operand 9']
    #allocation21 [shape = 'u8[2048]{0}', space=vmem, size = 0x800, scoped, tag = 'packed  for operand 9']
    #allocation22 [shape = 's32[1]{0}', space=sflag, size = 0x4, scoped, tag = 'scoped memory for custom-call.65']
    #allocation23 [shape = 'f32[4,4]{1,0}', space=vmem, size = 0x1000, scoped, tag = 'a top-left matrix']
    #allocation24 [shape = 'f32[4,4]{1,0}', space=vmem, size = 0x1000, scoped, tag = 'a top-right matrix']
    #allocation25 [shape = 'f32[4,4]{1,0}', space=vmem, size = 0x1000, scoped, tag = 'a bottom-left matrix']
    #allocation26 [shape = 'f32[4,4]{1,0}', space=vmem, size = 0x1000, scoped, tag = 'a bottom-right matrix']
    %11 = vsyncpa [#allocation14], 0
    %12 = vsyncpa [#allocation17], 0
    %13 = vsyncpa [#allocation22], 0
    %p15 = scmp.gt.s32.totalorder 4, 0
    // Predicated region
    $region2: #{custom-call.65} parent=1 // pred_check
      %p16 = pneg %p15
    $region3: #{custom-call.65} parent=1 // pred_check_branch
      %18 = sbr.rel (%p16) target = $region5
    $region4: #{custom-call.65} parent=1 // pred_region
      %s19 = sshra.s32 4, 3
      %p20 = scmp.gt.s32.totalorder %s19, 0
      // Predicated region
      $region6: #{custom-call.65} parent=4 // pred_check
        %p21 = pneg %p20
      $region7: #{custom-call.65} parent=4 // pred_check_branch
        %23 = sbr.rel (%p21) target = $region9
      $region8: #{custom-call.65} parent=4 // pred_region
        %s24 = ssub.s32 %s19, 1
        %s25 = smul.u32 %s24, 128
        %s26 = sshra.s32 %s25, 4
        %s27 = scalar_lea.vmem %s0, %s26
        %v28 = vld [vmem:[%s0] sm:$0xff]
        // While loop
        $region10: #{custom-call.65} parent=8 // loop_pre_header
          _
        $region11: #{custom-call.65} parent=8 // loop_header
          %s29 = sphi %s0, %s51
          %s30 = sphi [#allocation1], %s52
          %v31 = vphi %v28, %v53
          %s32 = ssub.s32 %s27, 64
          %p33 = scmp.gt.s32.totalorder %s29, %s32
        $region12: #{custom-call.65} parent=8 // loop_header_branch
          %35 = sbr.rel (%p33) target = $region16
        $region13: #{custom-call.65} parent=8 // loop_body
          %36 = vst [vmem:[%s30] sm:$0xff] %v31
          %v37 = vld [vmem:[%s29 + $0x8] sm:$0xff]
          %38 = vst [vmem:[%s30 + $0x8] sm:$0xff] %v37
          %v39 = vld [vmem:[%s29 + $0x10] sm:$0xff]
          %40 = vst [vmem:[%s30 + $0x10] sm:$0xff] %v39
          %v41 = vld [vmem:[%s29 + $0x18] sm:$0xff]
          %42 = vst [vmem:[%s30 + $0x18] sm:$0xff] %v41
          %v43 = vld [vmem:[%s29 + $0x20] sm:$0xff]
          %44 = vst [vmem:[%s30 + $0x20] sm:$0xff] %v43
          %v45 = vld [vmem:[%s29 + $0x28] sm:$0xff]
          %46 = vst [vmem:[%s30 + $0x28] sm:$0xff] %v45
          %v47 = vld [vmem:[%s29 + $0x30] sm:$0xff]
          %48 = vst [vmem:[%s30 + $0x30] sm:$0xff] %v47
          %v49 = vld [vmem:[%s29 + $0x38] sm:$0xff]
          %50 = vst [vmem:[%s30 + $0x38] sm:$0xff] %v49
        $region14: #{custom-call.65} parent=8 // loop_footer
          %s51 = scalar_lea.vmem %s29, 64
          %s52 = scalar_lea.vmem %s30, 64
          %v53 = vld [vmem:[%s29 + $0x40] sm:$0xff]
        $region15: #{custom-call.65} parent=8 // loop_footer_branch
          %54 = sbr.rel target = $region11
        $region16: #{custom-call.65} parent=8 // loop_exit
          _
        // While loop
        $region17: #{custom-call.65} parent=8 // loop_pre_header
          _
        $region18: #{custom-call.65} parent=8 // loop_header
          %s55 = sphi %s29, %s63
          %s56 = sphi %s30, %s64
          %v57 = vphi %v31, %v57
          %p58 = scmp.gt.s32.totalorder %s55, %s27
        $region19: #{custom-call.65} parent=8 // loop_header_branch
          %60 = sbr.rel (%p58) target = $region23
        $region20: #{custom-call.65} parent=8 // loop_body
          %v61 = vld [vmem:[%s55] sm:$0xff]
          %62 = vst [vmem:[%s56] sm:$0xff] %v61
        $region21: #{custom-call.65} parent=8 // loop_footer
          %s63 = scalar_lea.vmem %s55, 8
          %s64 = scalar_lea.vmem %s56, 8
        $region22: #{custom-call.65} parent=8 // loop_footer_branch
          %65 = sbr.rel target = $region18
        $region23: #{custom-call.65} parent=8 // loop_exit
          _
      $region9: #{custom-call.65} parent=4 // pred_fallthru
        _
      %s66 = sand.u32 4, 7
      %s67 = sshll.u32 1, %s66
      %s68 = ssub.s32 %s67, 1
      %s69 = smul.u32 %s19, 128
      %s70 = sshra.s32 %s69, 4
      %s71 = scalar_lea.vmem [#allocation1], %s70
      %s72 = smul.u32 %s19, 128
      %s73 = sshra.s32 %s72, 4
      %s74 = scalar_lea.vmem %s0, %s73
      %v75 = vld [vmem:[%s74] sm:%s68]
      %76 = vst [vmem:[%s71] sm:%s68] %v75
    $region5: #{custom-call.65} parent=1 // pred_fallthru
      _
    %p78 = scmp.gt.s32.totalorder 4, 0
    // Predicated region
    $region24: #{custom-call.65} parent=1 // pred_check
      %p79 = pneg %p78
    $region25: #{custom-call.65} parent=1 // pred_check_branch
      %81 = sbr.rel (%p79) target = $region27
    $region26: #{custom-call.65} parent=1 // pred_region
      %s82 = sshra.s32 4, 3
      %p83 = scmp.gt.s32.totalorder %s82, 0
      // Predicated region
      $region28: #{custom-call.65} parent=26 // pred_check
        %p84 = pneg %p83
      $region29: #{custom-call.65} parent=26 // pred_check_branch
        %86 = sbr.rel (%p84) target = $region31
      $region30: #{custom-call.65} parent=26 // pred_region
        %s87 = ssub.s32 %s82, 1
        %s88 = smul.u32 %s87, 128
        %s89 = sshra.s32 %s88, 4
        %s90 = scalar_lea.vmem %s1, %s89
        %v91 = vld [vmem:[%s1] sm:$0xff]
        // While loop
        $region32: #{custom-call.65} parent=30 // loop_pre_header
          _
        $region33: #{custom-call.65} parent=30 // loop_header
          %s92 = sphi %s1, %s114
          %s93 = sphi [#allocation3], %s115
          %v94 = vphi %v91, %v116
          %s95 = ssub.s32 %s90, 64
          %p96 = scmp.gt.s32.totalorder %s92, %s95
        $region34: #{custom-call.65} parent=30 // loop_header_branch
          %98 = sbr.rel (%p96) target = $region38
        $region35: #{custom-call.65} parent=30 // loop_body
          %99 = vst [vmem:[%s93] sm:$0xff] %v94
          %v100 = vld [vmem:[%s92 + $0x8] sm:$0xff]
          %101 = vst [vmem:[%s93 + $0x8] sm:$0xff] %v100
          %v102 = vld [vmem:[%s92 + $0x10] sm:$0xff]
          %103 = vst [vmem:[%s93 + $0x10] sm:$0xff] %v102
          %v104 = vld [vmem:[%s92 + $0x18] sm:$0xff]
          %105 = vst [vmem:[%s93 + $0x18] sm:$0xff] %v104
          %v106 = vld [vmem:[%s92 + $0x20] sm:$0xff]
          %107 = vst [vmem:[%s93 + $0x20] sm:$0xff] %v106
          %v108 = vld [vmem:[%s92 + $0x28] sm:$0xff]
          %109 = vst [vmem:[%s93 + $0x28] sm:$0xff] %v108
          %v110 = vld [vmem:[%s92 + $0x30] sm:$0xff]
          %111 = vst [vmem:[%s93 + $0x30] sm:$0xff] %v110
          %v112 = vld [vmem:[%s92 + $0x38] sm:$0xff]
          %113 = vst [vmem:[%s93 + $0x38] sm:$0xff] %v112
        $region36: #{custom-call.65} parent=30 // loop_footer
          %s114 = scalar_lea.vmem %s92, 64
          %s115 = scalar_lea.vmem %s93, 64
          %v116 = vld [vmem:[%s92 + $0x40] sm:$0xff]
        $region37: #{custom-call.65} parent=30 // loop_footer_branch
          %117 = sbr.rel target = $region33
        $region38: #{custom-call.65} parent=30 // loop_exit
          _
        // While loop
        $region39: #{custom-call.65} parent=30 // loop_pre_header
          _
        $region40: #{custom-call.65} parent=30 // loop_header
          %s118 = sphi %s92, %s126
          %s119 = sphi %s93, %s127
          %v120 = vphi %v94, %v120
          %p121 = scmp.gt.s32.totalorder %s118, %s90
        $region41: #{custom-call.65} parent=30 // loop_header_branch
          %123 = sbr.rel (%p121) target = $region45
        $region42: #{custom-call.65} parent=30 // loop_body
          %v124 = vld [vmem:[%s118] sm:$0xff]
          %125 = vst [vmem:[%s119] sm:$0xff] %v124
        $region43: #{custom-call.65} parent=30 // loop_footer
          %s126 = scalar_lea.vmem %s118, 8
          %s127 = scalar_lea.vmem %s119, 8
        $region44: #{custom-call.65} parent=30 // loop_footer_branch
          %128 = sbr.rel target = $region40
        $region45: #{custom-call.65} parent=30 // loop_exit
          _
      $region31: #{custom-call.65} parent=26 // pred_fallthru
        _
      %s129 = sand.u32 4, 7
      %s130 = sshll.u32 1, %s129
      %s131 = ssub.s32 %s130, 1
      %s132 = smul.u32 %s82, 128
      %s133 = sshra.s32 %s132, 4
      %s134 = scalar_lea.vmem [#allocation3], %s133
      %s135 = smul.u32 %s82, 128
      %s136 = sshra.s32 %s135, 4
      %s137 = scalar_lea.vmem %s1, %s136
      %v138 = vld [vmem:[%s137] sm:%s131]
      %139 = vst [vmem:[%s134] sm:%s131] %v138
    $region27: #{custom-call.65} parent=1 // pred_fallthru
      _
    %p141 = scmp.gt.s32.totalorder 4, 0
    // Predicated region
    $region46: #{custom-call.65} parent=1 // pred_check
      %p142 = pneg %p141
    $region47: #{custom-call.65} parent=1 // pred_check_branch
      %144 = sbr.rel (%p142) target = $region49
    $region48: #{custom-call.65} parent=1 // pred_region
      %s145 = sshra.s32 4, 3
      %p146 = scmp.gt.s32.totalorder %s145, 0
      // Predicated region
      $region50: #{custom-call.65} parent=48 // pred_check
        %p147 = pneg %p146
      $region51: #{custom-call.65} parent=48 // pred_check_branch
        %149 = sbr.rel (%p147) target = $region53
      $region52: #{custom-call.65} parent=48 // pred_region
        %s150 = ssub.s32 %s145, 1
        %s151 = smul.u32 %s150, 128
        %s152 = sshra.s32 %s151, 4
        %s153 = scalar_lea.vmem %s2, %s152
        %v154 = vld [vmem:[%s2] sm:$0xff]
        // While loop
        $region54: #{custom-call.65} parent=52 // loop_pre_header
          _
        $region55: #{custom-call.65} parent=52 // loop_header
          %s155 = sphi %s2, %s177
          %s156 = sphi [#allocation5], %s178
          %v157 = vphi %v154, %v179
          %s158 = ssub.s32 %s153, 64
          %p159 = scmp.gt.s32.totalorder %s155, %s158
        $region56: #{custom-call.65} parent=52 // loop_header_branch
          %161 = sbr.rel (%p159) target = $region60
        $region57: #{custom-call.65} parent=52 // loop_body
          %162 = vst [vmem:[%s156] sm:$0xff] %v157
          %v163 = vld [vmem:[%s155 + $0x8] sm:$0xff]
          %164 = vst [vmem:[%s156 + $0x8] sm:$0xff] %v163
          %v165 = vld [vmem:[%s155 + $0x10] sm:$0xff]
          %166 = vst [vmem:[%s156 + $0x10] sm:$0xff] %v165
          %v167 = vld [vmem:[%s155 + $0x18] sm:$0xff]
          %168 = vst [vmem:[%s156 + $0x18] sm:$0xff] %v167
          %v169 = vld [vmem:[%s155 + $0x20] sm:$0xff]
          %170 = vst [vmem:[%s156 + $0x20] sm:$0xff] %v169
          %v171 = vld [vmem:[%s155 + $0x28] sm:$0xff]
          %172 = vst [vmem:[%s156 + $0x28] sm:$0xff] %v171
          %v173 = vld [vmem:[%s155 + $0x30] sm:$0xff]
          %174 = vst [vmem:[%s156 + $0x30] sm:$0xff] %v173
          %v175 = vld [vmem:[%s155 + $0x38] sm:$0xff]
          %176 = vst [vmem:[%s156 + $0x38] sm:$0xff] %v175
        $region58: #{custom-call.65} parent=52 // loop_footer
          %s177 = scalar_lea.vmem %s155, 64
          %s178 = scalar_lea.vmem %s156, 64
          %v179 = vld [vmem:[%s155 + $0x40] sm:$0xff]
        $region59: #{custom-call.65} parent=52 // loop_footer_branch
          %180 = sbr.rel target = $region55
        $region60: #{custom-call.65} parent=52 // loop_exit
          _
        // While loop
        $region61: #{custom-call.65} parent=52 // loop_pre_header
          _
        $region62: #{custom-call.65} parent=52 // loop_header
          %s181 = sphi %s155, %s189
          %s182 = sphi %s156, %s190
          %v183 = vphi %v157, %v183
          %p184 = scmp.gt.s32.totalorder %s181, %s153
        $region63: #{custom-call.65} parent=52 // loop_header_branch
          %186 = sbr.rel (%p184) target = $region67
        $region64: #{custom-call.65} parent=52 // loop_body
          %v187 = vld [vmem:[%s181] sm:$0xff]
          %188 = vst [vmem:[%s182] sm:$0xff] %v187
        $region65: #{custom-call.65} parent=52 // loop_footer
          %s189 = scalar_lea.vmem %s181, 8
          %s190 = scalar_lea.vmem %s182, 8
        $region66: #{custom-call.65} parent=52 // loop_footer_branch
          %191 = sbr.rel target = $region62
        $region67: #{custom-call.65} parent=52 // loop_exit
          _
      $region53: #{custom-call.65} parent=48 // pred_fallthru
        _
      %s192 = sand.u32 4, 7
      %s193 = sshll.u32 1, %s192
      %s194 = ssub.s32 %s193, 1
      %s195 = smul.u32 %s145, 128
      %s196 = sshra.s32 %s195, 4
      %s197 = scalar_lea.vmem [#allocation5], %s196
      %s198 = smul.u32 %s145, 128
      %s199 = sshra.s32 %s198, 4
      %s200 = scalar_lea.vmem %s2, %s199
      %v201 = vld [vmem:[%s200] sm:%s194]
      %202 = vst [vmem:[%s197] sm:%s194] %v201
    $region49: #{custom-call.65} parent=1 // pred_fallthru
      _
    %p204 = scmp.gt.s32.totalorder 4, 0
    // Predicated region
    $region68: #{custom-call.65} parent=1 // pred_check
      %p205 = pneg %p204
    $region69: #{custom-call.65} parent=1 // pred_check_branch
      %207 = sbr.rel (%p205) target = $region71
    $region70: #{custom-call.65} parent=1 // pred_region
      %s208 = sshra.s32 4, 3
      %p209 = scmp.gt.s32.totalorder %s208, 0
      // Predicated region
      $region72: #{custom-call.65} parent=70 // pred_check
        %p210 = pneg %p209
      $region73: #{custom-call.65} parent=70 // pred_check_branch
        %212 = sbr.rel (%p210) target = $region75
      $region74: #{custom-call.65} parent=70 // pred_region
        %s213 = ssub.s32 %s208, 1
        %s214 = smul.u32 %s213, 128
        %s215 = sshra.s32 %s214, 4
        %s216 = scalar_lea.vmem %s3, %s215
        %v217 = vld [vmem:[%s3] sm:$0xff]
        // While loop
        $region76: #{custom-call.65} parent=74 // loop_pre_header
          _
        $region77: #{custom-call.65} parent=74 // loop_header
          %s218 = sphi %s3, %s240
          %s219 = sphi [#allocation7], %s241
          %v220 = vphi %v217, %v242
          %s221 = ssub.s32 %s216, 64
          %p222 = scmp.gt.s32.totalorder %s218, %s221
        $region78: #{custom-call.65} parent=74 // loop_header_branch
          %224 = sbr.rel (%p222) target = $region82
        $region79: #{custom-call.65} parent=74 // loop_body
          %225 = vst [vmem:[%s219] sm:$0xff] %v220
          %v226 = vld [vmem:[%s218 + $0x8] sm:$0xff]
          %227 = vst [vmem:[%s219 + $0x8] sm:$0xff] %v226
          %v228 = vld [vmem:[%s218 + $0x10] sm:$0xff]
          %229 = vst [vmem:[%s219 + $0x10] sm:$0xff] %v228
          %v230 = vld [vmem:[%s218 + $0x18] sm:$0xff]
          %231 = vst [vmem:[%s219 + $0x18] sm:$0xff] %v230
          %v232 = vld [vmem:[%s218 + $0x20] sm:$0xff]
          %233 = vst [vmem:[%s219 + $0x20] sm:$0xff] %v232
          %v234 = vld [vmem:[%s218 + $0x28] sm:$0xff]
          %235 = vst [vmem:[%s219 + $0x28] sm:$0xff] %v234
          %v236 = vld [vmem:[%s218 + $0x30] sm:$0xff]
          %237 = vst [vmem:[%s219 + $0x30] sm:$0xff] %v236
          %v238 = vld [vmem:[%s218 + $0x38] sm:$0xff]
          %239 = vst [vmem:[%s219 + $0x38] sm:$0xff] %v238
        $region80: #{custom-call.65} parent=74 // loop_footer
          %s240 = scalar_lea.vmem %s218, 64
          %s241 = scalar_lea.vmem %s219, 64
          %v242 = vld [vmem:[%s218 + $0x40] sm:$0xff]
        $region81: #{custom-call.65} parent=74 // loop_footer_branch
          %243 = sbr.rel target = $region77
        $region82: #{custom-call.65} parent=74 // loop_exit
          _
        // While loop
        $region83: #{custom-call.65} parent=74 // loop_pre_header
          _
        $region84: #{custom-call.65} parent=74 // loop_header
          %s244 = sphi %s218, %s252
          %s245 = sphi %s219, %s253
          %v246 = vphi %v220, %v246
          %p247 = scmp.gt.s32.totalorder %s244, %s216
        $region85: #{custom-call.65} parent=74 // loop_header_branch
          %249 = sbr.rel (%p247) target = $region89
        $region86: #{custom-call.65} parent=74 // loop_body
          %v250 = vld [vmem:[%s244] sm:$0xff]
          %251 = vst [vmem:[%s245] sm:$0xff] %v250
        $region87: #{custom-call.65} parent=74 // loop_footer
          %s252 = scalar_lea.vmem %s244, 8
          %s253 = scalar_lea.vmem %s245, 8
        $region88: #{custom-call.65} parent=74 // loop_footer_branch
          %254 = sbr.rel target = $region84
        $region89: #{custom-call.65} parent=74 // loop_exit
          _
      $region75: #{custom-call.65} parent=70 // pred_fallthru
        _
      %s255 = sand.u32 4, 7
      %s256 = sshll.u32 1, %s255
      %s257 = ssub.s32 %s256, 1
      %s258 = smul.u32 %s208, 128
      %s259 = sshra.s32 %s258, 4
      %s260 = scalar_lea.vmem [#allocation7], %s259
      %s261 = smul.u32 %s208, 128
      %s262 = sshra.s32 %s261, 4
      %s263 = scalar_lea.vmem %s3, %s262
      %v264 = vld [vmem:[%s263] sm:%s257]
      %265 = vst [vmem:[%s260] sm:%s257] %v264
    $region71: #{custom-call.65} parent=1 // pred_fallthru
      _
    %s267 = sshll.u32 1, 4
    %s268 = ssub.s32 %s267, 1
    %v269 = vld [vmem:[#allocation1] sm:%s268]
    %270 = vst [vmem:[#allocation0] sm:%s268] %v269
    %s272 = sshll.u32 1, 4
    %s273 = ssub.s32 %s272, 1
    %v274 = vld [vmem:[#allocation3] sm:%s273]
    %275 = vst [vmem:[#allocation2] sm:%s273] %v274
    %s277 = sshll.u32 1, 4
    %s278 = ssub.s32 %s277, 1
    %v279 = vld [vmem:[#allocation5] sm:%s278]
    %280 = vst [vmem:[#allocation4] sm:%s278] %v279
    %s282 = sshll.u32 1, 4
    %s283 = ssub.s32 %s282, 1
    %v284 = vld [vmem:[#allocation7] sm:%s283]
    %285 = vst [vmem:[#allocation6] sm:%s283] %v284
    %s286 = smov [#allocation23]
    %v287 = vld [vmem:[#allocation0] sm:$0xff]
    %288 = vst [vmem:[%s286] sm:$0xff] %v287
    %s289 = smov [#allocation24]
    %v290 = vld [vmem:[#allocation2] sm:$0xff]
    %291 = vst [vmem:[%s289] sm:$0xff] %v290
    %s292 = smov [#allocation25]
    %v293 = vld [vmem:[#allocation4] sm:$0xff]
    %294 = vst [vmem:[%s292] sm:$0xff] %v293
    %s295 = smov [#allocation26]
    %v296 = vld [vmem:[#allocation6] sm:$0xff]
    %297 = vst [vmem:[%s295] sm:$0xff] %v296
    %298 = vst [vmem:[#allocation12] sm:$0xff] 0.0
    %299 = vst [vmem:[#allocation15] sm:$0xff] 0.0
    %300 = vst [vmem:[#allocation18] sm:$0xff] 0.0
    %301 = vst [vmem:[#allocation20] sm:$0xff] 0.0
    %s302 = smov [#allocation12]
    %v303 = vlaneseq
    %v304 = vand.u32 %v303, 127
    %v305 = vmov %v304
    %v306 = vlaneseq
    %v307 = vshrl.u32 %v306, 7
    %v308 = vmov %v307
    %v309 = vld [vmem:[%s302] sm:$0xf]
    %vm312 = vcmp.eq.s32.totalorder %v308, %v305
    %v313 = vsel %vm312, 1.0, %v309
    %314 = vst [vmem:[%s302] sm:$0xf] %v313
    %s315 = smov [#allocation20]
    %v316 = vlaneseq
    %v317 = vand.u32 %v316, 127
    %v318 = vmov %v317
    %v319 = vlaneseq
    %v320 = vshrl.u32 %v319, 7
    %v321 = vmov %v320
    %v322 = vld [vmem:[%s315] sm:$0xf]
    %vm325 = vcmp.eq.s32.totalorder %v321, %v318
    %v326 = vsel %vm325, 1.0, %v322
    %327 = vst [vmem:[%s315] sm:$0xf] %v326
    // While loop
    $region90: #{custom-call.65} parent=1 // loop_pre_header
      _
    $region91: #{custom-call.65} parent=1 // loop_header
      %s329 = sphi 0, %s871
      %v330 = vlaneseq
      %v331 = vand.u32 %v330, 127
      %v332 = vmov %v331
      %v333 = vlaneseq
      %v334 = vshrl.u32 %v333, 7
      %v335 = vmov %v334
      %s336 = smov [#allocation23]
      %v337 = vlaneseq
      %v338 = vand.u32 %v337, 127
      %vm339 = vcmp.ge.s32.totalorder %v338, 0
      %vm340 = vcmp.lt.s32.totalorder %v338, 4
      %vm341 = vmand %vm339, %vm340
      %v342 = vld [vmem:[%s336] sm:$0xf]
      %v343 = vsel %vm341, %v342, 0.0
      %v344 = vmul.f32 %v343, %v343
      %vm347 = vcmp.eq.s32.totalorder %v335, %v332
      %v348 = vsel %vm347, 0.0, %v344
      %v349 = vlaneseq
      %v350 = vand.u32 %v349, 127
      %v351 = vmov %v350
      %v352 = vlaneseq
      %v353 = vshrl.u32 %v352, 7
      %v354 = vmov %v353
      %s355 = smov [#allocation24]
      %v356 = vlaneseq
      %v357 = vand.u32 %v356, 127
      %vm358 = vcmp.ge.s32.totalorder %v357, 0
      %vm359 = vcmp.lt.s32.totalorder %v357, 4
      %vm360 = vmand %vm358, %vm359
      %v361 = vld [vmem:[%s355] sm:$0xf]
      %v362 = vsel %vm360, %v361, 0.0
      %v363 = vmul.f32 %v362, %v362
      %v364 = vadd.f32 %v348, %v363
      %v365 = vadd.f32 %v344, %v363
      %v366 = vlaneseq
      %v367 = vand.u32 %v366, 127
      %v368 = vmov %v367
      %v369 = vlaneseq
      %v370 = vshrl.u32 %v369, 7
      %v371 = vmov %v370
      %s372 = smov [#allocation25]
      %v373 = vlaneseq
      %v374 = vand.u32 %v373, 127
      %vm375 = vcmp.ge.s32.totalorder %v374, 0
      %vm376 = vcmp.lt.s32.totalorder %v374, 4
      %vm377 = vmand %vm375, %vm376
      %v378 = vld [vmem:[%s372] sm:$0xf]
      %v379 = vsel %vm377, %v378, 0.0
      %v380 = vmul.f32 %v379, %v379
      %v381 = vadd.f32 %v364, %v380
      %v382 = vadd.f32 %v365, %v380
      %v383 = vlaneseq
      %v384 = vand.u32 %v383, 127
      %v385 = vmov %v384
      %v386 = vlaneseq
      %v387 = vshrl.u32 %v386, 7
      %v388 = vmov %v387
      %s389 = smov [#allocation26]
      %v390 = vlaneseq
      %v391 = vand.u32 %v390, 127
      %vm392 = vcmp.ge.s32.totalorder %v391, 0
      %vm393 = vcmp.lt.s32.totalorder %v391, 4
      %vm394 = vmand %vm392, %vm393
      %v395 = vld [vmem:[%s389] sm:$0xf]
      %v396 = vsel %vm394, %v395, 0.0
      %v397 = vmul.f32 %v396, %v396
      %vm400 = vcmp.eq.s32.totalorder %v388, %v385
      %v401 = vsel %vm400, 0.0, %v397
      %v402 = vadd.f32 %v381, %v401
      %v403 = vadd.f32 %v382, %v397
      %404 = vadd.xlane.f32.xlu0 %v403
      %v405 = vpop.xlane.xlu0 %404
      %v406 = vrot.slane %v405, 4
      %v407 = vadd.f32 %v405, %v406
      %v408 = vrot.slane %v407, 2
      %v409 = vadd.f32 %v407, %v408
      %v410 = vrot.slane %v409, 1
      %v411 = vadd.f32 %v409, %v410
      %412 = vadd.xlane.f32.xlu0 %v402
      %v413 = vpop.xlane.xlu0 %412
      %v414 = vrot.slane %v413, 4
      %v415 = vadd.f32 %v413, %v414
      %v416 = vrot.slane %v415, 2
      %v417 = vadd.f32 %v415, %v416
      %v418 = vrot.slane %v417, 1
      %v419 = vadd.f32 %v417, %v418
      %s420 = vtos %v419
      %s421 = vtos %v411
      %s422 = smul.f32 1e-10, %s421
      %p423 = scmp.le.f32.partialorder %s420, %s422
      %p424 = scmp.ge.s32.totalorder %s329, 15
      %p425 = por %p423, %p424
    $region92: #{custom-call.65} parent=1 // loop_header_branch
      %873 = sbr.rel (%p425) target = $region96
    $region93: #{custom-call.65} parent=1 // loop_body
      loop: start=0, step=1, limit=7
      $region97: #{custom-call.65} parent=93 // loop_pre_header
        _
      $region98: #{custom-call.65} parent=93 // loop_header
        %s427 = sphi 0, %s431
        %p428 = scmp.ge.s32.totalorder %s427, 7
      $region99: #{custom-call.65} parent=93 // loop_header_branch
        %430 = sbr.rel (%p428) target = $region103
      $region100: #{custom-call.65} parent=93 // loop_body
        #allocation27 [shape = 'f32[1024]{0}', space=vmem, size = 0x1000, scoped, tag = 'a_tl_diag vmem']
        #allocation28 [shape = 'f32[1024]{0}', space=vmem, size = 0x1000, scoped, tag = 'a_tr_diag vmem']
        #allocation29 [shape = 'f32[1024]{0}', space=vmem, size = 0x1000, scoped, tag = 'a_br_diag vmem']
        #allocation30 [shape = 'f32[1024]{0}', space=vmem, size = 0x1000, scoped, tag = 'rt1 vmem']
        #allocation31 [shape = 'f32[1024]{0}', space=vmem, size = 0x1000, scoped, tag = 'rt2 vmem']
        #allocation32 [shape = 'f32[1024]{0}', space=vmem, size = 0x1000, scoped, tag = 'c vmem']
        #allocation33 [shape = 'f32[1024]{0}', space=vmem, size = 0x1000, scoped, tag = 's vmem']
        #allocation34 [shape = 'f32[4096]{0}', space=vmem, size = 0x4000, scoped, tag = 'c broadcast']
        #allocation35 [shape = 'f32[4096]{0}', space=vmem, size = 0x4000, scoped, tag = 's broadcast']
        %s432 = smov [#allocation23]
        %s433 = smov [#allocation27]
        %v434 = vlaneseq
        %v435 = vand.u32 %v434, 127
        %v436 = vmov %v435
        %v437 = vlaneseq
        %v438 = vshrl.u32 %v437, 7
        %v439 = vmov %v438
        %v440 = vld [vmem:[%s432] sm:$0xf]
        %vm443 = vcmp.eq.s32.totalorder %v439, %v436
        %v444 = vsel %vm443, %v440, 0.0
        %v445 = vrot.slane %v444, 4
        %v446 = vadd.f32 %v444, %v445
        %v447 = vrot.slane %v446, 2
        %v448 = vadd.f32 %v446, %v447
        %v449 = vrot.slane %v448, 1
        %v450 = vadd.f32 %v448, %v449
        %451 = vst [vmem:[%s433] sm:$0x1] %v450
        %s452 = smov [#allocation24]
        %s453 = smov [#allocation28]
        %v454 = vlaneseq
        %v455 = vand.u32 %v454, 127
        %v456 = vmov %v455
        %v457 = vlaneseq
        %v458 = vshrl.u32 %v457, 7
        %v459 = vmov %v458
        %v460 = vld [vmem:[%s452] sm:$0xf]
        %vm463 = vcmp.eq.s32.totalorder %v459, %v456
        %v464 = vsel %vm463, %v460, 0.0
        %v465 = vrot.slane %v464, 4
        %v466 = vadd.f32 %v464, %v465
        %v467 = vrot.slane %v466, 2
        %v468 = vadd.f32 %v466, %v467
        %v469 = vrot.slane %v468, 1
        %v470 = vadd.f32 %v468, %v469
        %471 = vst [vmem:[%s453] sm:$0x1] %v470
        %s472 = smov [#allocation26]
        %s473 = smov [#allocation29]
        %v474 = vlaneseq
        %v475 = vand.u32 %v474, 127
        %v476 = vmov %v475
        %v477 = vlaneseq
        %v478 = vshrl.u32 %v477, 7
        %v479 = vmov %v478
        %v480 = vld [vmem:[%s472] sm:$0xf]
        %vm483 = vcmp.eq.s32.totalorder %v479, %v476
        %v484 = vsel %vm483, %v480, 0.0
        %v485 = vrot.slane %v484, 4
        %v486 = vadd.f32 %v484, %v485
        %v487 = vrot.slane %v486, 2
        %v488 = vadd.f32 %v486, %v487
        %v489 = vrot.slane %v488, 1
        %v490 = vadd.f32 %v488, %v489
        %491 = vst [vmem:[%s473] sm:$0x1] %v490
        %s492 = smov [#allocation32]
        %s493 = smov [#allocation33]
        %s494 = smov [#allocation27]
        %v495 = vld [vmem:[%s494] sm:$0xff]
        %s496 = smov [#allocation28]
        %v497 = vld [vmem:[%s496] sm:$0xff]
        %s498 = smov [#allocation29]
        %v499 = vld [vmem:[%s498] sm:$0xff]
        %v500 = vsub.f32 %v499, %v495
        %v501 = vmul.f32 2.0, %v497
        %v502 = vrcp.pop %v501
        %v503 = vmul.f32 %v500, %v502
        %vm504 = vcmp.ge.f32.partialorder %v503, 0.0
        %v505 = vmul.f32 %v503, %v503
        %v506 = vadd.f32 1.0, %v505
        %v507 = vrsqrt.pop %v506
        %v508 = vmul.f32 %v506, %v507
        %vm509 = vcmp.eq.f32.partialorder %v506, inf
        %v510 = vsel %vm509, %v506, %v508
        %vm511 = vcmp.eq.f32.partialorder %v506, 0.0
        %v512 = vand.u32 %v506, 2147483648
        %v513 = vsel %vm511, %v512, %v510
        %v514 = vxor.u32 %v513, 2147483648
        %v515 = vsel %vm504, %v513, %v514
        %v516 = vadd.f32 %v503, %v515
        %v517 = vrcp.pop %v516
        %v518 = vand.u32 2147483647, %v495
        %v519 = vand.u32 2147483647, %v497
        %v520 = vand.u32 2147483647, %v499
        %v521 = vmin.f32 %v518, %v520
        %v522 = vmul.f32 1.1920929e-08, %v521
        %vm523 = vcmp.le.f32.partialorder %v519, %v522
        %v524 = vsel %vm523, 0.0, %v517
        %v525 = vmul.f32 %v524, %v524
        %v526 = vadd.f32 1.0, %v525
        %v527 = vrsqrt.pop %v526
        %v528 = vmul.f32 %v524, %v527
        %v529 = vmul.f32 %v524, %v497
        %v530 = vsub.f32 %v495, %v529
        %v531 = vmul.f32 %v524, %v497
        %v532 = vadd.f32 %v499, %v531
        %s533 = smov [#allocation30]
        %534 = vst [vmem:[%s533] sm:$0xff] %v530
        %s535 = smov [#allocation31]
        %536 = vst [vmem:[%s535] sm:$0xff] %v532
        %s537 = smov %s492
        %538 = vst [vmem:[%s537] sm:$0xff] %v527
        %s539 = smov %s493
        %540 = vst [vmem:[%s539] sm:$0xff] %v528
        %s541 = smov [#allocation32]
        %v542 = vld [vmem:[%s541] ss:$0 sm:$0xff]
        %v543 = vlaneseq
        %v544 = vand.u32 %v543, 127
        %v545 = vmov %v544
        %v546 = vlaneseq
        %v547 = vshrl.u32 %v546, 7
        %v548 = vmov %v547
        %vm550 = vcmp.eq.s32.totalorder %v548, %v545
        %v551 = vsel %vm550, %v542, 0.0
        %552 = vadd.xlane.f32.xlu0 %v551
        %v553 = vpop.xlane.xlu0 %552
        %s554 = smov [#allocation34]
        %555 = vst [vmem:[%s554] sm:$0xff] %v553
        %s556 = smov [#allocation33]
        %v557 = vld [vmem:[%s556] ss:$0 sm:$0xff]
        %v558 = vlaneseq
        %v559 = vand.u32 %v558, 127
        %v560 = vmov %v559
        %v561 = vlaneseq
        %v562 = vshrl.u32 %v561, 7
        %v563 = vmov %v562
        %vm565 = vcmp.eq.s32.totalorder %v563, %v560
        %v566 = vsel %vm565, %v557, 0.0
        %567 = vadd.xlane.f32.xlu0 %v566
        %v568 = vpop.xlane.xlu0 %567
        %s569 = smov [#allocation35]
        %570 = vst [vmem:[%s569] sm:$0xff] %v568
        %s571 = smov [#allocation34]
        %v572 = vld [vmem:[%s571] sm:$0xff]
        %s573 = smov [#allocation35]
        %v574 = vld [vmem:[%s573] sm:$0xff]
        %s575 = smov [#allocation23]
        %s576 = smov [#allocation24]
        %s577 = smov [#allocation25]
        %s578 = smov [#allocation26]
        %v579 = vld [vmem:[%s575] sm:$0xf]
        %v580 = vld [vmem:[%s576] sm:$0xf]
        %v581 = vld [vmem:[%s577] sm:$0xf]
        %v582 = vld [vmem:[%s578] sm:$0xf]
        %v583 = vmul.f32 %v572, %v579
        %v584 = vmul.f32 %v574, %v581
        %v585 = vsub.f32 %v583, %v584
        %v586 = vmul.f32 %v572, %v580
        %v587 = vmul.f32 %v574, %v582
        %v588 = vsub.f32 %v586, %v587
        %v589 = vmul.f32 %v574, %v579
        %v590 = vmul.f32 %v572, %v581
        %v591 = vadd.f32 %v589, %v590
        %v592 = vmul.f32 %v574, %v580
        %v593 = vmul.f32 %v572, %v582
        %v594 = vadd.f32 %v592, %v593
        %595 = vst [vmem:[%s575] sm:$0xf] %v585
        %596 = vst [vmem:[%s576] sm:$0xf] %v588
        %597 = vst [vmem:[%s577] sm:$0xf] %v591
        %598 = vst [vmem:[%s578] sm:$0xf] %v594
        %s599 = smov [#allocation32]
        %v600 = vld [vmem:[%s599] ss:$0 sm:$0xff]
        %s601 = smov [#allocation33]
        %v602 = vld [vmem:[%s601] ss:$0 sm:$0xff]
        %s603 = smov [#allocation23]
        %s604 = smov [#allocation24]
        %s605 = smov [#allocation25]
        %s606 = smov [#allocation26]
        %v607 = vld [vmem:[%s603] sm:$0xf]
        %v608 = vld [vmem:[%s604] sm:$0xf]
        %v609 = vld [vmem:[%s605] sm:$0xf]
        %v610 = vld [vmem:[%s606] sm:$0xf]
        %v611 = vmul.f32 %v600, %v607
        %v612 = vmul.f32 %v602, %v608
        %v613 = vsub.f32 %v611, %v612
        %v614 = vmul.f32 %v602, %v607
        %v615 = vmul.f32 %v600, %v608
        %v616 = vadd.f32 %v614, %v615
        %v617 = vmul.f32 %v600, %v609
        %v618 = vmul.f32 %v602, %v610
        %v619 = vsub.f32 %v617, %v618
        %v620 = vmul.f32 %v602, %v609
        %v621 = vmul.f32 %v600, %v610
        %v622 = vadd.f32 %v620, %v621
        %623 = vst [vmem:[%s603] sm:$0xf] %v613
        %624 = vst [vmem:[%s604] sm:$0xf] %v616
        %625 = vst [vmem:[%s605] sm:$0xf] %v619
        %626 = vst [vmem:[%s606] sm:$0xf] %v622
        %s627 = smov [#allocation23]
        %s628 = smov [#allocation30]
        %v629 = vlaneseq
        %v630 = vand.u32 %v629, 127
        %v631 = vmov %v630
        %v632 = vlaneseq
        %v633 = vshrl.u32 %v632, 7
        %v634 = vmov %v633
        %v635 = vld [vmem:[%s628] ss:$0 sm:$0xff]
        %v636 = vld [vmem:[%s627] sm:$0xf]
        %vm639 = vcmp.eq.s32.totalorder %v634, %v631
        %v640 = vsel %vm639, %v635, %v636
        %641 = vst [vmem:[%s627] sm:$0xf] %v640
        %s642 = smov [#allocation24]
        %v643 = vlaneseq
        %v644 = vand.u32 %v643, 127
        %v645 = vmov %v644
        %v646 = vlaneseq
        %v647 = vshrl.u32 %v646, 7
        %v648 = vmov %v647
        %v649 = vld [vmem:[%s642] sm:$0xf]
        %vm652 = vcmp.eq.s32.totalorder %v648, %v645
        %v653 = vsel %vm652, 0.0, %v649
        %654 = vst [vmem:[%s642] sm:$0xf] %v653
        %s655 = smov [#allocation25]
        %v656 = vlaneseq
        %v657 = vand.u32 %v656, 127
        %v658 = vmov %v657
        %v659 = vlaneseq
        %v660 = vshrl.u32 %v659, 7
        %v661 = vmov %v660
        %v662 = vld [vmem:[%s655] sm:$0xf]
        %vm665 = vcmp.eq.s32.totalorder %v661, %v658
        %v666 = vsel %vm665, 0.0, %v662
        %667 = vst [vmem:[%s655] sm:$0xf] %v666
        %s668 = smov [#allocation26]
        %s669 = smov [#allocation31]
        %v670 = vlaneseq
        %v671 = vand.u32 %v670, 127
        %v672 = vmov %v671
        %v673 = vlaneseq
        %v674 = vshrl.u32 %v673, 7
        %v675 = vmov %v674
        %v676 = vld [vmem:[%s669] ss:$0 sm:$0xff]
        %v677 = vld [vmem:[%s668] sm:$0xf]
        %vm680 = vcmp.eq.s32.totalorder %v675, %v672
        %v681 = vsel %vm680, %v676, %v677
        %682 = vst [vmem:[%s668] sm:$0xf] %v681
        %s683 = smov [#allocation23]
        %s684 = smov [#allocation24]
        %v685 = vld [vmem:[%s684] sm:$0xf]
        %686 = vrot.lane.b32.xlu0 %v685, 1
        %v687 = vpop.permute.xlu0 %686
        %v688 = vld [vmem:[%s683] sm:$0xf]
        %v689 = vld [vmem:[%s683] sm:$0xf]
        %690 = vrot.lane.b32.xlu0 %v689, 1
        %v691 = vpop.permute.xlu0 %690
        %v692 = vlaneseq
        %v693 = vand.u32 %v692, 127
        %vm694 = vcmp.eq.s32.totalorder %v693, 0
        %v695 = vsel %vm694, %v689, %v691
        %v696 = vlaneseq
        %v697 = vand.u32 %v696, 127
        %vm698 = vcmp.eq.s32.totalorder %v697, 1
        %v699 = vsel %vm698, %v687, %v695
        %v700 = vlaneseq
        %v701 = vand.u32 %v700, 127
        %vm702 = vcmp.ge.s32.totalorder %v701, 0
        %vm703 = vcmp.lt.s32.totalorder %v701, 4
        %vm704 = vmand %vm702, %vm703
        %v705 = vsel %vm704, %v699, 0.0
        %v706 = vld [vmem:[%s684] sm:$0xf]
        %707 = vrot.lane.b32.xlu0 %v706, 127
        %v708 = vpop.permute.xlu0 %707
        %v709 = vlaneseq
        %v710 = vand.u32 %v709, 127
        %vm711 = vcmp.eq.s32.totalorder %v710, 3
        %v712 = vsel %vm711, %v688, %v708
        %713 = vst [vmem:[%s683] sm:$0xf] %v705
        %714 = vst [vmem:[%s684] sm:$0xf] %v712
        %s715 = smov [#allocation25]
        %s716 = smov [#allocation26]
        %v717 = vld [vmem:[%s716] sm:$0xf]
        %718 = vrot.lane.b32.xlu0 %v717, 1
        %v719 = vpop.permute.xlu0 %718
        %v720 = vld [vmem:[%s715] sm:$0xf]
        %v721 = vld [vmem:[%s715] sm:$0xf]
        %722 = vrot.lane.b32.xlu0 %v721, 1
        %v723 = vpop.permute.xlu0 %722
        %v724 = vlaneseq
        %v725 = vand.u32 %v724, 127
        %vm726 = vcmp.eq.s32.totalorder %v725, 0
        %v727 = vsel %vm726, %v721, %v723
        %v728 = vlaneseq
        %v729 = vand.u32 %v728, 127
        %vm730 = vcmp.eq.s32.totalorder %v729, 1
        %v731 = vsel %vm730, %v719, %v727
        %v732 = vlaneseq
        %v733 = vand.u32 %v732, 127
        %vm734 = vcmp.ge.s32.totalorder %v733, 0
        %vm735 = vcmp.lt.s32.totalorder %v733, 4
        %vm736 = vmand %vm734, %vm735
        %v737 = vsel %vm736, %v731, 0.0
        %v738 = vld [vmem:[%s716] sm:$0xf]
        %739 = vrot.lane.b32.xlu0 %v738, 127
        %v740 = vpop.permute.xlu0 %739
        %v741 = vlaneseq
        %v742 = vand.u32 %v741, 127
        %vm743 = vcmp.eq.s32.totalorder %v742, 3
        %v744 = vsel %vm743, %v720, %v740
        %745 = vst [vmem:[%s715] sm:$0xf] %v737
        %746 = vst [vmem:[%s716] sm:$0xf] %v744
        %s747 = smov [#allocation23]
        %s748 = smov [#allocation25]
        %v749 = vld [vmem:[%s747] ss:$0 sm:$0xff]
        %s751 = scalar_lea.vmem %s747, 4294967295
        %v752 = vld [vmem:[%s751] sm:$0xe]
        %v753 = vlaneseq
        %v754 = vshrl.u32 %v753, 7
        %vm755 = vcmp.eq.s32.totalorder %v754, 0
        %v756 = vsel %vm755, %v749, %v752
        %s757 = scalar_lea.vmem %s747, 3
        %v758 = vld [vmem:[%s757] ss:$0 sm:$0xff]
        %759 = vst [vmem:[%s747] sm:$0xf] %v756
        %v760 = vld [vmem:[%s748] ss:$0 sm:$0xff]
        %s761 = scalar_lea.vmem %s747, 1
        %762 = vst [vmem:[%s761] sm:$0x1] %v760
        %s763 = scalar_lea.vmem %s748, 1
        %v764 = vld [vmem:[%s763] sm:$0x7]
        %v765 = vlaneseq
        %v766 = vshrl.u32 %v765, 7
        %vm767 = vcmp.eq.s32.totalorder %v766, 3
        %v768 = vsel %vm767, %v758, %v764
        %v769 = vld [vmem:[%s748] ss:$0 sm:$0xff]
        %770 = vst [vmem:[%s748] sm:$0xf] %v768
        %s771 = smov [#allocation24]
        %s772 = smov [#allocation26]
        %v773 = vld [vmem:[%s771] ss:$0 sm:$0xff]
        %s775 = scalar_lea.vmem %s771, 4294967295
        %v776 = vld [vmem:[%s775] sm:$0xe]
        %v777 = vlaneseq
        %v778 = vshrl.u32 %v777, 7
        %vm779 = vcmp.eq.s32.totalorder %v778, 0
        %v780 = vsel %vm779, %v773, %v776
        %s781 = scalar_lea.vmem %s771, 3
        %v782 = vld [vmem:[%s781] ss:$0 sm:$0xff]
        %783 = vst [vmem:[%s771] sm:$0xf] %v780
        %v784 = vld [vmem:[%s772] ss:$0 sm:$0xff]
        %s785 = scalar_lea.vmem %s771, 1
        %786 = vst [vmem:[%s785] sm:$0x1] %v784
        %s787 = scalar_lea.vmem %s772, 1
        %v788 = vld [vmem:[%s787] sm:$0x7]
        %v789 = vlaneseq
        %v790 = vshrl.u32 %v789, 7
        %vm791 = vcmp.eq.s32.totalorder %v790, 3
        %v792 = vsel %vm791, %v782, %v788
        %v793 = vld [vmem:[%s772] ss:$0 sm:$0xff]
        %794 = vst [vmem:[%s772] sm:$0xf] %v792
        %s795 = smov [#allocation34]
        %v796 = vld [vmem:[%s795] sm:$0xff]
        %s797 = smov [#allocation35]
        %v798 = vld [vmem:[%s797] sm:$0xff]
        %s799 = smov [#allocation12]
        %s800 = smov [#allocation15]
        %s801 = smov [#allocation18]
        %s802 = smov [#allocation20]
        %v803 = vld [vmem:[%s799] sm:$0xf]
        %v804 = vld [vmem:[%s800] sm:$0xf]
        %v805 = vld [vmem:[%s801] sm:$0xf]
        %v806 = vld [vmem:[%s802] sm:$0xf]
        %v807 = vmul.f32 %v796, %v803
        %v808 = vmul.f32 %v798, %v805
        %v809 = vsub.f32 %v807, %v808
        %v810 = vmul.f32 %v796, %v804
        %v811 = vmul.f32 %v798, %v806
        %v812 = vsub.f32 %v810, %v811
        %v813 = vmul.f32 %v798, %v803
        %v814 = vmul.f32 %v796, %v805
        %v815 = vadd.f32 %v813, %v814
        %v816 = vmul.f32 %v798, %v804
        %v817 = vmul.f32 %v796, %v806
        %v818 = vadd.f32 %v816, %v817
        %819 = vst [vmem:[%s799] sm:$0xf] %v809
        %820 = vst [vmem:[%s800] sm:$0xf] %v812
        %821 = vst [vmem:[%s801] sm:$0xf] %v815
        %822 = vst [vmem:[%s802] sm:$0xf] %v818
        %s823 = smov [#allocation12]
        %s824 = smov [#allocation18]
        %v825 = vld [vmem:[%s823] ss:$0 sm:$0xff]
        %s827 = scalar_lea.vmem %s823, 4294967295
        %v828 = vld [vmem:[%s827] sm:$0xe]
        %v829 = vlaneseq
        %v830 = vshrl.u32 %v829, 7
        %vm831 = vcmp.eq.s32.totalorder %v830, 0
        %v832 = vsel %vm831, %v825, %v828
        %s833 = scalar_lea.vmem %s823, 3
        %v834 = vld [vmem:[%s833] ss:$0 sm:$0xff]
        %835 = vst [vmem:[%s823] sm:$0xf] %v832
        %v836 = vld [vmem:[%s824] ss:$0 sm:$0xff]
        %s837 = scalar_lea.vmem %s823, 1
        %838 = vst [vmem:[%s837] sm:$0x1] %v836
        %s839 = scalar_lea.vmem %s824, 1
        %v840 = vld [vmem:[%s839] sm:$0x7]
        %v841 = vlaneseq
        %v842 = vshrl.u32 %v841, 7
        %vm843 = vcmp.eq.s32.totalorder %v842, 3
        %v844 = vsel %vm843, %v834, %v840
        %v845 = vld [vmem:[%s824] ss:$0 sm:$0xff]
        %846 = vst [vmem:[%s824] sm:$0xf] %v844
        %s847 = smov [#allocation15]
        %s848 = smov [#allocation20]
        %v849 = vld [vmem:[%s847] ss:$0 sm:$0xff]
        %s851 = scalar_lea.vmem %s847, 4294967295
        %v852 = vld [vmem:[%s851] sm:$0xe]
        %v853 = vlaneseq
        %v854 = vshrl.u32 %v853, 7
        %vm855 = vcmp.eq.s32.totalorder %v854, 0
        %v856 = vsel %vm855, %v849, %v852
        %s857 = scalar_lea.vmem %s847, 3
        %v858 = vld [vmem:[%s857] ss:$0 sm:$0xff]
        %859 = vst [vmem:[%s847] sm:$0xf] %v856
        %v860 = vld [vmem:[%s848] ss:$0 sm:$0xff]
        %s861 = scalar_lea.vmem %s847, 1
        %862 = vst [vmem:[%s861] sm:$0x1] %v860
        %s863 = scalar_lea.vmem %s848, 1
        %v864 = vld [vmem:[%s863] sm:$0x7]
        %v865 = vlaneseq
        %v866 = vshrl.u32 %v865, 7
        %vm867 = vcmp.eq.s32.totalorder %v866, 3
        %v868 = vsel %vm867, %v858, %v864
        %v869 = vld [vmem:[%s848] ss:$0 sm:$0xff]
        %870 = vst [vmem:[%s848] sm:$0xf] %v868
      $region101: #{custom-call.65} parent=93 // loop_footer
        %s431 = sadd.s32 1, %s427
      $region102: #{custom-call.65} parent=93 // loop_footer_branch
        %426 = sbr.rel target = $region98
      $region103: #{custom-call.65} parent=93 // loop_exit
        _
      %s871 = sadd.s32 %s329, 1
    $region94: #{custom-call.65} parent=1 // loop_footer
      _
    $region95: #{custom-call.65} parent=1 // loop_footer_branch
      %328 = sbr.rel target = $region91
    $region96: #{custom-call.65} parent=1 // loop_exit
      _
    %s874 = smov [#allocation23]
    %s875 = smov [#allocation8]
    %v876 = vlaneseq
    %v877 = vand.u32 %v876, 127
    %v878 = vmov %v877
    %v879 = vlaneseq
    %v880 = vshrl.u32 %v879, 7
    %v881 = vmov %v880
    %v882 = vld [vmem:[%s874] sm:$0xf]
    %vm885 = vcmp.eq.s32.totalorder %v881, %v878
    %v886 = vsel %vm885, %v882, 0.0
    %v887 = vrot.slane %v886, 4
    %v888 = vadd.f32 %v886, %v887
    %v889 = vrot.slane %v888, 2
    %v890 = vadd.f32 %v888, %v889
    %v891 = vrot.slane %v890, 1
    %v892 = vadd.f32 %v890, %v891
    %893 = vst [vmem:[%s875] sm:$0x1] %v892
    %s894 = smov [#allocation26]
    %s895 = smov [#allocation10]
    %v896 = vlaneseq
    %v897 = vand.u32 %v896, 127
    %v898 = vmov %v897
    %v899 = vlaneseq
    %v900 = vshrl.u32 %v899, 7
    %v901 = vmov %v900
    %v902 = vld [vmem:[%s894] sm:$0xf]
    %vm905 = vcmp.eq.s32.totalorder %v901, %v898
    %v906 = vsel %vm905, %v902, 0.0
    %v907 = vrot.slane %v906, 4
    %v908 = vadd.f32 %v906, %v907
    %v909 = vrot.slane %v908, 2
    %v910 = vadd.f32 %v908, %v909
    %v911 = vrot.slane %v910, 1
    %v912 = vadd.f32 %v910, %v911
    %913 = vst [vmem:[%s895] sm:$0x1] %v912
    %s915 = sshll.u32 1, 1
    %s916 = ssub.s32 %s915, 1
    %v918 = vld [vmem:[#allocation8] sm:%s916]
    %s919 = sshll.u32 1, 1
    %s920 = ssub.s32 %s919, 1
    %921 = vst [vmem:[#allocation9] sm:%s920] %v918
    %s923 = sshll.u32 1, 1
    %s924 = ssub.s32 %s923, 1
    %v926 = vld [vmem:[#allocation10] sm:%s924]
    %s927 = sshll.u32 1, 1
    %s928 = ssub.s32 %s927, 1
    %929 = vst [vmem:[#allocation11] sm:%s928] %v926
    %s931 = sshll.u32 1, 4
    %s932 = ssub.s32 %s931, 1
    %v934 = vld [vmem:[#allocation12] sm:%s932]
    %s935 = sshll.u32 1, 4
    %s936 = ssub.s32 %s935, 1
    %937 = vst [vmem:[#allocation13] sm:%s936] %v934
    %s939 = sshll.u32 1, 4
    %s940 = ssub.s32 %s939, 1
    %v942 = vld [vmem:[#allocation15] sm:%s940]
    %s943 = sshll.u32 1, 4
    %s944 = ssub.s32 %s943, 1
    %945 = vst [vmem:[#allocation16] sm:%s944] %v942
    %s947 = sshll.u32 1, 4
    %s948 = ssub.s32 %s947, 1
    %v950 = vld [vmem:[#allocation18] sm:%s948]
    %s951 = sshll.u32 1, 4
    %s952 = ssub.s32 %s951, 1
    %953 = vst [vmem:[#allocation19] sm:%s952] %v950
    %s955 = sshll.u32 1, 4
    %s956 = ssub.s32 %s955, 1
    %v958 = vld [vmem:[#allocation20] sm:%s956]
    %s959 = sshll.u32 1, 4
    %s960 = ssub.s32 %s959, 1
    %961 = vst [vmem:[#allocation21] sm:%s960] %v958
    // Predicated region
    $region104: #{custom-call.65} parent=1 // pred_check
      _
    $region105: #{custom-call.65} parent=1 // pred_check_branch
      %963 = sbr.rel (0) target = $region107
    $region106: #{custom-call.65} parent=1 // pred_region
      %p965 = scmp.gt.s32.totalorder 1, 0
      // Predicated region
      $region108: #{custom-call.65} parent=106 // pred_check
        %p966 = pneg %p965
      $region109: #{custom-call.65} parent=106 // pred_check_branch
        %968 = sbr.rel (%p966) target = $region111
      $region110: #{custom-call.65} parent=106 // pred_region
        %s969 = sshra.s32 1, 3
        %p970 = scmp.gt.s32.totalorder %s969, 0
        // Predicated region
        $region112: #{custom-call.65} parent=110 // pred_check
          %p971 = pneg %p970
        $region113: #{custom-call.65} parent=110 // pred_check_branch
          %973 = sbr.rel (%p971) target = $region115
        $region114: #{custom-call.65} parent=110 // pred_region
          %s974 = ssub.s32 %s969, 1
          %s975 = smul.u32 %s974, 128
          %s976 = sshra.s32 %s975, 4
          %s977 = scalar_lea.vmem [#allocation9], %s976
          %v978 = vld [vmem:[#allocation9] sm:$0xff]
          // While loop
          $region116: #{custom-call.65} parent=114 // loop_pre_header
            _
          $region117: #{custom-call.65} parent=114 // loop_header
            %s979 = sphi [#allocation9], %s1001
            %s980 = sphi %s4, %s1002
            %v981 = vphi %v978, %v1003
            %s982 = ssub.s32 %s977, 64
            %p983 = scmp.gt.s32.totalorder %s979, %s982
          $region118: #{custom-call.65} parent=114 // loop_header_branch
            %985 = sbr.rel (%p983) target = $region122
          $region119: #{custom-call.65} parent=114 // loop_body
            %986 = vst [vmem:[%s980] sm:$0xff] %v981
            %v987 = vld [vmem:[%s979 + $0x8] sm:$0xff]
            %988 = vst [vmem:[%s980 + $0x8] sm:$0xff] %v987
            %v989 = vld [vmem:[%s979 + $0x10] sm:$0xff]
            %990 = vst [vmem:[%s980 + $0x10] sm:$0xff] %v989
            %v991 = vld [vmem:[%s979 + $0x18] sm:$0xff]
            %992 = vst [vmem:[%s980 + $0x18] sm:$0xff] %v991
            %v993 = vld [vmem:[%s979 + $0x20] sm:$0xff]
            %994 = vst [vmem:[%s980 + $0x20] sm:$0xff] %v993
            %v995 = vld [vmem:[%s979 + $0x28] sm:$0xff]
            %996 = vst [vmem:[%s980 + $0x28] sm:$0xff] %v995
            %v997 = vld [vmem:[%s979 + $0x30] sm:$0xff]
            %998 = vst [vmem:[%s980 + $0x30] sm:$0xff] %v997
            %v999 = vld [vmem:[%s979 + $0x38] sm:$0xff]
            %1000 = vst [vmem:[%s980 + $0x38] sm:$0xff] %v999
          $region120: #{custom-call.65} parent=114 // loop_footer
            %s1001 = scalar_lea.vmem %s979, 64
            %s1002 = scalar_lea.vmem %s980, 64
            %v1003 = vld [vmem:[%s979 + $0x40] sm:$0xff]
          $region121: #{custom-call.65} parent=114 // loop_footer_branch
            %1004 = sbr.rel target = $region117
          $region122: #{custom-call.65} parent=114 // loop_exit
            _
          // While loop
          $region123: #{custom-call.65} parent=114 // loop_pre_header
            _
          $region124: #{custom-call.65} parent=114 // loop_header
            %s1005 = sphi %s979, %s1013
            %s1006 = sphi %s980, %s1014
            %v1007 = vphi %v981, %v1007
            %p1008 = scmp.gt.s32.totalorder %s1005, %s977
          $region125: #{custom-call.65} parent=114 // loop_header_branch
            %1010 = sbr.rel (%p1008) target = $region129
          $region126: #{custom-call.65} parent=114 // loop_body
            %v1011 = vld [vmem:[%s1005] sm:$0xff]
            %1012 = vst [vmem:[%s1006] sm:$0xff] %v1011
          $region127: #{custom-call.65} parent=114 // loop_footer
            %s1013 = scalar_lea.vmem %s1005, 8
            %s1014 = scalar_lea.vmem %s1006, 8
          $region128: #{custom-call.65} parent=114 // loop_footer_branch
            %1015 = sbr.rel target = $region124
          $region129: #{custom-call.65} parent=114 // loop_exit
            _
        $region115: #{custom-call.65} parent=110 // pred_fallthru
          _
        %s1016 = sand.u32 1, 7
        %s1017 = sshll.u32 1, %s1016
        %s1018 = ssub.s32 %s1017, 1
        %s1019 = smul.u32 %s969, 128
        %s1020 = sshra.s32 %s1019, 4
        %s1021 = scalar_lea.vmem %s4, %s1020
        %s1022 = smul.u32 %s969, 128
        %s1023 = sshra.s32 %s1022, 4
        %s1024 = scalar_lea.vmem [#allocation9], %s1023
        %v1025 = vld [vmem:[%s1024] sm:%s1018]
        %1026 = vst [vmem:[%s1021] sm:%s1018] %v1025
      $region111: #{custom-call.65} parent=106 // pred_fallthru
        _
    $region107: #{custom-call.65} parent=1 // pred_fallthru
      _
    // Predicated region
    $region130: #{custom-call.65} parent=1 // pred_check
      _
    $region131: #{custom-call.65} parent=1 // pred_check_branch
      %1028 = sbr.rel (0) target = $region133
    $region132: #{custom-call.65} parent=1 // pred_region
      %p1030 = scmp.gt.s32.totalorder 1, 0
      // Predicated region
      $region134: #{custom-call.65} parent=132 // pred_check
        %p1031 = pneg %p1030
      $region135: #{custom-call.65} parent=132 // pred_check_branch
        %1033 = sbr.rel (%p1031) target = $region137
      $region136: #{custom-call.65} parent=132 // pred_region
        %s1034 = sshra.s32 1, 3
        %p1035 = scmp.gt.s32.totalorder %s1034, 0
        // Predicated region
        $region138: #{custom-call.65} parent=136 // pred_check
          %p1036 = pneg %p1035
        $region139: #{custom-call.65} parent=136 // pred_check_branch
          %1038 = sbr.rel (%p1036) target = $region141
        $region140: #{custom-call.65} parent=136 // pred_region
          %s1039 = ssub.s32 %s1034, 1
          %s1040 = smul.u32 %s1039, 128
          %s1041 = sshra.s32 %s1040, 4
          %s1042 = scalar_lea.vmem [#allocation11], %s1041
          %v1043 = vld [vmem:[#allocation11] sm:$0xff]
          // While loop
          $region142: #{custom-call.65} parent=140 // loop_pre_header
            _
          $region143: #{custom-call.65} parent=140 // loop_header
            %s1044 = sphi [#allocation11], %s1066
            %s1045 = sphi %s5, %s1067
            %v1046 = vphi %v1043, %v1068
            %s1047 = ssub.s32 %s1042, 64
            %p1048 = scmp.gt.s32.totalorder %s1044, %s1047
          $region144: #{custom-call.65} parent=140 // loop_header_branch
            %1050 = sbr.rel (%p1048) target = $region148
          $region145: #{custom-call.65} parent=140 // loop_body
            %1051 = vst [vmem:[%s1045] sm:$0xff] %v1046
            %v1052 = vld [vmem:[%s1044 + $0x8] sm:$0xff]
            %1053 = vst [vmem:[%s1045 + $0x8] sm:$0xff] %v1052
            %v1054 = vld [vmem:[%s1044 + $0x10] sm:$0xff]
            %1055 = vst [vmem:[%s1045 + $0x10] sm:$0xff] %v1054
            %v1056 = vld [vmem:[%s1044 + $0x18] sm:$0xff]
            %1057 = vst [vmem:[%s1045 + $0x18] sm:$0xff] %v1056
            %v1058 = vld [vmem:[%s1044 + $0x20] sm:$0xff]
            %1059 = vst [vmem:[%s1045 + $0x20] sm:$0xff] %v1058
            %v1060 = vld [vmem:[%s1044 + $0x28] sm:$0xff]
            %1061 = vst [vmem:[%s1045 + $0x28] sm:$0xff] %v1060
            %v1062 = vld [vmem:[%s1044 + $0x30] sm:$0xff]
            %1063 = vst [vmem:[%s1045 + $0x30] sm:$0xff] %v1062
            %v1064 = vld [vmem:[%s1044 + $0x38] sm:$0xff]
            %1065 = vst [vmem:[%s1045 + $0x38] sm:$0xff] %v1064
          $region146: #{custom-call.65} parent=140 // loop_footer
            %s1066 = scalar_lea.vmem %s1044, 64
            %s1067 = scalar_lea.vmem %s1045, 64
            %v1068 = vld [vmem:[%s1044 + $0x40] sm:$0xff]
          $region147: #{custom-call.65} parent=140 // loop_footer_branch
            %1069 = sbr.rel target = $region143
          $region148: #{custom-call.65} parent=140 // loop_exit
            _
          // While loop
          $region149: #{custom-call.65} parent=140 // loop_pre_header
            _
          $region150: #{custom-call.65} parent=140 // loop_header
            %s1070 = sphi %s1044, %s1078
            %s1071 = sphi %s1045, %s1079
            %v1072 = vphi %v1046, %v1072
            %p1073 = scmp.gt.s32.totalorder %s1070, %s1042
          $region151: #{custom-call.65} parent=140 // loop_header_branch
            %1075 = sbr.rel (%p1073) target = $region155
          $region152: #{custom-call.65} parent=140 // loop_body
            %v1076 = vld [vmem:[%s1070] sm:$0xff]
            %1077 = vst [vmem:[%s1071] sm:$0xff] %v1076
          $region153: #{custom-call.65} parent=140 // loop_footer
            %s1078 = scalar_lea.vmem %s1070, 8
            %s1079 = scalar_lea.vmem %s1071, 8
          $region154: #{custom-call.65} parent=140 // loop_footer_branch
            %1080 = sbr.rel target = $region150
          $region155: #{custom-call.65} parent=140 // loop_exit
            _
        $region141: #{custom-call.65} parent=136 // pred_fallthru
          _
        %s1081 = sand.u32 1, 7
        %s1082 = sshll.u32 1, %s1081
        %s1083 = ssub.s32 %s1082, 1
        %s1084 = smul.u32 %s1034, 128
        %s1085 = sshra.s32 %s1084, 4
        %s1086 = scalar_lea.vmem %s5, %s1085
        %s1087 = smul.u32 %s1034, 128
        %s1088 = sshra.s32 %s1087, 4
        %s1089 = scalar_lea.vmem [#allocation11], %s1088
        %v1090 = vld [vmem:[%s1089] sm:%s1083]
        %1091 = vst [vmem:[%s1086] sm:%s1083] %v1090
      $region137: #{custom-call.65} parent=132 // pred_fallthru
        _
    $region133: #{custom-call.65} parent=1 // pred_fallthru
      _
    %s1093 = ssub.s32 64, 64
    %1094 = vsyncadd [#allocation14], %s1093
    %s1095 = sshll.u32 [#allocation13], 4
    %s1096 = int_to_ptr.vmem [resolvable:$true] %s1095
    %1098 = dma.vmem_to_hbm [thread:$0]  %s1096, 64, %s6, [#allocation14]
    %s1100 = ssub.s32 64, 64
    %1101 = vsyncadd [#allocation17], %s1100
    %s1102 = sshll.u32 [#allocation16], 4
    %s1103 = int_to_ptr.vmem [resolvable:$true] %s1102
    %1105 = dma.vmem_to_hbm [thread:$0]  %s1103, 64, %s7, [#allocation17]
    %s1107 = ssub.s32 64, 64
    %1108 = vsyncadd [#allocation17], %s1107
    %s1109 = sshll.u32 [#allocation19], 4
    %s1110 = int_to_ptr.vmem [resolvable:$true] %s1109
    %1112 = dma.vmem_to_hbm [thread:$0]  %s1110, 64, %s8, [#allocation17]
    %s1114 = ssub.s32 64, 64
    %1115 = vsyncadd [#allocation22], %s1114
    %s1116 = sshll.u32 [#allocation21], 4
    %s1117 = int_to_ptr.vmem [resolvable:$true] %s1116
    %1119 = dma.vmem_to_hbm [thread:$0]  %s1117, 64, %s9, [#allocation22]
    // Predicated region
    $region156: #{custom-call.65} parent=1 // pred_check
      _
    $region157: #{custom-call.65} parent=1 // pred_check_branch
      %1121 = sbr.rel (0) target = $region159
    $region158: #{custom-call.65} parent=1 // pred_region
      _
    $region159: #{custom-call.65} parent=1 // pred_fallthru
      _
    // Predicated region
    $region160: #{custom-call.65} parent=1 // pred_check
      _
    $region161: #{custom-call.65} parent=1 // pred_check_branch
      %1123 = sbr.rel (0) target = $region163
    $region162: #{custom-call.65} parent=1 // pred_region
      _
    $region163: #{custom-call.65} parent=1 // pred_fallthru
      _
    %1124 = dma.done [#allocation14], 64
    %1125 = dma.done [#allocation17], 64
    %1126 = dma.done [#allocation17], 64
    %1127 = dma.done [#allocation22], 64
    %1128 = vsyncpa [#allocation14], 1
    %1129 = vsyncpa [#allocation17], 1
    %1130 = vsyncpa [#allocation22], 1

// kernel: reverse.3
$region0: #{reverse.3}
  %s0 = inlined_call_operand.vmem [shape: f32[8], index: 0, kind: input, shape index: {}]
  %s1 = inlined_call_operand.vmem [shape: f32[8], index: 1, kind: output, shape index: {}]
  %v2 = vlaneseq
  %v3 = vsub.s32 7, %v2
  %4 = vset.pattern.permute.xlu0 %v3
  $region1: #{reverse.3} parent=0
    #allocation0 [shape = 'u8[8192]{0}', space=vmem, size = 0x2000, scoped, tag = 'operand span for operand 0']
    #allocation1 [shape = 'u8[1024]{0}', space=vmem, size = 0x400, scoped, tag = 'packed  for operand 0']
    #allocation2 [shape = 'u8[4096]{0}', space=vmem, size = 0x1000, scoped, tag = 'operand span for operand 1']
    #allocation3 [shape = 'u8[512]{0}', space=vmem, size = 0x400, scoped, tag = 'packed  for operand 1']
    %s5 = scalar_lea.vmem [#allocation1], 1
    // Predicated region
    $region2: #{reverse.3} parent=1 // pred_check
      _
    $region3: #{reverse.3} parent=1 // pred_check_branch
      %7 = sbr.rel (0) target = $region5
    $region4: #{reverse.3} parent=1 // pred_region
      // Predicated region
      $region6: #{reverse.3} parent=4 // pred_check
        _
      $region7: #{reverse.3} parent=4 // pred_check_branch
        %9 = sbr.rel target = $region9
      $region8: #{reverse.3} parent=4 // pred_region
        // Predicated region
        $region21: #{reverse.3} parent=8 // pred_check
          _
        $region22: #{reverse.3} parent=8 // pred_check_branch
          %25 = sbr.rel (0) target = $region24
        $region23: #{reverse.3} parent=8 // pred_region
          %s27 = ssub.s32 2, 1
          loop: start=0, step=1, limit=1
          $region25: #{reverse.3} parent=23 // loop_pre_header
            _
          $region26: #{reverse.3} parent=23 // loop_header
            %s29 = sphi 0, %s33
            %p30 = scmp.ge.s32.totalorder %s29, 1
            %s34 = sphi %s0, %s0
            %s35 = sphi %s5, %s5
          $region27: #{reverse.3} parent=23 // loop_header_branch
            %32 = sbr.rel (%p30) target = $region31
          $region28: #{reverse.3} parent=23 // loop_body
            %v36 = vld [vmem:[%s34] sm:%s27]
            %37 = vst [vmem:[%s35] sm:%s27] %v36
          $region29: #{reverse.3} parent=23 // loop_footer
            %s33 = sadd.s32 1, %s29
          $region30: #{reverse.3} parent=23 // loop_footer_branch
            %28 = sbr.rel target = $region26
          $region31: #{reverse.3} parent=23 // loop_exit
            _
        $region24: #{reverse.3} parent=8 // pred_fallthru
          _
      $region9: #{reverse.3} parent=4 // pred_fallthru
        _
      // Predicated region
      $region10: #{reverse.3} parent=4 // pred_check
        _
      $region11: #{reverse.3} parent=4 // pred_check_branch
        %11 = sbr.rel (0) target = $region13
      $region12: #{reverse.3} parent=4 // pred_region
        %s13 = ssub.s32 2, 1
        loop: start=0, step=1, limit=1
        $region14: #{reverse.3} parent=12 // loop_pre_header
          _
        $region15: #{reverse.3} parent=12 // loop_header
          %s15 = sphi 0, %s19
          %p16 = scmp.ge.s32.totalorder %s15, 1
          %s20 = sphi %s0, %s0
          %s21 = sphi %s5, %s5
        $region16: #{reverse.3} parent=12 // loop_header_branch
          %18 = sbr.rel (%p16) target = $region20
        $region17: #{reverse.3} parent=12 // loop_body
          %v22 = vld [vmem:[%s20] sm:%s13]
          %23 = vst [vmem:[%s21] sm:%s13] %v22
        $region18: #{reverse.3} parent=12 // loop_footer
          %s19 = sadd.s32 1, %s15
        $region19: #{reverse.3} parent=12 // loop_footer_branch
          %14 = sbr.rel target = $region15
        $region20: #{reverse.3} parent=12 // loop_exit
          _
      $region13: #{reverse.3} parent=4 // pred_fallthru
        _
    $region5: #{reverse.3} parent=1 // pred_fallthru
      _
    %38 = vnop
    %s40 = sshll.u32 1, 1
    %s41 = ssub.s32 %s40, 1
    %s42 = scalar_lea.vmem [#allocation1], 1
    %v43 = vld [vmem:[%s42] sm:%s41]
    %s44 = scalar_lea.vmem [#allocation0], 8
    %45 = vst [vmem:[%s44] sm:%s41] %v43
    %v46 = vld [vmem:[#allocation1] sm:%s41]
    %47 = vst [vmem:[#allocation0] sm:%s41] %v46
    %s48 = scalar_lea.vmem [#allocation0], 7
    %v49 = vld [vmem:[%s48] ss:$-1 sm:$0xff]
    %v50 = vrot.slane %v49, 7
    %51 = vperm.xlu0 %4, %v50
    %v52 = vpop.permute.xlu0 %51
    %53 = vst [vmem:[#allocation2] sm:$0xff] %v52
    %s54 = scalar_lea.vmem [#allocation0], 8
    %s55 = scalar_lea.vmem %s54, 7 [#allocation0]
    %v56 = vld [vmem:[%s55] ss:$-1 sm:$0xff]
    %v57 = vrot.slane %v56, 7
    %58 = vperm.xlu0 %4, %v57
    %v59 = vpop.permute.xlu0 %58
    %v60 = vlaneseq
    %v61 = vshrl.u32 %v60, 7
    %vm62 = vcmp.lt.s32.totalorder %v61, 1
    %63 = vst.msk [vmem:[#allocation2] sm:$0xff] %vm62, %v59
    %s65 = sshll.u32 1, 1
    %s66 = ssub.s32 %s65, 1
    %v68 = vld [vmem:[#allocation2] sm:%s66]
    %s69 = sshll.u32 1, 1
    %s70 = ssub.s32 %s69, 1
    %71 = vst [vmem:[#allocation3] sm:%s70] %v68
    // Predicated region
    $region32: #{reverse.3} parent=1 // pred_check
      _
    $region33: #{reverse.3} parent=1 // pred_check_branch
      %73 = sbr.rel (0) target = $region35
    $region34: #{reverse.3} parent=1 // pred_region
      // Predicated region
      $region36: #{reverse.3} parent=34 // pred_check
        _
      $region37: #{reverse.3} parent=34 // pred_check_branch
        %75 = sbr.rel target = $region39
      $region38: #{reverse.3} parent=34 // pred_region
        // Predicated region
        $region51: #{reverse.3} parent=38 // pred_check
          _
        $region52: #{reverse.3} parent=38 // pred_check_branch
          %91 = sbr.rel (0) target = $region54
        $region53: #{reverse.3} parent=38 // pred_region
          %s93 = ssub.s32 2, 1
          loop: start=0, step=1, limit=1
          $region55: #{reverse.3} parent=53 // loop_pre_header
            _
          $region56: #{reverse.3} parent=53 // loop_header
            %s95 = sphi 0, %s99
            %p96 = scmp.ge.s32.totalorder %s95, 1
            %s100 = sphi [#allocation3], [#allocation3]
            %s101 = sphi %s1, %s1
          $region57: #{reverse.3} parent=53 // loop_header_branch
            %98 = sbr.rel (%p96) target = $region61
          $region58: #{reverse.3} parent=53 // loop_body
            %v102 = vld [vmem:[%s100] sm:%s93]
            %103 = vst [vmem:[%s101] sm:%s93] %v102
          $region59: #{reverse.3} parent=53 // loop_footer
            %s99 = sadd.s32 1, %s95
          $region60: #{reverse.3} parent=53 // loop_footer_branch
            %94 = sbr.rel target = $region56
          $region61: #{reverse.3} parent=53 // loop_exit
            _
        $region54: #{reverse.3} parent=38 // pred_fallthru
          _
      $region39: #{reverse.3} parent=34 // pred_fallthru
        _
      // Predicated region
      $region40: #{reverse.3} parent=34 // pred_check
        _
      $region41: #{reverse.3} parent=34 // pred_check_branch
        %77 = sbr.rel (0) target = $region43
      $region42: #{reverse.3} parent=34 // pred_region
        %s79 = ssub.s32 2, 1
        loop: start=0, step=1, limit=1
        $region44: #{reverse.3} parent=42 // loop_pre_header
          _
        $region45: #{reverse.3} parent=42 // loop_header
          %s81 = sphi 0, %s85
          %p82 = scmp.ge.s32.totalorder %s81, 1
          %s86 = sphi [#allocation3], [#allocation3]
          %s87 = sphi %s1, %s1
        $region46: #{reverse.3} parent=42 // loop_header_branch
          %84 = sbr.rel (%p82) target = $region50
        $region47: #{reverse.3} parent=42 // loop_body
          %v88 = vld [vmem:[%s86] sm:%s79]
          %89 = vst [vmem:[%s87] sm:%s79] %v88
        $region48: #{reverse.3} parent=42 // loop_footer
          %s85 = sadd.s32 1, %s81
        $region49: #{reverse.3} parent=42 // loop_footer_branch
          %80 = sbr.rel target = $region45
        $region50: #{reverse.3} parent=42 // loop_exit
          _
      $region43: #{reverse.3} parent=34 // pred_fallthru
        _
    $region35: #{reverse.3} parent=1 // pred_fallthru
      _
    %104 = vnop

// kernel: dilated_conv_block.2
$region0: #{dilated_conv_block.2}
  #allocation0 [shape = 'u32[]', space=smem, size = 0x4, offset = 0x4, fixed_abs, tag = 'smem constant byte address 0x4 - core index']
  #allocation1 [shape = 'u32[144,128]{1,0:T(1,128)}', space=vmem, size = 0x12000, scoped, tag = 'internal scratch']
  %s0 = inlined_call_operand.vmem [shape: f32[2,8,132], index: 0, kind: input, shape index: {}]
  %s1 = inlined_call_operand.vmem [shape: f32[2,1,8,4], index: 1, kind: input, shape index: {}]
  %s2 = inlined_call_operand.vmem [shape: f32[3,8,8], index: 2, kind: input, shape index: {}]
  %s3 = inlined_call_operand.vmem [shape: f32[2,8,128], index: 3, kind: output, shape index: {0}]
  %s4 = inlined_call_operand.vmem [shape: f32[2,8,2], index: 4, kind: output, shape index: {1}]
  %5 = xla_tuple %s3, %s4
  %s6 = sld [smem:[#allocation0]]
  $region57: #{dilated_conv_block.2} parent=0
    _
  %s8 = ssub.s32 1, %s6
  %s9 = scalar_select 0, %s8, %s6
  loop: start=0, step=1, limit=4
  $region2: #{dilated_conv_block.2} parent=0 // loop_pre_header
    _
  $region3: #{dilated_conv_block.2} parent=0 // loop_header
    %s11 = sphi 0, %s15
    %p12 = scmp.ge.s32.totalorder %s11, 4
    %s18 = sphi 0, %s30
    %s19 = sphi 0, %s26
    %s20 = sphi 0, %s18
    %s21 = sphi 0, %s19
    %s22 = sphi 0, %s20
    %s23 = sphi 0, %s21
    %s35 = sphi 0, %s37
    %s38 = sphi 0, %s35
    %s39 = sphi 0, %s38
    %s55 = sphi 0, %s39
    %s63 = sphi 0, %s65
    %s66 = sphi 0, %s63
    %s67 = sphi 0, %s66
    %s83 = sphi 0, %s67
    %s87 = sphi 0, %s87
    %s89 = sphi 0, %s87
    %s90 = sphi 0, %s89
    %s104 = sphi 0, %s90
    %s112 = sphi 0, %s114
    %s115 = sphi 0, %s112
    %s116 = sphi 0, %s115
    %s132 = sphi 0, %s116
    %s138 = sphi 0, %s140
    %s141 = sphi 0, %s138
    %s142 = sphi 0, %s141
    %s158 = sphi 0, %s142
  $region4: #{dilated_conv_block.2} parent=0 // loop_header_branch
    %14 = sbr.rel (%p12) target = $region8
  $region5: #{dilated_conv_block.2} parent=0 // loop_body
    %s16 = ssub.s32 %s11, 1
    %s17 = ssub.s32 %s11, 2
    %s24 = sadd.s32 1, %s19
    %p25 = scmp.ge.s32.totalorder %s24, 1
    %s26 = scalar_select %p25, 0, %s24
    %s27 = sadd.s32 1, %s18
    %s28 = scalar_select %p25, %s27, %s18
    %p29 = scmp.ge.s32.totalorder %s28, 2
    %s30 = scalar_select %p29, 0, %s28
    %s31 = ssub.s32 %s18, %s30
    %s32 = ssub.s32 %s19, %s26
    %s33 = sor.u32 %s31, %s32
    %p34 = scmp.eq.s32.totalorder %s33, 0
    %s36 = sadd.s32 %s35, 1
    %s37 = scalar_select %p34, %s35, %s36
    %p40 = pneg %p34
    %p41 = scmp.eq.s32.totalorder %s11, 1
    %p42 = por %p40, %p41
    %p43 = scmp.ne.s32.totalorder %s35, %s38
    %p44 = scmp.eq.s32.totalorder %s11, 0
    %p45 = por %p43, %p44
    %p46 = scmp.ne.s32.totalorder %s35, %s38
    %p47 = scmp.eq.s32.totalorder %s16, 1
    %p48 = por %p46, %p47
    %p49 = scmp.ne.s32.totalorder %s38, %s39
    %p50 = scmp.eq.s32.totalorder %s16, 0
    %p51 = por %p49, %p50
    %p52 = scmp.ne.s32.totalorder %s38, %s39
    %p53 = scmp.eq.s32.totalorder %s17, 1
    %p54 = por %p52, %p53
    %p56 = scmp.ne.s32.totalorder %s39, %s55
    %p57 = scmp.eq.s32.totalorder %s17, 0
    %p58 = por %p56, %p57
    %s59 = ssub.s32 %s18, %s30
    %s60 = ssub.s32 %s19, %s26
    %s61 = sor.u32 %s59, %s60
    %p62 = scmp.eq.s32.totalorder %s61, 0
    %s64 = sadd.s32 %s63, 1
    %s65 = scalar_select %p62, %s63, %s64
    %p68 = pneg %p62
    %p69 = scmp.eq.s32.totalorder %s11, 1
    %p70 = por %p68, %p69
    %p71 = scmp.ne.s32.totalorder %s63, %s66
    %p72 = scmp.eq.s32.totalorder %s11, 0
    %p73 = por %p71, %p72
    %p74 = scmp.ne.s32.totalorder %s63, %s66
    %p75 = scmp.eq.s32.totalorder %s16, 1
    %p76 = por %p74, %p75
    %p77 = scmp.ne.s32.totalorder %s66, %s67
    %p78 = scmp.eq.s32.totalorder %s16, 0
    %p79 = por %p77, %p78
    %p80 = scmp.ne.s32.totalorder %s66, %s67
    %p81 = scmp.eq.s32.totalorder %s17, 1
    %p82 = por %p80, %p81
    %p84 = scmp.ne.s32.totalorder %s67, %s83
    %p85 = scmp.eq.s32.totalorder %s17, 0
    %p86 = por %p84, %p85
    %s88 = sadd.s32 %s87, 1
    %p91 = scmp.eq.s32.totalorder %s11, 1
    %p92 = scmp.ne.s32.totalorder %s87, %s89
    %p93 = scmp.eq.s32.totalorder %s11, 0
    %p94 = por %p92, %p93
    %p95 = scmp.ne.s32.totalorder %s87, %s89
    %p96 = scmp.eq.s32.totalorder %s16, 1
    %p97 = por %p95, %p96
    %p98 = scmp.ne.s32.totalorder %s89, %s90
    %p99 = scmp.eq.s32.totalorder %s16, 0
    %p100 = por %p98, %p99
    %p101 = scmp.ne.s32.totalorder %s89, %s90
    %p102 = scmp.eq.s32.totalorder %s17, 1
    %p103 = por %p101, %p102
    %p105 = scmp.ne.s32.totalorder %s90, %s104
    %p106 = scmp.eq.s32.totalorder %s17, 0
    %p107 = por %p105, %p106
    %s108 = ssub.s32 %s18, %s30
    %s109 = ssub.s32 %s19, %s26
    %s110 = sor.u32 %s108, %s109
    %p111 = scmp.eq.s32.totalorder %s110, 0
    %s113 = sadd.s32 %s112, 1
    %s114 = scalar_select %p111, %s112, %s113
    %p117 = pneg %p111
    %p118 = scmp.eq.s32.totalorder %s11, 1
    %p119 = por %p117, %p118
    %p120 = scmp.ne.s32.totalorder %s112, %s115
    %p121 = scmp.eq.s32.totalorder %s11, 0
    %p122 = por %p120, %p121
    %p123 = scmp.ne.s32.totalorder %s112, %s115
    %p124 = scmp.eq.s32.totalorder %s16, 1
    %p125 = por %p123, %p124
    %p126 = scmp.ne.s32.totalorder %s115, %s116
    %p127 = scmp.eq.s32.totalorder %s16, 0
    %p128 = por %p126, %p127
    %p129 = scmp.ne.s32.totalorder %s115, %s116
    %p130 = scmp.eq.s32.totalorder %s17, 1
    %p131 = por %p129, %p130
    %p133 = scmp.ne.s32.totalorder %s116, %s132
    %p134 = scmp.eq.s32.totalorder %s17, 0
    %p135 = por %p133, %p134
    %s136 = ssub.s32 %s18, %s30
    %p137 = scmp.eq.s32.totalorder %s136, 0
    %s139 = sadd.s32 %s138, 1
    %s140 = scalar_select %p137, %s138, %s139
    %p143 = pneg %p137
    %p144 = scmp.eq.s32.totalorder %s11, 1
    %p145 = por %p143, %p144
    %p146 = scmp.ne.s32.totalorder %s138, %s141
    %p147 = scmp.eq.s32.totalorder %s11, 0
    %p148 = por %p146, %p147
    %p149 = scmp.ne.s32.totalorder %s138, %s141
    %p150 = scmp.eq.s32.totalorder %s16, 1
    %p151 = por %p149, %p150
    %p152 = scmp.ne.s32.totalorder %s141, %s142
    %p153 = scmp.eq.s32.totalorder %s16, 0
    %p154 = por %p152, %p153
    %p155 = scmp.ne.s32.totalorder %s141, %s142
    %p156 = scmp.eq.s32.totalorder %s17, 1
    %p157 = por %p155, %p156
    %p159 = scmp.ne.s32.totalorder %s142, %s158
    %p160 = scmp.eq.s32.totalorder %s17, 0
    %p161 = por %p159, %p160
    %p162 = scmp.le.s32.totalorder 1, %s11
    %p163 = scmp.lt.s32.totalorder %s11, 3
    %p164 = pnand %p162, %p163
    %p165 = pneg %p164
    // Predicated region
    $region9: #{dilated_conv_block.2} parent=5 // pred_check
      _
    $region10: #{dilated_conv_block.2} parent=5 // pred_check_branch
      %167 = sbr.rel (%p164) target = $region12
    $region11: #{dilated_conv_block.2} parent=5 // pred_region
      %s168 = ssub.s32 %s11, 1
      // Predicated region
      $region13: #{dilated_conv_block.2} parent=11 // pred_check
        %p169 = pneg %p100
      $region14: #{dilated_conv_block.2} parent=11 // pred_check_branch
        %171 = sbr.rel (%p169) target = $region16
      $region15: #{dilated_conv_block.2} parent=11 // pred_region
        _
      $region16: #{dilated_conv_block.2} parent=11 // pred_fallthru
        _
    $region12: #{dilated_conv_block.2} parent=5 // pred_fallthru
      _
    %p172 = scmp.lt.s32.totalorder %s11, 2
    // Predicated region
    $region17: #{dilated_conv_block.2} parent=5 // pred_check
      %p173 = pneg %p172
    $region18: #{dilated_conv_block.2} parent=5 // pred_check_branch
      %175 = sbr.rel (%p173) target = $region20
    $region19: #{dilated_conv_block.2} parent=5 // pred_region
      // Predicated region
      $region21: #{dilated_conv_block.2} parent=19 // pred_check
        %p176 = pneg %p45
      $region22: #{dilated_conv_block.2} parent=19 // pred_check_branch
        %178 = sbr.rel (%p176) target = $region24
      $region23: #{dilated_conv_block.2} parent=19 // pred_region
        %p179 = scmp.lt.s32.totalorder %s18, 1
        %s180 = scalar_select %p179, %s18, 1
        %p181 = scmp.lt.s32.totalorder %s19, 1
        %s182 = scalar_select %p181, %s19, 1
        %s183 = smul.addr %s180, 2
        %s184 = sadd.s32 %s182, %s183
        %s185 = smul.addr %s184, 8
        %s186 = scalar_lea.vmem %s0, %s185
      $region24: #{dilated_conv_block.2} parent=19 // pred_fallthru
        _
      // Predicated region
      $region25: #{dilated_conv_block.2} parent=19 // pred_check
        %p187 = pneg %p73
      $region26: #{dilated_conv_block.2} parent=19 // pred_check_branch
        %189 = sbr.rel (%p187) target = $region28
      $region27: #{dilated_conv_block.2} parent=19 // pred_region
        %p190 = scmp.lt.s32.totalorder %s18, 1
        %s191 = scalar_select %p190, %s18, 1
        %p192 = scmp.lt.s32.totalorder %s19, 0
        %s193 = scalar_select %p192, %s19, 0
        %s194 = sadd.s32 %s193, %s191
        %s195 = smul.addr %s194, 8
        %s196 = scalar_lea.vmem %s1, %s195
      $region28: #{dilated_conv_block.2} parent=19 // pred_fallthru
        _
    $region20: #{dilated_conv_block.2} parent=5 // pred_fallthru
      _
    %p197 = scmp.le.s32.totalorder 1, %s11
    %p198 = scmp.lt.s32.totalorder %s11, 3
    %p199 = pnand %p197, %p198
    %p200 = pneg %p199
    // Predicated region
    $region29: #{dilated_conv_block.2} parent=5 // pred_check
      _
    $region30: #{dilated_conv_block.2} parent=5 // pred_check_branch
      %202 = sbr.rel (%p199) target = $region32
    $region31: #{dilated_conv_block.2} parent=5 // pred_region
      %s203 = ssub.s32 %s11, 1
      %p204 = scmp.lt.s32.totalorder %s20, 1
      %s205 = scalar_select %p204, %s20, 1
      %p206 = scmp.lt.s32.totalorder %s21, 1
      %s207 = scalar_select %p206, %s21, 1
      %s208 = smul.addr %s205, 2
      %s209 = sadd.s32 %s207, %s208
      %s210 = smul.addr %s209, 8
      %s211 = scalar_lea.vmem %s0, %s210
      %p212 = pneg %p51
      %p213 = pneg %p48
      %p214 = scmp.lt.s32.totalorder %s20, 1
      %s215 = scalar_select %p214, %s20, 1
      %p216 = scmp.lt.s32.totalorder %s21, 0
      %s217 = scalar_select %p216, %s21, 0
      %s218 = sadd.s32 %s217, %s215
      %s219 = smul.addr %s218, 8
      %s220 = scalar_lea.vmem %s1, %s219
      %p221 = pneg %p79
      %p222 = pneg %p76
      %p223 = pneg %p100
      %p224 = pneg %p97
      %p225 = pneg %p128
      %p226 = pneg %p125
      %p227 = scmp.lt.s32.totalorder %s20, 1
      %s228 = scalar_select %p227, %s20, 1
      %p229 = scmp.lt.s32.totalorder %s21, 0
      %s230 = scalar_select %p229, %s21, 0
      %s231 = sadd.s32 %s230, %s228
      %s232 = smul.addr %s231, 8
      %s233 = scalar_lea.vmem %s3, %s232
      %p234 = pneg %p154
      %p235 = pneg %p151
      %p236 = scmp.lt.s32.totalorder %s20, 1
      %s237 = scalar_select %p236, %s20, 1
      %s238 = smul.addr %s237, 8
      %s239 = scalar_lea.vmem %s4, %s238
      %p240 = scmp.lt.s32.totalorder %s20, 1
      %s241 = scalar_select %p240, %s20, 1
      %p242 = scmp.lt.s32.totalorder %s21, 1
      %s243 = scalar_select %p242, %s21, 1
      %s244 = smul.addr %s241, 2
      %s245 = sadd.s32 %s243, %s244
      %s246 = smul.addr %s245, 8
      %s247 = scalar_lea.vmem %s0, %s246
      %p248 = scmp.lt.s32.totalorder %s20, 1
      %s249 = scalar_select %p248, %s20, 1
      %p250 = scmp.lt.s32.totalorder %s21, 0
      %s251 = scalar_select %p250, %s21, 0
      %s252 = sadd.s32 %s251, %s249
      %s253 = smul.addr %s252, 8
      %s254 = scalar_lea.vmem %s1, %s253
      %p255 = scmp.lt.s32.totalorder %s20, 1
      %s256 = scalar_select %p255, %s20, 1
      %p257 = scmp.lt.s32.totalorder %s21, 0
      %s258 = scalar_select %p257, %s21, 0
      %s259 = sadd.s32 %s258, %s256
      %s260 = smul.addr %s259, 8
      %s261 = scalar_lea.vmem %s3, %s260
      %p262 = scmp.lt.s32.totalorder %s20, 1
      %s263 = scalar_select %p262, %s20, 1
      %s264 = smul.addr %s263, 8
      %s265 = scalar_lea.vmem %s4, %s264
      %p266 = scmp.eq.s32.totalorder %s21, 0
      // Predicated region
      $region33: #{dilated_conv_block.2} parent=31 // pred_check
        %p267 = pneg %p266
      $region34: #{dilated_conv_block.2} parent=31 // pred_check_branch
        %269 = sbr.rel (%p267) target = $region36
      $region35: #{dilated_conv_block.2} parent=31 // pred_region
        %vm270 = vcmask 15360
        %271 = vst.msk [vmem:[%s265] sm:$0xff] %vm270, 0.0
      $region36: #{dilated_conv_block.2} parent=31 // pred_fallthru
        _
      %v272 = vld [vmem:[%s247] sm:$0xff]
      %v273 = vld [vmem:[%s254] sm:$0xff]
      %v274 = vld [vmem:[%s2] sm:$0xff]
      %s275 = scalar_lea.vmem %s2, 8
      %v276 = vld [vmem:[%s275] sm:$0xff]
      %279 = vrot.lane.b32.xlu0 %v272, 126
      %v280 = vpop.permute.xlu0 %279
      %281 = vrot.lane.b32.xlu0 %v273, 126
      %v282 = vpop.permute.xlu0 %281
      %vm283 = vcmask 1031168
      %v284 = vsel %vm283, %v280, %v282
      %vm286 = vcmask 64512
      %v288 = vsel %vm286, %v276, 0
      %290 = vmatprep.subr.mxu0 0.0
      %291 = vmatpush1.msra.mxu0 0.0
      %292 = vmatprep.subr.mxu0 0.0
      %293 = vmatpush1.msra.mxu0 0.0
      %294 = vmatprep.subr.mxu0 0.0
      %295 = vmatpush1.msra.mxu0 0.0
      %296 = vmatprep.subr.mxu0 0.0
      %297 = vmatpush1.msra.mxu0 0.0
      %298 = vmatprep.subr.mxu0 0.0
      %299 = vmatpush1.msra.mxu0 0.0
      %300 = vmatprep.subr.mxu0 0.0
      %301 = vmatpush1.msra.mxu0 0.0
      %302 = vmatprep.subr.mxu0 0.0
      %303 = vmatpush1.msra.mxu0 0.0
      %304 = vmatprep.subr.mxu0 0.0
      %305 = vmatpush1.msra.mxu0 0.0
      %306 = vmatprep.subr.mxu0 0.0
      %307 = vmatpush1.msra.mxu0 0.0
      %308 = vmatprep.subr.mxu0 0.0
      %309 = vmatpush1.msra.mxu0 0.0
      %310 = vmatprep.subr.mxu0 0.0
      %311 = vmatpush1.msra.mxu0 0.0
      %312 = vmatprep.subr.mxu0 0.0
      %313 = vmatpush1.msra.mxu0 0.0
      %314 = vmatprep.subr.mxu0 0.0
      %315 = vmatpush1.msra.mxu0 0.0
      %316 = vmatprep.subr.mxu0 0.0
      %317 = vmatpush1.msra.mxu0 0.0
      %318 = vmatprep.subr.mxu0 0.0
      %319 = vmatpush1.msra.mxu0 0.0
      %320 = vmatprep.subr.mxu0 0.0
      %321 = vmatpush1.msra.mxu0 %v284
      %322 = vmatprep.subr.mxu0 0.0
      %323 = vmatpush2.msra.mxu0 0.0
      %324 = vmatprep.subr.mxu0 0.0
      %325 = vmatpush2.msra.mxu0 0.0
      %326 = vmatprep.subr.mxu0 0.0
      %327 = vmatpush2.msra.mxu0 0.0
      %328 = vmatprep.subr.mxu0 0.0
      %329 = vmatpush2.msra.mxu0 0.0
      %330 = vmatprep.subr.mxu0 0.0
      %331 = vmatpush2.msra.mxu0 0.0
      %332 = vmatprep.subr.mxu0 0.0
      %333 = vmatpush2.msra.mxu0 0.0
      %334 = vmatprep.subr.mxu0 0.0
      %335 = vmatpush2.msra.mxu0 0.0
      %336 = vmatprep.subr.mxu0 0.0
      %337 = vmatpush2.msra.mxu0 0.0
      %338 = vmatprep.subr.mxu0 0.0
      %339 = vmatpush2.msra.mxu0 0.0
      %340 = vmatprep.subr.mxu0 0.0
      %341 = vmatpush2.msra.mxu0 0.0
      %342 = vmatprep.subr.mxu0 0.0
      %343 = vmatpush2.msra.mxu0 0.0
      %344 = vmatprep.subr.mxu0 0.0
      %345 = vmatpush2.msra.mxu0 0.0
      %346 = vmatprep.subr.mxu0 0.0
      %347 = vmatpush2.msra.mxu0 0.0
      %348 = vmatprep.subr.mxu0 0.0
      %349 = vmatpush2.msra.mxu0 0.0
      %350 = vmatprep.subr.mxu0 0.0
      %351 = vmatpush2.msra.mxu0 0.0
      %352 = vmatprep.subr.mxu0 0.0
      %353 = vmatpush2.msra.mxu0 0.0
      %354 = vmatprep.mubr.f32.mxu0 0.0
      %355 = vmatmul.mubr.f32.gmra.mxu0 %v288
      %v356 = vpop.f32.mrf.mxu0
      %v357 = vadd.f32 0.0, %v356
      %v358 = vpop.f32.mrf.mxu0
      %359 = vdwg.mxu0
      %v361 = vsel %vm286, %v274, 0
      %363 = vmatprep.subr.mxu0 0.0
      %364 = vmatpush1.msra.mxu0 0.0
      %365 = vmatprep.subr.mxu0 0.0
      %366 = vmatpush1.msra.mxu0 0.0
      %367 = vmatprep.subr.mxu0 0.0
      %368 = vmatpush1.msra.mxu0 0.0
      %369 = vmatprep.subr.mxu0 0.0
      %370 = vmatpush1.msra.mxu0 0.0
      %371 = vmatprep.subr.mxu0 0.0
      %372 = vmatpush1.msra.mxu0 0.0
      %373 = vmatprep.subr.mxu0 0.0
      %374 = vmatpush1.msra.mxu0 0.0
      %375 = vmatprep.subr.mxu0 0.0
      %376 = vmatpush1.msra.mxu0 0.0
      %377 = vmatprep.subr.mxu0 0.0
      %378 = vmatpush1.msra.mxu0 0.0
      %379 = vmatprep.subr.mxu0 0.0
      %380 = vmatpush1.msra.mxu0 0.0
      %381 = vmatprep.subr.mxu0 0.0
      %382 = vmatpush1.msra.mxu0 0.0
      %383 = vmatprep.subr.mxu0 0.0
      %384 = vmatpush1.msra.mxu0 0.0
      %385 = vmatprep.subr.mxu0 0.0
      %386 = vmatpush1.msra.mxu0 0.0
      %387 = vmatprep.subr.mxu0 0.0
      %388 = vmatpush1.msra.mxu0 0.0
      %389 = vmatprep.subr.mxu0 0.0
      %390 = vmatpush1.msra.mxu0 0.0
      %391 = vmatprep.subr.mxu0 0.0
      %392 = vmatpush1.msra.mxu0 0.0
      %393 = vmatprep.subr.mxu0 0.0
      %394 = vmatpush1.msra.mxu0 %v272
      %395 = vmatprep.subr.mxu0 0.0
      %396 = vmatpush2.msra.mxu0 0.0
      %397 = vmatprep.subr.mxu0 0.0
      %398 = vmatpush2.msra.mxu0 0.0
      %399 = vmatprep.subr.mxu0 0.0
      %400 = vmatpush2.msra.mxu0 0.0
      %401 = vmatprep.subr.mxu0 0.0
      %402 = vmatpush2.msra.mxu0 0.0
      %403 = vmatprep.subr.mxu0 0.0
      %404 = vmatpush2.msra.mxu0 0.0
      %405 = vmatprep.subr.mxu0 0.0
      %406 = vmatpush2.msra.mxu0 0.0
      %407 = vmatprep.subr.mxu0 0.0
      %408 = vmatpush2.msra.mxu0 0.0
      %409 = vmatprep.subr.mxu0 0.0
      %410 = vmatpush2.msra.mxu0 0.0
      %411 = vmatprep.subr.mxu0 0.0
      %412 = vmatpush2.msra.mxu0 0.0
      %413 = vmatprep.subr.mxu0 0.0
      %414 = vmatpush2.msra.mxu0 0.0
      %415 = vmatprep.subr.mxu0 0.0
      %416 = vmatpush2.msra.mxu0 0.0
      %417 = vmatprep.subr.mxu0 0.0
      %418 = vmatpush2.msra.mxu0 0.0
      %419 = vmatprep.subr.mxu0 0.0
      %420 = vmatpush2.msra.mxu0 0.0
      %421 = vmatprep.subr.mxu0 0.0
      %422 = vmatpush2.msra.mxu0 0.0
      %423 = vmatprep.subr.mxu0 0.0
      %424 = vmatpush2.msra.mxu0 0.0
      %425 = vmatprep.subr.mxu0 0.0
      %426 = vmatpush2.msra.mxu0 0.0
      %427 = vmatprep.mubr.f32.mxu0 0.0
      %428 = vmatmul.mubr.f32.gmra.mxu0 %v361
      %v429 = vpop.f32.mrf.mxu0
      %v430 = vadd.f32 %v357, %v429
      %v431 = vpop.f32.mrf.mxu0
      %432 = vdwg.mxu0
      %s433 = scalar_lea.vmem %s2, 16
      %v434 = vld [vmem:[%s433] sm:$0xff]
      %435 = vrot.lane.b32.xlu0 %v272, 124
      %v436 = vpop.permute.xlu0 %435
      %437 = vrot.lane.b32.xlu0 %v273, 124
      %v438 = vpop.permute.xlu0 %437
      %vm439 = vcmask 1014784
      %v440 = vsel %vm439, %v436, %v438
      %v443 = vsel %vm286, %v434, 0
      %445 = vmatprep.subr.mxu0 0.0
      %446 = vmatpush1.msra.mxu0 0.0
      %447 = vmatprep.subr.mxu0 0.0
      %448 = vmatpush1.msra.mxu0 0.0
      %449 = vmatprep.subr.mxu0 0.0
      %450 = vmatpush1.msra.mxu0 0.0
      %451 = vmatprep.subr.mxu0 0.0
      %452 = vmatpush1.msra.mxu0 0.0
      %453 = vmatprep.subr.mxu0 0.0
      %454 = vmatpush1.msra.mxu0 0.0
      %455 = vmatprep.subr.mxu0 0.0
      %456 = vmatpush1.msra.mxu0 0.0
      %457 = vmatprep.subr.mxu0 0.0
      %458 = vmatpush1.msra.mxu0 0.0
      %459 = vmatprep.subr.mxu0 0.0
      %460 = vmatpush1.msra.mxu0 0.0
      %461 = vmatprep.subr.mxu0 0.0
      %462 = vmatpush1.msra.mxu0 0.0
      %463 = vmatprep.subr.mxu0 0.0
      %464 = vmatpush1.msra.mxu0 0.0
      %465 = vmatprep.subr.mxu0 0.0
      %466 = vmatpush1.msra.mxu0 0.0
      %467 = vmatprep.subr.mxu0 0.0
      %468 = vmatpush1.msra.mxu0 0.0
      %469 = vmatprep.subr.mxu0 0.0
      %470 = vmatpush1.msra.mxu0 0.0
      %471 = vmatprep.subr.mxu0 0.0
      %472 = vmatpush1.msra.mxu0 0.0
      %473 = vmatprep.subr.mxu0 0.0
      %474 = vmatpush1.msra.mxu0 0.0
      %475 = vmatprep.subr.mxu0 0.0
      %476 = vmatpush1.msra.mxu0 %v440
      %477 = vmatprep.subr.mxu0 0.0
      %478 = vmatpush2.msra.mxu0 0.0
      %479 = vmatprep.subr.mxu0 0.0
      %480 = vmatpush2.msra.mxu0 0.0
      %481 = vmatprep.subr.mxu0 0.0
      %482 = vmatpush2.msra.mxu0 0.0
      %483 = vmatprep.subr.mxu0 0.0
      %484 = vmatpush2.msra.mxu0 0.0
      %485 = vmatprep.subr.mxu0 0.0
      %486 = vmatpush2.msra.mxu0 0.0
      %487 = vmatprep.subr.mxu0 0.0
      %488 = vmatpush2.msra.mxu0 0.0
      %489 = vmatprep.subr.mxu0 0.0
      %490 = vmatpush2.msra.mxu0 0.0
      %491 = vmatprep.subr.mxu0 0.0
      %492 = vmatpush2.msra.mxu0 0.0
      %493 = vmatprep.subr.mxu0 0.0
      %494 = vmatpush2.msra.mxu0 0.0
      %495 = vmatprep.subr.mxu0 0.0
      %496 = vmatpush2.msra.mxu0 0.0
      %497 = vmatprep.subr.mxu0 0.0
      %498 = vmatpush2.msra.mxu0 0.0
      %499 = vmatprep.subr.mxu0 0.0
      %500 = vmatpush2.msra.mxu0 0.0
      %501 = vmatprep.subr.mxu0 0.0
      %502 = vmatpush2.msra.mxu0 0.0
      %503 = vmatprep.subr.mxu0 0.0
      %504 = vmatpush2.msra.mxu0 0.0
      %505 = vmatprep.subr.mxu0 0.0
      %506 = vmatpush2.msra.mxu0 0.0
      %507 = vmatprep.subr.mxu0 0.0
      %508 = vmatpush2.msra.mxu0 0.0
      %509 = vmatprep.mubr.f32.mxu0 0.0
      %510 = vmatmul.mubr.f32.gmra.mxu0 %v443
      %v511 = vpop.f32.mrf.mxu0
      %v512 = vadd.f32 0.0, %v511
      %v513 = vpop.f32.mrf.mxu0
      %514 = vdwg.mxu0
      %v515 = vadd.f32 %v430, %v512
      %v516 = vlaneseq
      %v517 = vand.u32 %v516, 127
      %s518 = smul.u32 %s21, 128
      %v519 = vstv %s518
      %v520 = vadd.s32 %v517, %v519
      %vm521 = vcmp.lt.s32.totalorder %v520, 16
      %v522 = vsel %vm521, %v515, 0.0
      %523 = vst [vmem:[%s261] sm:$0xff] %v522
      %v524 = vld [vmem:[%s265] sm:$0xff]
      %525 = vadd.xlane.f32.xlu0 %v522
      %v526 = vpop.xlane.xlu0 %525
      %v527 = vadd.f32 %v524, %v526
      %vm528 = vcmask 7168
      %529 = vst.msk [vmem:[%s265] sm:$0xff] %vm528, %v527
      %v530 = vld [vmem:[%s265] sm:$0xff]
      %v531 = vmul.f32 %v522, %v522
      %532 = vadd.xlane.f32.xlu0 %v531
      %v533 = vpop.xlane.xlu0 %532
      %v534 = vadd.f32 %v530, %v533
      %vm535 = vcmask 15368
      %536 = vst.msk [vmem:[%s265] sm:$0xff] %vm535, %v534
      %p537 = scmp.lt.s32.totalorder %s20, 1
      %s538 = scalar_select %p537, %s20, 1
      %p539 = scmp.lt.s32.totalorder %s21, 0
      %s540 = scalar_select %p539, %s21, 0
      %s541 = sadd.s32 %s540, %s538
      %s542 = smul.addr %s541, 8
      %s543 = scalar_lea.vmem %s3, %s542
      %p544 = scmp.lt.s32.totalorder %s20, 1
      %s545 = scalar_select %p544, %s20, 1
      %s546 = smul.addr %s545, 8
      %s547 = scalar_lea.vmem %s4, %s546
      // Predicated region
      $region37: #{dilated_conv_block.2} parent=31 // pred_check
        %p548 = pneg %p125
      $region38: #{dilated_conv_block.2} parent=31 // pred_check_branch
        %550 = sbr.rel (%p548) target = $region40
      $region39: #{dilated_conv_block.2} parent=31 // pred_region
        _
      $region40: #{dilated_conv_block.2} parent=31 // pred_fallthru
        _
      // Predicated region
      $region41: #{dilated_conv_block.2} parent=31 // pred_check
        %p551 = pneg %p151
      $region42: #{dilated_conv_block.2} parent=31 // pred_check_branch
        %553 = sbr.rel (%p551) target = $region44
      $region43: #{dilated_conv_block.2} parent=31 // pred_region
        _
      $region44: #{dilated_conv_block.2} parent=31 // pred_fallthru
        _
    $region32: #{dilated_conv_block.2} parent=5 // pred_fallthru
      _
    %p554 = scmp.le.s32.totalorder 2, %s11
    // Predicated region
    $region45: #{dilated_conv_block.2} parent=5 // pred_check
      %p555 = pneg %p554
    $region46: #{dilated_conv_block.2} parent=5 // pred_check_branch
      %557 = sbr.rel (%p555) target = $region48
    $region47: #{dilated_conv_block.2} parent=5 // pred_region
      %s558 = ssub.s32 %s11, 2
      // Predicated region
      $region49: #{dilated_conv_block.2} parent=47 // pred_check
        %p559 = pneg %p131
      $region50: #{dilated_conv_block.2} parent=47 // pred_check_branch
        %561 = sbr.rel (%p559) target = $region52
      $region51: #{dilated_conv_block.2} parent=47 // pred_region
        %p562 = scmp.lt.s32.totalorder %s22, 1
        %s563 = scalar_select %p562, %s22, 1
        %p564 = scmp.lt.s32.totalorder %s23, 0
        %s565 = scalar_select %p564, %s23, 0
        %s566 = sadd.s32 %s565, %s563
        %s567 = smul.addr %s566, 8
        %s568 = scalar_lea.vmem %s3, %s567
      $region52: #{dilated_conv_block.2} parent=47 // pred_fallthru
        _
      // Predicated region
      $region53: #{dilated_conv_block.2} parent=47 // pred_check
        %p569 = pneg %p157
      $region54: #{dilated_conv_block.2} parent=47 // pred_check_branch
        %571 = sbr.rel (%p569) target = $region56
      $region55: #{dilated_conv_block.2} parent=47 // pred_region
        %p572 = scmp.lt.s32.totalorder %s22, 1
        %s573 = scalar_select %p572, %s22, 1
        %s574 = smul.addr %s573, 8
        %s575 = scalar_lea.vmem %s4, %s574
      $region56: #{dilated_conv_block.2} parent=47 // pred_fallthru
        _
    $region48: #{dilated_conv_block.2} parent=5 // pred_fallthru
      _
  $region6: #{dilated_conv_block.2} parent=0 // loop_footer
    %s15 = sadd.s32 1, %s11
  $region7: #{dilated_conv_block.2} parent=0 // loop_footer_branch
    %10 = sbr.rel target = $region3
  $region8: #{dilated_conv_block.2} parent=0 // loop_exit
    _

// kernel: dilated_conv_block.3
$region0: #{dilated_conv_block.3}
  #allocation0 [shape = 'u32[]', space=smem, size = 0x4, offset = 0x4, fixed_abs, tag = 'smem constant byte address 0x4 - core index']
  #allocation1 [shape = 'u32[144,128]{1,0:T(1,128)}', space=vmem, size = 0x12000, scoped, tag = 'internal scratch']
  %s0 = inlined_call_operand.vmem [shape: f32[2,8,128], index: 0, kind: input, shape index: {}, may-alias: {0,2}]
  %s1 = inlined_call_operand.vmem [shape: f32[2,8,2], index: 1, kind: input, shape index: {}]
  %s2 = inlined_call_operand.vmem [shape: f32[2,8,128], index: 2, kind: output, shape index: {}, may-alias: {0,2}]
  %s3 = sld [smem:[#allocation0]]
  $region41: #{dilated_conv_block.3} parent=0
    _
  %s5 = ssub.s32 1, %s3
  %s6 = scalar_select 0, %s5, %s3
  loop: start=0, step=1, limit=4
  $region2: #{dilated_conv_block.3} parent=0 // loop_pre_header
    _
  $region3: #{dilated_conv_block.3} parent=0 // loop_header
    %s8 = sphi 0, %s12
    %p9 = scmp.ge.s32.totalorder %s8, 4
    %s15 = sphi 0, %s27
    %s16 = sphi 0, %s23
    %s17 = sphi 0, %s15
    %s18 = sphi 0, %s16
    %s19 = sphi 0, %s17
    %s20 = sphi 0, %s18
    %s32 = sphi 0, %s34
    %s35 = sphi 0, %s32
    %s36 = sphi 0, %s35
    %s52 = sphi 0, %s36
    %s58 = sphi 0, %s60
    %s61 = sphi 0, %s58
    %s62 = sphi 0, %s61
    %s78 = sphi 0, %s62
    %s86 = sphi 0, %s88
    %s89 = sphi 0, %s86
    %s90 = sphi 0, %s89
    %s106 = sphi 0, %s90
  $region4: #{dilated_conv_block.3} parent=0 // loop_header_branch
    %11 = sbr.rel (%p9) target = $region8
  $region5: #{dilated_conv_block.3} parent=0 // loop_body
    %s13 = ssub.s32 %s8, 1
    %s14 = ssub.s32 %s8, 2
    %s21 = sadd.s32 1, %s16
    %p22 = scmp.ge.s32.totalorder %s21, 1
    %s23 = scalar_select %p22, 0, %s21
    %s24 = sadd.s32 1, %s15
    %s25 = scalar_select %p22, %s24, %s15
    %p26 = scmp.ge.s32.totalorder %s25, 2
    %s27 = scalar_select %p26, 0, %s25
    %s28 = ssub.s32 %s15, %s27
    %s29 = ssub.s32 %s16, %s23
    %s30 = sor.u32 %s28, %s29
    %p31 = scmp.eq.s32.totalorder %s30, 0
    %s33 = sadd.s32 %s32, 1
    %s34 = scalar_select %p31, %s32, %s33
    %p37 = pneg %p31
    %p38 = scmp.eq.s32.totalorder %s8, 1
    %p39 = por %p37, %p38
    %p40 = scmp.ne.s32.totalorder %s32, %s35
    %p41 = scmp.eq.s32.totalorder %s8, 0
    %p42 = por %p40, %p41
    %p43 = scmp.ne.s32.totalorder %s32, %s35
    %p44 = scmp.eq.s32.totalorder %s13, 1
    %p45 = por %p43, %p44
    %p46 = scmp.ne.s32.totalorder %s35, %s36
    %p47 = scmp.eq.s32.totalorder %s13, 0
    %p48 = por %p46, %p47
    %p49 = scmp.ne.s32.totalorder %s35, %s36
    %p50 = scmp.eq.s32.totalorder %s14, 1
    %p51 = por %p49, %p50
    %p53 = scmp.ne.s32.totalorder %s36, %s52
    %p54 = scmp.eq.s32.totalorder %s14, 0
    %p55 = por %p53, %p54
    %s56 = ssub.s32 %s15, %s27
    %p57 = scmp.eq.s32.totalorder %s56, 0
    %s59 = sadd.s32 %s58, 1
    %s60 = scalar_select %p57, %s58, %s59
    %p63 = pneg %p57
    %p64 = scmp.eq.s32.totalorder %s8, 1
    %p65 = por %p63, %p64
    %p66 = scmp.ne.s32.totalorder %s58, %s61
    %p67 = scmp.eq.s32.totalorder %s8, 0
    %p68 = por %p66, %p67
    %p69 = scmp.ne.s32.totalorder %s58, %s61
    %p70 = scmp.eq.s32.totalorder %s13, 1
    %p71 = por %p69, %p70
    %p72 = scmp.ne.s32.totalorder %s61, %s62
    %p73 = scmp.eq.s32.totalorder %s13, 0
    %p74 = por %p72, %p73
    %p75 = scmp.ne.s32.totalorder %s61, %s62
    %p76 = scmp.eq.s32.totalorder %s14, 1
    %p77 = por %p75, %p76
    %p79 = scmp.ne.s32.totalorder %s62, %s78
    %p80 = scmp.eq.s32.totalorder %s14, 0
    %p81 = por %p79, %p80
    %s82 = ssub.s32 %s15, %s27
    %s83 = ssub.s32 %s16, %s23
    %s84 = sor.u32 %s82, %s83
    %p85 = scmp.eq.s32.totalorder %s84, 0
    %s87 = sadd.s32 %s86, 1
    %s88 = scalar_select %p85, %s86, %s87
    %p91 = pneg %p85
    %p92 = scmp.eq.s32.totalorder %s8, 1
    %p93 = por %p91, %p92
    %p94 = scmp.ne.s32.totalorder %s86, %s89
    %p95 = scmp.eq.s32.totalorder %s8, 0
    %p96 = por %p94, %p95
    %p97 = scmp.ne.s32.totalorder %s86, %s89
    %p98 = scmp.eq.s32.totalorder %s13, 1
    %p99 = por %p97, %p98
    %p100 = scmp.ne.s32.totalorder %s89, %s90
    %p101 = scmp.eq.s32.totalorder %s13, 0
    %p102 = por %p100, %p101
    %p103 = scmp.ne.s32.totalorder %s89, %s90
    %p104 = scmp.eq.s32.totalorder %s14, 1
    %p105 = por %p103, %p104
    %p107 = scmp.ne.s32.totalorder %s90, %s106
    %p108 = scmp.eq.s32.totalorder %s14, 0
    %p109 = por %p107, %p108
    %p110 = scmp.le.s32.totalorder 1, %s8
    %p111 = scmp.lt.s32.totalorder %s8, 3
    %p112 = pnand %p110, %p111
    %p113 = pneg %p112
    // Predicated region
    $region9: #{dilated_conv_block.3} parent=5 // pred_check
      _
    $region10: #{dilated_conv_block.3} parent=5 // pred_check_branch
      %115 = sbr.rel (%p112) target = $region12
    $region11: #{dilated_conv_block.3} parent=5 // pred_region
      %s116 = ssub.s32 %s8, 1
    $region12: #{dilated_conv_block.3} parent=5 // pred_fallthru
      _
    %p117 = scmp.lt.s32.totalorder %s8, 2
    // Predicated region
    $region13: #{dilated_conv_block.3} parent=5 // pred_check
      %p118 = pneg %p117
    $region14: #{dilated_conv_block.3} parent=5 // pred_check_branch
      %120 = sbr.rel (%p118) target = $region16
    $region15: #{dilated_conv_block.3} parent=5 // pred_region
      // Predicated region
      $region17: #{dilated_conv_block.3} parent=15 // pred_check
        %p121 = pneg %p42
      $region18: #{dilated_conv_block.3} parent=15 // pred_check_branch
        %123 = sbr.rel (%p121) target = $region20
      $region19: #{dilated_conv_block.3} parent=15 // pred_region
        %p124 = scmp.lt.s32.totalorder %s15, 1
        %s125 = scalar_select %p124, %s15, 1
        %p126 = scmp.lt.s32.totalorder %s16, 0
        %s127 = scalar_select %p126, %s16, 0
        %s128 = sadd.s32 %s127, %s125
        %s129 = smul.addr %s128, 8
        %s130 = scalar_lea.vmem %s0, %s129
      $region20: #{dilated_conv_block.3} parent=15 // pred_fallthru
        _
      // Predicated region
      $region21: #{dilated_conv_block.3} parent=15 // pred_check
        %p131 = pneg %p68
      $region22: #{dilated_conv_block.3} parent=15 // pred_check_branch
        %133 = sbr.rel (%p131) target = $region24
      $region23: #{dilated_conv_block.3} parent=15 // pred_region
        %p134 = scmp.lt.s32.totalorder %s15, 1
        %s135 = scalar_select %p134, %s15, 1
        %s136 = smul.addr %s135, 8
        %s137 = scalar_lea.vmem %s1, %s136
      $region24: #{dilated_conv_block.3} parent=15 // pred_fallthru
        _
    $region16: #{dilated_conv_block.3} parent=5 // pred_fallthru
      _
    %p138 = scmp.le.s32.totalorder 1, %s8
    %p139 = scmp.lt.s32.totalorder %s8, 3
    %p140 = pnand %p138, %p139
    %p141 = pneg %p140
    // Predicated region
    $region25: #{dilated_conv_block.3} parent=5 // pred_check
      _
    $region26: #{dilated_conv_block.3} parent=5 // pred_check_branch
      %143 = sbr.rel (%p140) target = $region28
    $region27: #{dilated_conv_block.3} parent=5 // pred_region
      %s144 = ssub.s32 %s8, 1
      %p145 = scmp.lt.s32.totalorder %s17, 1
      %s146 = scalar_select %p145, %s17, 1
      %p147 = scmp.lt.s32.totalorder %s18, 0
      %s148 = scalar_select %p147, %s18, 0
      %s149 = sadd.s32 %s148, %s146
      %s150 = smul.addr %s149, 8
      %s151 = scalar_lea.vmem %s0, %s150
      %p152 = pneg %p48
      %p153 = pneg %p45
      %p154 = scmp.lt.s32.totalorder %s17, 1
      %s155 = scalar_select %p154, %s17, 1
      %s156 = smul.addr %s155, 8
      %s157 = scalar_lea.vmem %s1, %s156
      %p158 = pneg %p74
      %p159 = pneg %p71
      %p160 = pneg %p102
      %p161 = pneg %p99
      %p162 = scmp.lt.s32.totalorder %s17, 1
      %s163 = scalar_select %p162, %s17, 1
      %p164 = scmp.lt.s32.totalorder %s18, 0
      %s165 = scalar_select %p164, %s18, 0
      %s166 = sadd.s32 %s165, %s163
      %s167 = smul.addr %s166, 8
      %s168 = scalar_lea.vmem %s2, %s167
      %p169 = scmp.lt.s32.totalorder %s17, 1
      %s170 = scalar_select %p169, %s17, 1
      %p171 = scmp.lt.s32.totalorder %s18, 0
      %s172 = scalar_select %p171, %s18, 0
      %s173 = sadd.s32 %s172, %s170
      %s174 = smul.addr %s173, 8
      %s175 = scalar_lea.vmem %s0, %s174
      %p176 = scmp.lt.s32.totalorder %s17, 1
      %s177 = scalar_select %p176, %s17, 1
      %s178 = smul.addr %s177, 8
      %s179 = scalar_lea.vmem %s1, %s178
      %p180 = scmp.lt.s32.totalorder %s17, 1
      %s181 = scalar_select %p180, %s17, 1
      %p182 = scmp.lt.s32.totalorder %s18, 0
      %s183 = scalar_select %p182, %s18, 0
      %s184 = sadd.s32 %s183, %s181
      %s185 = smul.addr %s184, 8
      %s186 = scalar_lea.vmem %s2, %s185
      %v187 = vld [vmem:[%s179] sm:$0xff]
      %v188 = vld [vmem:[%s175] sm:$0xff]
      %190 = vset.pattern.permute.xlu0 0
      %191 = vperm.xlu0 %190, %v187
      %v192 = vpop.permute.xlu0 %191
      %v194 = vmul.f32 %v192, %v188
      %195 = vset.pattern.permute.xlu0 1
      %196 = vperm.xlu0 %195, %v187
      %v197 = vpop.permute.xlu0 %196
      %v199 = vadd.f32 %v194, %v197
      %v200 = vmax.f32 %v199, 0.0
      %201 = vst [vmem:[%s186] sm:$0xff] %v200
      %p202 = scmp.lt.s32.totalorder %s17, 1
      %s203 = scalar_select %p202, %s17, 1
      %p204 = scmp.lt.s32.totalorder %s18, 0
      %s205 = scalar_select %p204, %s18, 0
      %s206 = sadd.s32 %s205, %s203
      %s207 = smul.addr %s206, 8
      %s208 = scalar_lea.vmem %s2, %s207
      // Predicated region
      $region29: #{dilated_conv_block.3} parent=27 // pred_check
        %p209 = pneg %p99
      $region30: #{dilated_conv_block.3} parent=27 // pred_check_branch
        %211 = sbr.rel (%p209) target = $region32
      $region31: #{dilated_conv_block.3} parent=27 // pred_region
        _
      $region32: #{dilated_conv_block.3} parent=27 // pred_fallthru
        _
    $region28: #{dilated_conv_block.3} parent=5 // pred_fallthru
      _
    %p212 = scmp.le.s32.totalorder 2, %s8
    // Predicated region
    $region33: #{dilated_conv_block.3} parent=5 // pred_check
      %p213 = pneg %p212
    $region34: #{dilated_conv_block.3} parent=5 // pred_check_branch
      %215 = sbr.rel (%p213) target = $region36
    $region35: #{dilated_conv_block.3} parent=5 // pred_region
      %s216 = ssub.s32 %s8, 2
      // Predicated region
      $region37: #{dilated_conv_block.3} parent=35 // pred_check
        %p217 = pneg %p105
      $region38: #{dilated_conv_block.3} parent=35 // pred_check_branch
        %219 = sbr.rel (%p217) target = $region40
      $region39: #{dilated_conv_block.3} parent=35 // pred_region
        %p220 = scmp.lt.s32.totalorder %s19, 1
        %s221 = scalar_select %p220, %s19, 1
        %p222 = scmp.lt.s32.totalorder %s20, 0
        %s223 = scalar_select %p222, %s20, 0
        %s224 = sadd.s32 %s223, %s221
        %s225 = smul.addr %s224, 8
        %s226 = scalar_lea.vmem %s2, %s225
      $region40: #{dilated_conv_block.3} parent=35 // pred_fallthru
        _
    $region36: #{dilated_conv_block.3} parent=5 // pred_fallthru
      _
  $region6: #{dilated_conv_block.3} parent=0 // loop_footer
    %s12 = sadd.s32 1, %s8
  $region7: #{dilated_conv_block.3} parent=0 // loop_footer_branch
    %7 = sbr.rel target = $region3
  $region8: #{dilated_conv_block.3} parent=0 // loop_exit
    _

</llo_original>
